<compile_context>
chip_gen: v7x
topology: tpu7x:2x2x1
jax: 0.10.0
libtpu: 0.0.40
codegen_flags: <defaults>
</compile_context>

<pallas_src>
import numpy as np

import jax
import jax.numpy as jnp
from jax.experimental import pallas as pl
from jax.experimental.pallas import tpu as pltpu


# Order in which repacked parameters are passed to the kernel.
_PARAM_ORDER = (
    "w1", "b1", "w2", "b2", "w3", "b3", "w4", "b4",
    "pe1", "po1", "se1", "so1", "pe2", "po2", "se2", "so2",
    "sf",
    "fw1", "fb1", "fw2", "fb2", "fw3", "fb3",
)

# Images folded into the matmul M dimension per grid step (multiple of 8).
# B=8 suits v5e; 16-32 fill the 256-row MXU on v6e/v7x (re-run prepare_params
# with the matching block_b if you change it).
_DEFAULT_BLOCK_B = 8


# ---------------------------------------------------------------------------
# Fused Pallas kernel: whole SecondCNN forward for B images per grid step.
# ---------------------------------------------------------------------------

def _second_cnn_kernel(
        x_ref,
        w1_ref, b1_ref, w2_ref, b2_ref, w3_ref, b3_ref, w4_ref, b4_ref,
        pe1_ref, po1_ref, se1_ref, so1_ref,
        pe2_ref, po2_ref, se2_ref, so2_ref,
        sf_ref,
        fw1_ref, fb1_ref, fw2_ref, fb2_ref, fw3_ref, fb3_ref,
        o_ref):

    f32 = jnp.float32
    bf16 = jnp.bfloat16

    def mxu(a, w):
        # bf16 operands (native MXU rate), f32 accumulation.
        return jnp.dot(a.astype(bf16), w, preferred_element_type=f32)

    def conv_relu(a, w_ref, b_ref, k):
        # VALID conv in the stacked (B*Hpad, W*Cin) layout as ONE matmul:
        # lane-concatenate the k row-shifted slabs (full im2col) and multiply
        # by the flattened banded weight (k*W_in*Cin, Wo*Cout).  Output row j
        # is the conv result whose receptive field starts at stacked row j;
        # rows that would need another image's pixels are never selected
        # downstream.  Bias is pre-tiled to (1, Wo*Cout).
        r = a.shape[0] - (k - 1)
        lhs = jnp.concatenate([a[di:di + r, :] for di in range(k)], axis=-1)
        return jnp.maximum(mxu(lhs, w_ref[...]) + b_ref[...], 0.0)

    def pool2x2(a, pe_ref, po_ref, se_ref, so_ref):
        # 2x2/2 max pool: exact 0/1 selection matmuls commute with max.
        # Row (sublane) selection is block-diagonal over the B images; the
        # lane (W*C) selection is shared across the batch.
        a = a.astype(bf16)
        rows = jnp.maximum(
            jnp.dot(pe_ref[...], a, preferred_element_type=f32),
            jnp.dot(po_ref[...], a, preferred_element_type=f32))
        return jnp.maximum(mxu(rows, se_ref[...]), mxu(rows, so_ref[...]))

    x = x_ref[...]                                            # (B*32, 32*3)

    # conv1+ReLU: (B*32, 96) -> (B*32-4, 28*6);  pool -> (B*16, 14*6)
    a1 = conv_relu(x, w1_ref, b1_ref, 5)
    p1 = pool2x2(a1, pe1_ref, po1_ref, se1_ref, so1_ref)

    # conv2+ReLU: (B*16, 84) -> (B*16-4, 10*16); pool -> (B*8, 5*16)
    a2 = conv_relu(p1, w2_ref, b2_ref, 5)
    p2 = pool2x2(a2, pe2_ref, po2_ref, se2_ref, so2_ref)

    # conv3+ReLU: (B*8, 80) -> (B*8-2, 3*32)
    a3 = conv_relu(p2, w3_ref, b3_ref, 3)

    # conv4+ReLU: (B*8-2, 96) -> (B*8-4, 64)
    a4 = conv_relu(a3, w4_ref, b4_ref, 3)

    # Flatten (view(-1, 64)): gather row 8*b of each image block -> (B, 64).
    feat = jnp.dot(sf_ref[...], a4.astype(bf16), preferred_element_type=f32)

    # dropout(0.5): eval-mode identity.
    # TODO(synk): training-mode dropout (pltpu.prng_seed + stateful_bernoulli).

    h = jnp.maximum(mxu(feat, fw1_ref[...]) + fb1_ref[...], 0.0)   # 64  -> 120
    h = jnp.maximum(mxu(h, fw2_ref[...]) + fb2_ref[...], 0.0)      # 120 -> 84
    # fc3 is zero-padded to 128 output lanes -> one full lane-dense store.
    o_ref[...] = mxu(h, fw3_ref[...]) + fb3_ref[...]               # (B, 128)


# ---------------------------------------------------------------------------
# Forward wrapper (single pallas_call, B images per parallel grid step)
# ---------------------------------------------------------------------------

def second_cnn_forward(x_nchw, kp, block_b=_DEFAULT_BLOCK_B):
    """x_nchw: (N, 3, 32, 32) float32; kp: repacked params from prepare_params."""
    assert block_b % 8 == 0, "block_b must be a multiple of 8 (sublane tile)"
    assert kp["pe1"].shape[0] == block_b * 16, (
        "kp was prepared for a different block_b")

    n = x_nchw.shape[0]
    g = pl.cdiv(n, block_b)
    n_pad = g * block_b
    if n_pad != n:
        x_nchw = jnp.pad(x_nchw, ((0, n_pad - n), (0, 0), (0, 0), (0, 0)))

    # NCHW -> NHWC -> lane-dense stacked rows (N_pad*32, 32*3).
    x = jnp.transpose(x_nchw, (0, 2, 3, 1)).reshape(n_pad * 32, 32 * 3)
    weights = [kp[name] for name in _PARAM_ORDER]

    def const_spec(a):
        nd = a.ndim
        return pl.BlockSpec(tuple(a.shape), lambda i, _nd=nd: (0,) * _nd)

    out = pl.pallas_call(
        _second_cnn_kernel,
        out_shape=jax.ShapeDtypeStruct((n_pad, 128), jnp.float32),
        grid=(g,),  # B images per step; weights use a constant block index
        in_specs=[pl.BlockSpec((block_b * 32, 32 * 3), lambda i: (i, 0))]
                 + [const_spec(a) for a in weights],
        out_specs=pl.BlockSpec((block_b, 128), lambda i: (i, 0)),
        compiler_params=pltpu.CompilerParams(
            dimension_semantics=("parallel",)),
    )(x, *weights)
    return out[:n, :10]


# ---------------------------------------------------------------------------
# Parameter init (PyTorch layout) and one-time kernel-layout repack
# ---------------------------------------------------------------------------

def init_params(key):
    def uinit(k, shape, fan_in):
        bound = 1.0 / (fan_in ** 0.5)
        return jax.random.uniform(k, shape, jnp.float32, -bound, bound)

    keys = jax.random.split(key, 14)
    p = {}
    p["conv1_w"] = uinit(keys[0], (6, 3, 5, 5), 3 * 5 * 5)
    p["conv1_b"] = uinit(keys[1], (6,), 3 * 5 * 5)
    p["conv2_w"] = uinit(keys[2], (16, 6, 5, 5), 6 * 5 * 5)
    p["conv2_b"] = uinit(keys[3], (16,), 6 * 5 * 5)
    p["conv3_w"] = uinit(keys[4], (32, 16, 3, 3), 16 * 3 * 3)
    p["conv3_b"] = uinit(keys[5], (32,), 16 * 3 * 3)
    p["conv4_w"] = uinit(keys[6], (64, 32, 3, 3), 32 * 3 * 3)
    p["conv4_b"] = uinit(keys[7], (64,), 32 * 3 * 3)
    p["fc1_w"] = uinit(keys[8], (120, 64), 64)
    p["fc1_b"] = uinit(keys[9], (120,), 64)
    p["fc2_w"] = uinit(keys[10], (84, 120), 120)
    p["fc2_b"] = uinit(keys[11], (84,), 120)
    p["fc3_w"] = uinit(keys[12], (10, 84), 84)
    p["fc3_b"] = uinit(keys[13], (10,), 84)
    return p


def prepare_params(p, block_b=_DEFAULT_BLOCK_B):
    """One-time (outside jit) repack of PyTorch-layout params into kernel layout."""
    B = block_b

    def banded(w, w_in):
        # (Cout, Cin, k, k) -> flattened banded (k*W_in*Cin, Wo*Cout), bf16.
        # Row index di*(W_in*Cin) + wi*Cin + ci matches the lane-concat order
        # of the in-kernel im2col.
        w = np.asarray(w, np.float32)
        cout, cin, k, _ = w.shape
        wo = w_in - k + 1
        wb = np.zeros((k, w_in * cin, wo * cout), np.float32)
        for di in range(k):
            for j in range(wo):
                for dj in range(k):
                    wi = j + dj
                    wb[di, wi * cin:(wi + 1) * cin, j * cout:(j + 1) * cout] = (
                        w[:, :, di, dj].T)
        return jnp.asarray(wb.reshape(k * w_in * cin, wo * cout), jnp.bfloat16)

    def conv_bias(b, wo):
        return jnp.asarray(np.tile(np.asarray(b, np.float32), wo)[None, :])

    def row_select(hp_in, r_in, ho, hp_out):
        # Block-diagonal (B*hp_out, r_in) 0/1 row selections: pooled row
        # (b, r) takes conv rows b*hp_in + 2r / 2r+1; padding rows are zero.
        pe = np.zeros((B * hp_out, r_in), np.float32)
        po = np.zeros((B * hp_out, r_in), np.float32)
        for b in range(B):
            for r in range(ho // 2):
                pe[b * hp_out + r, b * hp_in + 2 * r] = 1.0
                po[b * hp_out + r, b * hp_in + 2 * r + 1] = 1.0
        return jnp.asarray(pe, jnp.bfloat16), jnp.asarray(po, jnp.bfloat16)

    def lane_select(w, c):
        # (W*C, (W//2)*C) 0/1 lane selections (shared across batch).
        eye = np.eye(c, dtype=np.float32)
        se = np.zeros((w * c, (w // 2) * c), np.float32)
        so = np.zeros((w * c, (w // 2) * c), np.float32)
        for j in range(w // 2):
            se[(2 * j) * c:(2 * j + 1) * c, j * c:(j + 1) * c] = eye
            so[(2 * j + 1) * c:(2 * j + 2) * c, j * c:(j + 1) * c] = eye
        return jnp.asarray(se, jnp.bfloat16), jnp.asarray(so, jnp.bfloat16)

    def fc(wname, bname, n_pad=None):
        w = np.asarray(p[wname], np.float32).T          # (K, N)
        b = np.asarray(p[bname], np.float32)[None, :]   # (1, N)
        if n_pad is not None:
            w = np.pad(w, ((0, 0), (0, n_pad - w.shape[1])))
            b = np.pad(b, ((0, 0), (0, n_pad - b.shape[1])))
        return jnp.asarray(w, jnp.bfloat16), jnp.asarray(b, jnp.float32)

    kp = {}
    kp["w1"], kp["b1"] = banded(p["conv1_w"], 32), conv_bias(p["conv1_b"], 28)
    kp["w2"], kp["b2"] = banded(p["conv2_w"], 14), conv_bias(p["conv2_b"], 10)
    kp["w3"], kp["b3"] = banded(p["conv3_w"], 5), conv_bias(p["conv3_b"], 3)
    kp["w4"], kp["b4"] = banded(p["conv4_w"], 3), conv_bias(p["conv4_b"], 1)

    kp["pe1"], kp["po1"] = row_select(32, 32 * B - 4, 28, 16)
    kp["se1"], kp["so1"] = lane_select(28, 6)
    kp["pe2"], kp["po2"] = row_select(16, 16 * B - 4, 10, 8)
    kp["se2"], kp["so2"] = lane_select(10, 16)

    # Feature gather: row 8*b of the conv4 output slab -> image b's 64-vector.
    sf = np.zeros((B, 8 * B - 4), np.float32)
    for b in range(B):
        sf[b, 8 * b] = 1.0
    kp["sf"] = jnp.asarray(sf, jnp.bfloat16)

    kp["fw1"], kp["fb1"] = fc("fc1_w", "fc1_b")
    kp["fw2"], kp["fb2"] = fc("fc2_w", "fc2_b")
    kp["fw3"], kp["fb3"] = fc("fc3_w", "fc3_b", n_pad=128)   # lane-dense logits
    return kp


# ---------------------------------------------------------------------------
# Pure-JAX reference (for validation only)
# ---------------------------------------------------------------------------

def reference_forward(x_nchw, p):
    hi = jax.lax.Precision.HIGHEST
    x = jnp.transpose(x_nchw, (0, 2, 3, 1))

    def conv(x, w, b):
        k = jnp.transpose(w, (2, 3, 1, 0))                      # OIHW -> HWIO
        y = jax.lax.conv_general_dilated(
            x, k, (1, 1), "VALID",
            dimension_numbers=("NHWC", "HWIO", "NHWC"), precision=hi)
        return jnp.maximum(y + b, 0.0)

    def pool(x):
        return jax.lax.reduce_window(
            x, -jnp.inf, jax.lax.max, (1, 2, 2, 1), (1, 2, 2, 1), "VALID")

    x = pool(conv(x, p["conv1_w"], p["conv1_b"]))
    x = pool(conv(x, p["conv2_w"], p["conv2_b"]))
    x = conv(x, p["conv3_w"], p["conv3_b"])
    x = conv(x, p["conv4_w"], p["conv4_b"])
    x = x.reshape(x.shape[0], 64)
    x = jnp.maximum(jnp.dot(x, p["fc1_w"].T, precision=hi) + p["fc1_b"], 0.0)
    x = jnp.maximum(jnp.dot(x, p["fc2_w"].T, precision=hi) + p["fc2_b"], 0.0)
    return jnp.dot(x, p["fc3_w"].T, precision=hi) + p["fc3_b"]


if __name__ == "__main__":
    key = jax.random.PRNGKey(0)
    k_param, k_input = jax.random.split(key)
    params = init_params(k_param)                      # PyTorch-layout parameters
    kparams = prepare_params(params, _DEFAULT_BLOCK_B) # one-time kernel repack
    # Input must be 3x32x32 so the 64*1*1 flatten matches the module.
    # batch=12 (not a multiple of the 8-image block) exercises the padding path
    # and still yields 2 grid steps (keeps both v7x TensorCores busy).
    x = jax.random.normal(k_input, (12, 3, 32, 32), dtype=jnp.float32)

    fwd = jax.jit(second_cnn_forward)
    out = jax.block_until_ready(fwd(x, kparams))
    assert out.shape == (12, 10), out.shape

    ref = jax.block_until_ready(jax.jit(reference_forward)(x, params))
    max_err = float(jnp.max(jnp.abs(out - ref)))
    assert bool(jnp.allclose(out, ref, rtol=5e-2, atol=5e-2)), (
        "max abs err vs reference: %f" % max_err)

    print("KERNEL_OK")
</pallas_src>

<mosaic_0001>
module attributes {stable_mosaic.version = 11 : i64} {
  func.func @_second_cnn_kernel(%arg0: i32, %arg1: memref<256x96xf32, #tpu.memory_space<vmem>>, %arg2: memref<480x168xbf16, #tpu.memory_space<vmem>>, %arg3: memref<1x168xf32, #tpu.memory_space<vmem>>, %arg4: memref<420x160xbf16, #tpu.memory_space<vmem>>, %arg5: memref<1x160xf32, #tpu.memory_space<vmem>>, %arg6: memref<240x96xbf16, #tpu.memory_space<vmem>>, %arg7: memref<1x96xf32, #tpu.memory_space<vmem>>, %arg8: memref<288x64xbf16, #tpu.memory_space<vmem>>, %arg9: memref<1x64xf32, #tpu.memory_space<vmem>>, %arg10: memref<128x252xbf16, #tpu.memory_space<vmem>>, %arg11: memref<128x252xbf16, #tpu.memory_space<vmem>>, %arg12: memref<168x84xbf16, #tpu.memory_space<vmem>>, %arg13: memref<168x84xbf16, #tpu.memory_space<vmem>>, %arg14: memref<64x124xbf16, #tpu.memory_space<vmem>>, %arg15: memref<64x124xbf16, #tpu.memory_space<vmem>>, %arg16: memref<160x80xbf16, #tpu.memory_space<vmem>>, %arg17: memref<160x80xbf16, #tpu.memory_space<vmem>>, %arg18: memref<8x60xbf16, #tpu.memory_space<vmem>>, %arg19: memref<64x120xbf16, #tpu.memory_space<vmem>>, %arg20: memref<1x120xf32, #tpu.memory_space<vmem>>, %arg21: memref<120x84xbf16, #tpu.memory_space<vmem>>, %arg22: memref<1x84xf32, #tpu.memory_space<vmem>>, %arg23: memref<84x128xbf16, #tpu.memory_space<vmem>>, %arg24: memref<1x128xf32, #tpu.memory_space<vmem>>, %arg25: memref<8x128xf32, #tpu.memory_space<vmem>>) attributes {dimension_semantics = [#tpu.dimension_semantics<parallel>], iteration_bounds = array<i64: 2>, scalar_prefetch = 0 : i64, scratch_operands = 0 : i64, tpu.core_type = #tpu.core_type<tc>, window_params = [{transform_indices = @transform_0, window_bounds = array<i64: 256, 96>}, {pipeline_mode = #tpu.pipeline_mode<synchronous>, transform_indices = @transform_1, window_bounds = array<i64: 480, 168>}, {pipeline_mode = #tpu.pipeline_mode<synchronous>, transform_indices = @transform_2, window_bounds = array<i64: 1, 168>}, {pipeline_mode = #tpu.pipeline_mode<synchronous>, transform_indices = @transform_3, window_bounds = array<i64: 420, 160>}, {pipeline_mode = #tpu.pipeline_mode<synchronous>, transform_indices = @transform_4, window_bounds = array<i64: 1, 160>}, {pipeline_mode = #tpu.pipeline_mode<synchronous>, transform_indices = @transform_5, window_bounds = array<i64: 240, 96>}, {pipeline_mode = #tpu.pipeline_mode<synchronous>, transform_indices = @transform_6, window_bounds = array<i64: 1, 96>}, {pipeline_mode = #tpu.pipeline_mode<synchronous>, transform_indices = @transform_7, window_bounds = array<i64: 288, 64>}, {pipeline_mode = #tpu.pipeline_mode<synchronous>, transform_indices = @transform_8, window_bounds = array<i64: 1, 64>}, {pipeline_mode = #tpu.pipeline_mode<synchronous>, transform_indices = @transform_9, window_bounds = array<i64: 128, 252>}, {pipeline_mode = #tpu.pipeline_mode<synchronous>, transform_indices = @transform_10, window_bounds = array<i64: 128, 252>}, {pipeline_mode = #tpu.pipeline_mode<synchronous>, transform_indices = @transform_11, window_bounds = array<i64: 168, 84>}, {pipeline_mode = #tpu.pipeline_mode<synchronous>, transform_indices = @transform_12, window_bounds = array<i64: 168, 84>}, {pipeline_mode = #tpu.pipeline_mode<synchronous>, transform_indices = @transform_13, window_bounds = array<i64: 64, 124>}, {pipeline_mode = #tpu.pipeline_mode<synchronous>, transform_indices = @transform_14, window_bounds = array<i64: 64, 124>}, {pipeline_mode = #tpu.pipeline_mode<synchronous>, transform_indices = @transform_15, window_bounds = array<i64: 160, 80>}, {pipeline_mode = #tpu.pipeline_mode<synchronous>, transform_indices = @transform_16, window_bounds = array<i64: 160, 80>}, {pipeline_mode = #tpu.pipeline_mode<synchronous>, transform_indices = @transform_17, window_bounds = array<i64: 8, 60>}, {pipeline_mode = #tpu.pipeline_mode<synchronous>, transform_indices = @transform_18, window_bounds = array<i64: 64, 120>}, {pipeline_mode = #tpu.pipeline_mode<synchronous>, transform_indices = @transform_19, window_bounds = array<i64: 1, 120>}, {pipeline_mode = #tpu.pipeline_mode<synchronous>, transform_indices = @transform_20, window_bounds = array<i64: 120, 84>}, {pipeline_mode = #tpu.pipeline_mode<synchronous>, transform_indices = @transform_21, window_bounds = array<i64: 1, 84>}, {pipeline_mode = #tpu.pipeline_mode<synchronous>, transform_indices = @transform_22, window_bounds = array<i64: 84, 128>}, {pipeline_mode = #tpu.pipeline_mode<synchronous>, transform_indices = @transform_23, window_bounds = array<i64: 1, 128>}, {transform_indices = @transform_24, window_bounds = array<i64: 8, 128>}]} {
    %c0 = arith.constant 0 : index
    %c0_0 = arith.constant 0 : index
    %0 = vector.load %arg1[%c0, %c0_0] : memref<256x96xf32, #tpu.memory_space<vmem>>, vector<256x96xf32>
    %1 = vector.extract_strided_slice %0 {offsets = [0, 0], sizes = [252, 96], strides = [1, 1]} : vector<256x96xf32> to vector<252x96xf32>
    %2 = vector.extract_strided_slice %0 {offsets = [1, 0], sizes = [252, 96], strides = [1, 1]} : vector<256x96xf32> to vector<252x96xf32>
    %3 = vector.extract_strided_slice %0 {offsets = [2, 0], sizes = [252, 96], strides = [1, 1]} : vector<256x96xf32> to vector<252x96xf32>
    %4 = vector.extract_strided_slice %0 {offsets = [3, 0], sizes = [252, 96], strides = [1, 1]} : vector<256x96xf32> to vector<252x96xf32>
    %5 = vector.extract_strided_slice %0 {offsets = [4, 0], sizes = [252, 96], strides = [1, 1]} : vector<256x96xf32> to vector<252x96xf32>
    %6 = tpu.concatenate %1, %2, %3, %4, %5 in 1 : vector<252x96xf32>, vector<252x96xf32>, vector<252x96xf32>, vector<252x96xf32>, vector<252x96xf32> -> vector<252x480xf32>
    %c0_1 = arith.constant 0 : index
    %c0_2 = arith.constant 0 : index
    %7 = vector.load %arg2[%c0_1, %c0_2] : memref<480x168xbf16, #tpu.memory_space<vmem>>, vector<480x168xbf16>
    %8 = arith.truncf %6 : vector<252x480xf32> to vector<252x480xbf16>
    %cst = arith.constant dense<0.000000e+00> : vector<252x168xf32>
    %9 = tpu.matmul %8, %7, %cst {dimension_numbers = #tpu.dot_dimension_numbers<[1], [0], [0], [1], [0, 0, 1, 1], [], []>} : vector<252x480xbf16>, vector<480x168xbf16>, vector<252x168xf32> -> vector<252x168xf32>
    %c0_3 = arith.constant 0 : index
    %c0_4 = arith.constant 0 : index
    %10 = vector.load %arg3[%c0_3, %c0_4] : memref<1x168xf32, #tpu.memory_space<vmem>>, vector<1x168xf32>
    %11 = vector.broadcast %10 : vector<1x168xf32> to vector<252x168xf32>
    %12 = arith.addf %9, %11 : vector<252x168xf32>
    %cst_5 = arith.constant 0.000000e+00 : f32
    %13 = vector.broadcast %cst_5 : f32 to vector<252x168xf32>
    %14 = arith.maximumf %12, %13 : vector<252x168xf32>
    %15 = arith.truncf %14 : vector<252x168xf32> to vector<252x168xbf16>
    %c0_6 = arith.constant 0 : index
    %c0_7 = arith.constant 0 : index
    %16 = vector.load %arg10[%c0_6, %c0_7] : memref<128x252xbf16, #tpu.memory_space<vmem>>, vector<128x252xbf16>
    %cst_8 = arith.constant dense<0.000000e+00> : vector<128x168xf32>
    %17 = tpu.matmul %16, %15, %cst_8 {dimension_numbers = #tpu.dot_dimension_numbers<[1], [0], [0], [1], [0, 0, 1, 1], [], []>} : vector<128x252xbf16>, vector<252x168xbf16>, vector<128x168xf32> -> vector<128x168xf32>
    %c0_9 = arith.constant 0 : index
    %c0_10 = arith.constant 0 : index
    %18 = vector.load %arg11[%c0_9, %c0_10] : memref<128x252xbf16, #tpu.memory_space<vmem>>, vector<128x252xbf16>
    %cst_11 = arith.constant dense<0.000000e+00> : vector<128x168xf32>
    %19 = tpu.matmul %18, %15, %cst_11 {dimension_numbers = #tpu.dot_dimension_numbers<[1], [0], [0], [1], [0, 0, 1, 1], [], []>} : vector<128x252xbf16>, vector<252x168xbf16>, vector<128x168xf32> -> vector<128x168xf32>
    %20 = arith.maximumf %17, %19 : vector<128x168xf32>
    %c0_12 = arith.constant 0 : index
    %c0_13 = arith.constant 0 : index
    %21 = vector.load %arg12[%c0_12, %c0_13] : memref<168x84xbf16, #tpu.memory_space<vmem>>, vector<168x84xbf16>
    %22 = arith.truncf %20 : vector<128x168xf32> to vector<128x168xbf16>
    %cst_14 = arith.constant dense<0.000000e+00> : vector<128x84xf32>
    %23 = tpu.matmul %22, %21, %cst_14 {dimension_numbers = #tpu.dot_dimension_numbers<[1], [0], [0], [1], [0, 0, 1, 1], [], []>} : vector<128x168xbf16>, vector<168x84xbf16>, vector<128x84xf32> -> vector<128x84xf32>
    %c0_15 = arith.constant 0 : index
    %c0_16 = arith.constant 0 : index
    %24 = vector.load %arg13[%c0_15, %c0_16] : memref<168x84xbf16, #tpu.memory_space<vmem>>, vector<168x84xbf16>
    %25 = arith.truncf %20 : vector<128x168xf32> to vector<128x168xbf16>
    %cst_17 = arith.constant dense<0.000000e+00> : vector<128x84xf32>
    %26 = tpu.matmul %25, %24, %cst_17 {dimension_numbers = #tpu.dot_dimension_numbers<[1], [0], [0], [1], [0, 0, 1, 1], [], []>} : vector<128x168xbf16>, vector<168x84xbf16>, vector<128x84xf32> -> vector<128x84xf32>
    %27 = arith.maximumf %23, %26 : vector<128x84xf32>
    %28 = vector.extract_strided_slice %27 {offsets = [0, 0], sizes = [124, 84], strides = [1, 1]} : vector<128x84xf32> to vector<124x84xf32>
    %29 = vector.extract_strided_slice %27 {offsets = [1, 0], sizes = [124, 84], strides = [1, 1]} : vector<128x84xf32> to vector<124x84xf32>
    %30 = vector.extract_strided_slice %27 {offsets = [2, 0], sizes = [124, 84], strides = [1, 1]} : vector<128x84xf32> to vector<124x84xf32>
    %31 = vector.extract_strided_slice %27 {offsets = [3, 0], sizes = [124, 84], strides = [1, 1]} : vector<128x84xf32> to vector<124x84xf32>
    %32 = vector.extract_strided_slice %27 {offsets = [4, 0], sizes = [124, 84], strides = [1, 1]} : vector<128x84xf32> to vector<124x84xf32>
    %33 = tpu.concatenate %28, %29, %30, %31, %32 in 1 : vector<124x84xf32>, vector<124x84xf32>, vector<124x84xf32>, vector<124x84xf32>, vector<124x84xf32> -> vector<124x420xf32>
    %c0_18 = arith.constant 0 : index
    %c0_19 = arith.constant 0 : index
    %34 = vector.load %arg4[%c0_18, %c0_19] : memref<420x160xbf16, #tpu.memory_space<vmem>>, vector<420x160xbf16>
    %35 = arith.truncf %33 : vector<124x420xf32> to vector<124x420xbf16>
    %cst_20 = arith.constant dense<0.000000e+00> : vector<124x160xf32>
    %36 = tpu.matmul %35, %34, %cst_20 {dimension_numbers = #tpu.dot_dimension_numbers<[1], [0], [0], [1], [0, 0, 1, 1], [], []>} : vector<124x420xbf16>, vector<420x160xbf16>, vector<124x160xf32> -> vector<124x160xf32>
    %c0_21 = arith.constant 0 : index
    %c0_22 = arith.constant 0 : index
    %37 = vector.load %arg5[%c0_21, %c0_22] : memref<1x160xf32, #tpu.memory_space<vmem>>, vector<1x160xf32>
    %38 = vector.broadcast %37 : vector<1x160xf32> to vector<124x160xf32>
    %39 = arith.addf %36, %38 : vector<124x160xf32>
    %cst_23 = arith.constant 0.000000e+00 : f32
    %40 = vector.broadcast %cst_23 : f32 to vector<124x160xf32>
    %41 = arith.maximumf %39, %40 : vector<124x160xf32>
    %42 = arith.truncf %41 : vector<124x160xf32> to vector<124x160xbf16>
    %c0_24 = arith.constant 0 : index
    %c0_25 = arith.constant 0 : index
    %43 = vector.load %arg14[%c0_24, %c0_25] : memref<64x124xbf16, #tpu.memory_space<vmem>>, vector<64x124xbf16>
    %cst_26 = arith.constant dense<0.000000e+00> : vector<64x160xf32>
    %44 = tpu.matmul %43, %42, %cst_26 {dimension_numbers = #tpu.dot_dimension_numbers<[1], [0], [0], [1], [0, 0, 1, 1], [], []>} : vector<64x124xbf16>, vector<124x160xbf16>, vector<64x160xf32> -> vector<64x160xf32>
    %c0_27 = arith.constant 0 : index
    %c0_28 = arith.constant 0 : index
    %45 = vector.load %arg15[%c0_27, %c0_28] : memref<64x124xbf16, #tpu.memory_space<vmem>>, vector<64x124xbf16>
    %cst_29 = arith.constant dense<0.000000e+00> : vector<64x160xf32>
    %46 = tpu.matmul %45, %42, %cst_29 {dimension_numbers = #tpu.dot_dimension_numbers<[1], [0], [0], [1], [0, 0, 1, 1], [], []>} : vector<64x124xbf16>, vector<124x160xbf16>, vector<64x160xf32> -> vector<64x160xf32>
    %47 = arith.maximumf %44, %46 : vector<64x160xf32>
    %c0_30 = arith.constant 0 : index
    %c0_31 = arith.constant 0 : index
    %48 = vector.load %arg16[%c0_30, %c0_31] : memref<160x80xbf16, #tpu.memory_space<vmem>>, vector<160x80xbf16>
    %49 = arith.truncf %47 : vector<64x160xf32> to vector<64x160xbf16>
    %cst_32 = arith.constant dense<0.000000e+00> : vector<64x80xf32>
    %50 = tpu.matmul %49, %48, %cst_32 {dimension_numbers = #tpu.dot_dimension_numbers<[1], [0], [0], [1], [0, 0, 1, 1], [], []>} : vector<64x160xbf16>, vector<160x80xbf16>, vector<64x80xf32> -> vector<64x80xf32>
    %c0_33 = arith.constant 0 : index
    %c0_34 = arith.constant 0 : index
    %51 = vector.load %arg17[%c0_33, %c0_34] : memref<160x80xbf16, #tpu.memory_space<vmem>>, vector<160x80xbf16>
    %52 = arith.truncf %47 : vector<64x160xf32> to vector<64x160xbf16>
    %cst_35 = arith.constant dense<0.000000e+00> : vector<64x80xf32>
    %53 = tpu.matmul %52, %51, %cst_35 {dimension_numbers = #tpu.dot_dimension_numbers<[1], [0], [0], [1], [0, 0, 1, 1], [], []>} : vector<64x160xbf16>, vector<160x80xbf16>, vector<64x80xf32> -> vector<64x80xf32>
    %54 = arith.maximumf %50, %53 : vector<64x80xf32>
    %55 = vector.extract_strided_slice %54 {offsets = [0, 0], sizes = [62, 80], strides = [1, 1]} : vector<64x80xf32> to vector<62x80xf32>
    %56 = vector.extract_strided_slice %54 {offsets = [1, 0], sizes = [62, 80], strides = [1, 1]} : vector<64x80xf32> to vector<62x80xf32>
    %57 = vector.extract_strided_slice %54 {offsets = [2, 0], sizes = [62, 80], strides = [1, 1]} : vector<64x80xf32> to vector<62x80xf32>
    %58 = tpu.concatenate %55, %56, %57 in 1 : vector<62x80xf32>, vector<62x80xf32>, vector<62x80xf32> -> vector<62x240xf32>
    %c0_36 = arith.constant 0 : index
    %c0_37 = arith.constant 0 : index
    %59 = vector.load %arg6[%c0_36, %c0_37] : memref<240x96xbf16, #tpu.memory_space<vmem>>, vector<240x96xbf16>
    %60 = arith.truncf %58 : vector<62x240xf32> to vector<62x240xbf16>
    %cst_38 = arith.constant dense<0.000000e+00> : vector<62x96xf32>
    %61 = tpu.matmul %60, %59, %cst_38 {dimension_numbers = #tpu.dot_dimension_numbers<[1], [0], [0], [1], [0, 0, 1, 1], [], []>} : vector<62x240xbf16>, vector<240x96xbf16>, vector<62x96xf32> -> vector<62x96xf32>
    %c0_39 = arith.constant 0 : index
    %c0_40 = arith.constant 0 : index
    %62 = vector.load %arg7[%c0_39, %c0_40] : memref<1x96xf32, #tpu.memory_space<vmem>>, vector<1x96xf32>
    %63 = vector.broadcast %62 : vector<1x96xf32> to vector<62x96xf32>
    %64 = arith.addf %61, %63 : vector<62x96xf32>
    %cst_41 = arith.constant 0.000000e+00 : f32
    %65 = vector.broadcast %cst_41 : f32 to vector<62x96xf32>
    %66 = arith.maximumf %64, %65 : vector<62x96xf32>
    %67 = vector.extract_strided_slice %66 {offsets = [0, 0], sizes = [60, 96], strides = [1, 1]} : vector<62x96xf32> to vector<60x96xf32>
    %68 = vector.extract_strided_slice %66 {offsets = [1, 0], sizes = [60, 96], strides = [1, 1]} : vector<62x96xf32> to vector<60x96xf32>
    %69 = vector.extract_strided_slice %66 {offsets = [2, 0], sizes = [60, 96], strides = [1, 1]} : vector<62x96xf32> to vector<60x96xf32>
    %70 = tpu.concatenate %67, %68, %69 in 1 : vector<60x96xf32>, vector<60x96xf32>, vector<60x96xf32> -> vector<60x288xf32>
    %c0_42 = arith.constant 0 : index
    %c0_43 = arith.constant 0 : index
    %71 = vector.load %arg8[%c0_42, %c0_43] : memref<288x64xbf16, #tpu.memory_space<vmem>>, vector<288x64xbf16>
    %72 = arith.truncf %70 : vector<60x288xf32> to vector<60x288xbf16>
    %cst_44 = arith.constant dense<0.000000e+00> : vector<60x64xf32>
    %73 = tpu.matmul %72, %71, %cst_44 {dimension_numbers = #tpu.dot_dimension_numbers<[1], [0], [0], [1], [0, 0, 1, 1], [], []>} : vector<60x288xbf16>, vector<288x64xbf16>, vector<60x64xf32> -> vector<60x64xf32>
    %c0_45 = arith.constant 0 : index
    %c0_46 = arith.constant 0 : index
    %74 = vector.load %arg9[%c0_45, %c0_46] : memref<1x64xf32, #tpu.memory_space<vmem>>, vector<1x64xf32>
    %75 = vector.broadcast %74 : vector<1x64xf32> to vector<60x64xf32>
    %76 = arith.addf %73, %75 : vector<60x64xf32>
    %cst_47 = arith.constant 0.000000e+00 : f32
    %77 = vector.broadcast %cst_47 : f32 to vector<60x64xf32>
    %78 = arith.maximumf %76, %77 : vector<60x64xf32>
    %c0_48 = arith.constant 0 : index
    %c0_49 = arith.constant 0 : index
    %79 = vector.load %arg18[%c0_48, %c0_49] : memref<8x60xbf16, #tpu.memory_space<vmem>>, vector<8x60xbf16>
    %80 = arith.truncf %78 : vector<60x64xf32> to vector<60x64xbf16>
    %cst_50 = arith.constant dense<0.000000e+00> : vector<8x64xf32>
    %81 = tpu.matmul %79, %80, %cst_50 {dimension_numbers = #tpu.dot_dimension_numbers<[1], [0], [0], [1], [0, 0, 1, 1], [], []>} : vector<8x60xbf16>, vector<60x64xbf16>, vector<8x64xf32> -> vector<8x64xf32>
    %c0_51 = arith.constant 0 : index
    %c0_52 = arith.constant 0 : index
    %82 = vector.load %arg19[%c0_51, %c0_52] : memref<64x120xbf16, #tpu.memory_space<vmem>>, vector<64x120xbf16>
    %83 = arith.truncf %81 : vector<8x64xf32> to vector<8x64xbf16>
    %cst_53 = arith.constant dense<0.000000e+00> : vector<8x120xf32>
    %84 = tpu.matmul %83, %82, %cst_53 {dimension_numbers = #tpu.dot_dimension_numbers<[1], [0], [0], [1], [0, 0, 1, 1], [], []>} : vector<8x64xbf16>, vector<64x120xbf16>, vector<8x120xf32> -> vector<8x120xf32>
    %c0_54 = arith.constant 0 : index
    %c0_55 = arith.constant 0 : index
    %85 = vector.load %arg20[%c0_54, %c0_55] : memref<1x120xf32, #tpu.memory_space<vmem>>, vector<1x120xf32>
    %86 = vector.broadcast %85 : vector<1x120xf32> to vector<8x120xf32>
    %87 = arith.addf %84, %86 : vector<8x120xf32>
    %cst_56 = arith.constant 0.000000e+00 : f32
    %88 = vector.broadcast %cst_56 : f32 to vector<8x120xf32>
    %89 = arith.maximumf %87, %88 : vector<8x120xf32>
    %c0_57 = arith.constant 0 : index
    %c0_58 = arith.constant 0 : index
    %90 = vector.load %arg21[%c0_57, %c0_58] : memref<120x84xbf16, #tpu.memory_space<vmem>>, vector<120x84xbf16>
    %91 = arith.truncf %89 : vector<8x120xf32> to vector<8x120xbf16>
    %cst_59 = arith.constant dense<0.000000e+00> : vector<8x84xf32>
    %92 = tpu.matmul %91, %90, %cst_59 {dimension_numbers = #tpu.dot_dimension_numbers<[1], [0], [0], [1], [0, 0, 1, 1], [], []>} : vector<8x120xbf16>, vector<120x84xbf16>, vector<8x84xf32> -> vector<8x84xf32>
    %c0_60 = arith.constant 0 : index
    %c0_61 = arith.constant 0 : index
    %93 = vector.load %arg22[%c0_60, %c0_61] : memref<1x84xf32, #tpu.memory_space<vmem>>, vector<1x84xf32>
    %94 = vector.broadcast %93 : vector<1x84xf32> to vector<8x84xf32>
    %95 = arith.addf %92, %94 : vector<8x84xf32>
    %cst_62 = arith.constant 0.000000e+00 : f32
    %96 = vector.broadcast %cst_62 : f32 to vector<8x84xf32>
    %97 = arith.maximumf %95, %96 : vector<8x84xf32>
    %c0_63 = arith.constant 0 : index
    %c0_64 = arith.constant 0 : index
    %98 = vector.load %arg23[%c0_63, %c0_64] : memref<84x128xbf16, #tpu.memory_space<vmem>>, vector<84x128xbf16>
    %99 = arith.truncf %97 : vector<8x84xf32> to vector<8x84xbf16>
    %cst_65 = arith.constant dense<0.000000e+00> : vector<8x128xf32>
    %100 = tpu.matmul %99, %98, %cst_65 {dimension_numbers = #tpu.dot_dimension_numbers<[1], [0], [0], [1], [0, 0, 1, 1], [], []>} : vector<8x84xbf16>, vector<84x128xbf16>, vector<8x128xf32> -> vector<8x128xf32>
    %c0_66 = arith.constant 0 : index
    %c0_67 = arith.constant 0 : index
    %101 = vector.load %arg24[%c0_66, %c0_67] : memref<1x128xf32, #tpu.memory_space<vmem>>, vector<1x128xf32>
    %102 = vector.broadcast %101 : vector<1x128xf32> to vector<8x128xf32>
    %103 = arith.addf %100, %102 : vector<8x128xf32>
    %c0_68 = arith.constant 0 : index
    %c0_69 = arith.constant 0 : index
    %104 = vector.load %arg25[%c0_68, %c0_69] : memref<8x128xf32, #tpu.memory_space<vmem>>, vector<8x128xf32>
    tpu.vector_store %arg25[%c0_68, %c0_69], %103 {strides = array<i32>} : memref<8x128xf32, #tpu.memory_space<vmem>>, vector<8x128xf32>,
    return
  }
  func.func @transform_0(%arg0: i32) -> (i32, i32) {
    %c0_i32 = arith.constant 0 : i32
    %c0_i32_0 = arith.constant 0 : i32
    return %arg0, %c0_i32 : i32, i32
  }
  func.func @transform_1(%arg0: i32) -> (i32, i32) {
    %c0_i32 = arith.constant 0 : i32
    %c0_i32_0 = arith.constant 0 : i32
    %c0_i32_1 = arith.constant 0 : i32
    return %c0_i32, %c0_i32_0 : i32, i32
  }
  func.func @transform_2(%arg0: i32) -> (i32, i32) {
    %c0_i32 = arith.constant 0 : i32
    %c0_i32_0 = arith.constant 0 : i32
    %c0_i32_1 = arith.constant 0 : i32
    return %c0_i32, %c0_i32_0 : i32, i32
  }
  func.func @transform_3(%arg0: i32) -> (i32, i32) {
    %c0_i32 = arith.constant 0 : i32
    %c0_i32_0 = arith.constant 0 : i32
    %c0_i32_1 = arith.constant 0 : i32
    return %c0_i32, %c0_i32_0 : i32, i32
  }
  func.func @transform_4(%arg0: i32) -> (i32, i32) {
    %c0_i32 = arith.constant 0 : i32
    %c0_i32_0 = arith.constant 0 : i32
    %c0_i32_1 = arith.constant 0 : i32
    return %c0_i32, %c0_i32_0 : i32, i32
  }
  func.func @transform_5(%arg0: i32) -> (i32, i32) {
    %c0_i32 = arith.constant 0 : i32
    %c0_i32_0 = arith.constant 0 : i32
    %c0_i32_1 = arith.constant 0 : i32
    return %c0_i32, %c0_i32_0 : i32, i32
  }
  func.func @transform_6(%arg0: i32) -> (i32, i32) {
    %c0_i32 = arith.constant 0 : i32
    %c0_i32_0 = arith.constant 0 : i32
    %c0_i32_1 = arith.constant 0 : i32
    return %c0_i32, %c0_i32_0 : i32, i32
  }
  func.func @transform_7(%arg0: i32) -> (i32, i32) {
    %c0_i32 = arith.constant 0 : i32
    %c0_i32_0 = arith.constant 0 : i32
    %c0_i32_1 = arith.constant 0 : i32
    return %c0_i32, %c0_i32_0 : i32, i32
  }
  func.func @transform_8(%arg0: i32) -> (i32, i32) {
    %c0_i32 = arith.constant 0 : i32
    %c0_i32_0 = arith.constant 0 : i32
    %c0_i32_1 = arith.constant 0 : i32
    return %c0_i32, %c0_i32_0 : i32, i32
  }
  func.func @transform_9(%arg0: i32) -> (i32, i32) {
    %c0_i32 = arith.constant 0 : i32
    %c0_i32_0 = arith.constant 0 : i32
    %c0_i32_1 = arith.constant 0 : i32
    return %c0_i32, %c0_i32_0 : i32, i32
  }
  func.func @transform_10(%arg0: i32) -> (i32, i32) {
    %c0_i32 = arith.constant 0 : i32
    %c0_i32_0 = arith.constant 0 : i32
    %c0_i32_1 = arith.constant 0 : i32
    return %c0_i32, %c0_i32_0 : i32, i32
  }
  func.func @transform_11(%arg0: i32) -> (i32, i32) {
    %c0_i32 = arith.constant 0 : i32
    %c0_i32_0 = arith.constant 0 : i32
    %c0_i32_1 = arith.constant 0 : i32
    return %c0_i32, %c0_i32_0 : i32, i32
  }
  func.func @transform_12(%arg0: i32) -> (i32, i32) {
    %c0_i32 = arith.constant 0 : i32
    %c0_i32_0 = arith.constant 0 : i32
    %c0_i32_1 = arith.constant 0 : i32
    return %c0_i32, %c0_i32_0 : i32, i32
  }
  func.func @transform_13(%arg0: i32) -> (i32, i32) {
    %c0_i32 = arith.constant 0 : i32
    %c0_i32_0 = arith.constant 0 : i32
    %c0_i32_1 = arith.constant 0 : i32
    return %c0_i32, %c0_i32_0 : i32, i32
  }
  func.func @transform_14(%arg0: i32) -> (i32, i32) {
    %c0_i32 = arith.constant 0 : i32
    %c0_i32_0 = arith.constant 0 : i32
    %c0_i32_1 = arith.constant 0 : i32
    return %c0_i32, %c0_i32_0 : i32, i32
  }
  func.func @transform_15(%arg0: i32) -> (i32, i32) {
    %c0_i32 = arith.constant 0 : i32
    %c0_i32_0 = arith.constant 0 : i32
    %c0_i32_1 = arith.constant 0 : i32
    return %c0_i32, %c0_i32_0 : i32, i32
  }
  func.func @transform_16(%arg0: i32) -> (i32, i32) {
    %c0_i32 = arith.constant 0 : i32
    %c0_i32_0 = arith.constant 0 : i32
    %c0_i32_1 = arith.constant 0 : i32
    return %c0_i32, %c0_i32_0 : i32, i32
  }
  func.func @transform_17(%arg0: i32) -> (i32, i32) {
    %c0_i32 = arith.constant 0 : i32
    %c0_i32_0 = arith.constant 0 : i32
    %c0_i32_1 = arith.constant 0 : i32
    return %c0_i32, %c0_i32_0 : i32, i32
  }
  func.func @transform_18(%arg0: i32) -> (i32, i32) {
    %c0_i32 = arith.constant 0 : i32
    %c0_i32_0 = arith.constant 0 : i32
    %c0_i32_1 = arith.constant 0 : i32
    return %c0_i32, %c0_i32_0 : i32, i32
  }
  func.func @transform_19(%arg0: i32) -> (i32, i32) {
    %c0_i32 = arith.constant 0 : i32
    %c0_i32_0 = arith.constant 0 : i32
    %c0_i32_1 = arith.constant 0 : i32
    return %c0_i32, %c0_i32_0 : i32, i32
  }
  func.func @transform_20(%arg0: i32) -> (i32, i32) {
    %c0_i32 = arith.constant 0 : i32
    %c0_i32_0 = arith.constant 0 : i32
    %c0_i32_1 = arith.constant 0 : i32
    return %c0_i32, %c0_i32_0 : i32, i32
  }
  func.func @transform_21(%arg0: i32) -> (i32, i32) {
    %c0_i32 = arith.constant 0 : i32
    %c0_i32_0 = arith.constant 0 : i32
    %c0_i32_1 = arith.constant 0 : i32
    return %c0_i32, %c0_i32_0 : i32, i32
  }
  func.func @transform_22(%arg0: i32) -> (i32, i32) {
    %c0_i32 = arith.constant 0 : i32
    %c0_i32_0 = arith.constant 0 : i32
    %c0_i32_1 = arith.constant 0 : i32
    return %c0_i32, %c0_i32_0 : i32, i32
  }
  func.func @transform_23(%arg0: i32) -> (i32, i32) {
    %c0_i32 = arith.constant 0 : i32
    %c0_i32_0 = arith.constant 0 : i32
    %c0_i32_1 = arith.constant 0 : i32
    return %c0_i32, %c0_i32_0 : i32, i32
  }
  func.func @transform_24(%arg0: i32) -> (i32, i32) {
    %c0_i32 = arith.constant 0 : i32
    %c0_i32_0 = arith.constant 0 : i32
    return %arg0, %c0_i32 : i32, i32
  }
}

</mosaic_0001>

<llo_original>
// kernel: second_cnn_forward.1
$region0: #{second_cnn_forward.1}
  #allocation0 [shape = 'u32[]', space=smem, size = 0x4, offset = 0x4, fixed_abs, tag = 'smem constant byte address 0x4 - core index']
  #allocation1 [shape = 'u32[144,128]{1,0:T(1,128)}', space=vmem, size = 0x12000, scoped, tag = 'internal scratch']
  %s0 = inlined_call_operand.vmem [shape: f32[512,96], index: 0, kind: input, shape index: {}]
  %s1 = inlined_call_operand.vmem [shape: bf16[480,168], index: 1, kind: input, shape index: {}]
  %s2 = inlined_call_operand.vmem [shape: f32[1,168], index: 2, kind: input, shape index: {}]
  %s3 = inlined_call_operand.vmem [shape: bf16[420,160], index: 3, kind: input, shape index: {}]
  %s4 = inlined_call_operand.vmem [shape: f32[1,160], index: 4, kind: input, shape index: {}]
  %s5 = inlined_call_operand.vmem [shape: bf16[240,96], index: 5, kind: input, shape index: {}]
  %s6 = inlined_call_operand.vmem [shape: f32[1,96], index: 6, kind: input, shape index: {}]
  %s7 = inlined_call_operand.vmem [shape: bf16[288,64], index: 7, kind: input, shape index: {}]
  %s8 = inlined_call_operand.vmem [shape: f32[1,64], index: 8, kind: input, shape index: {}]
  %s9 = inlined_call_operand.vmem [shape: bf16[128,252], index: 9, kind: input, shape index: {}]
  %s10 = inlined_call_operand.vmem [shape: bf16[128,252], index: 10, kind: input, shape index: {}]
  %s11 = inlined_call_operand.vmem [shape: bf16[168,84], index: 11, kind: input, shape index: {}]
  %s12 = inlined_call_operand.vmem [shape: bf16[168,84], index: 12, kind: input, shape index: {}]
  %s13 = inlined_call_operand.vmem [shape: bf16[64,124], index: 13, kind: input, shape index: {}]
  %s14 = inlined_call_operand.vmem [shape: bf16[64,124], index: 14, kind: input, shape index: {}]
  %s15 = inlined_call_operand.vmem [shape: bf16[160,80], index: 15, kind: input, shape index: {}]
  %s16 = inlined_call_operand.vmem [shape: bf16[160,80], index: 16, kind: input, shape index: {}]
  %s17 = inlined_call_operand.vmem [shape: bf16[8,60], index: 17, kind: input, shape index: {}]
  %s18 = inlined_call_operand.vmem [shape: bf16[64,120], index: 18, kind: input, shape index: {}]
  %s19 = inlined_call_operand.vmem [shape: f32[1,120], index: 19, kind: input, shape index: {}]
  %s20 = inlined_call_operand.vmem [shape: bf16[120,84], index: 20, kind: input, shape index: {}]
  %s21 = inlined_call_operand.vmem [shape: f32[1,84], index: 21, kind: input, shape index: {}]
  %s22 = inlined_call_operand.vmem [shape: bf16[84,128], index: 22, kind: input, shape index: {}]
  %s23 = inlined_call_operand.vmem [shape: f32[1,128], index: 23, kind: input, shape index: {}]
  %s24 = inlined_call_operand.hbm [shape: f32[16,128], index: 24, kind: output, shape index: {}]
  %s25 = sld [smem:[#allocation0]]
  $region129: #{second_cnn_forward.1} parent=0
    _
  %s27 = ssub.s32 1, %s25
  %s28 = scalar_select 0, %s27, %s25
  $region1: #{second_cnn_forward.1} parent=0
    #allocation2 [shape = 'u8[8192]{0}', space=vmem, size = 0x2000, scoped, tag = 'output window, operand 0']
    #allocation3 [shape = 's32[2]{0}', space=sflag, size = 0x8, scoped, tag = 'scoped memory for second_cnn_forward.1']
    %29 = vsyncpa [#allocation3], 0
    %s30 = scalar_lea.sflag [#allocation3], 1
    %31 = vsyncpa %s30, 0
    loop: start=0, step=1, limit=4
    $region2: #{second_cnn_forward.1} parent=1 // loop_pre_header
      _
    $region3: #{second_cnn_forward.1} parent=1 // loop_header
      %s33 = sphi 0, %s37
      %p34 = scmp.ge.s32.totalorder %s33, 4
      %s43 = sphi 0, %s45
      %s46 = sphi 0, %s43
      %s47 = sphi 0, %s46
      %s63 = sphi 0, %s47
      %s67 = sphi 0, %s67
      %s69 = sphi 0, %s67
      %s70 = sphi 0, %s69
      %s84 = sphi 0, %s70
      %s88 = sphi 0, %s88
      %s90 = sphi 0, %s88
      %s91 = sphi 0, %s90
      %s105 = sphi 0, %s91
      %s109 = sphi 0, %s109
      %s111 = sphi 0, %s109
      %s112 = sphi 0, %s111
      %s126 = sphi 0, %s112
      %s130 = sphi 0, %s130
      %s132 = sphi 0, %s130
      %s133 = sphi 0, %s132
      %s147 = sphi 0, %s133
      %s151 = sphi 0, %s151
      %s153 = sphi 0, %s151
      %s154 = sphi 0, %s153
      %s168 = sphi 0, %s154
      %s172 = sphi 0, %s172
      %s174 = sphi 0, %s172
      %s175 = sphi 0, %s174
      %s189 = sphi 0, %s175
      %s193 = sphi 0, %s193
      %s195 = sphi 0, %s193
      %s196 = sphi 0, %s195
      %s210 = sphi 0, %s196
      %s214 = sphi 0, %s214
      %s216 = sphi 0, %s214
      %s217 = sphi 0, %s216
      %s231 = sphi 0, %s217
      %s235 = sphi 0, %s235
      %s237 = sphi 0, %s235
      %s238 = sphi 0, %s237
      %s252 = sphi 0, %s238
      %s256 = sphi 0, %s256
      %s258 = sphi 0, %s256
      %s259 = sphi 0, %s258
      %s273 = sphi 0, %s259
      %s277 = sphi 0, %s277
      %s279 = sphi 0, %s277
      %s280 = sphi 0, %s279
      %s294 = sphi 0, %s280
      %s298 = sphi 0, %s298
      %s300 = sphi 0, %s298
      %s301 = sphi 0, %s300
      %s315 = sphi 0, %s301
      %s319 = sphi 0, %s319
      %s321 = sphi 0, %s319
      %s322 = sphi 0, %s321
      %s336 = sphi 0, %s322
      %s340 = sphi 0, %s340
      %s342 = sphi 0, %s340
      %s343 = sphi 0, %s342
      %s357 = sphi 0, %s343
      %s361 = sphi 0, %s361
      %s363 = sphi 0, %s361
      %s364 = sphi 0, %s363
      %s378 = sphi 0, %s364
      %s382 = sphi 0, %s382
      %s384 = sphi 0, %s382
      %s385 = sphi 0, %s384
      %s399 = sphi 0, %s385
      %s403 = sphi 0, %s403
      %s405 = sphi 0, %s403
      %s406 = sphi 0, %s405
      %s420 = sphi 0, %s406
      %s424 = sphi 0, %s424
      %s426 = sphi 0, %s424
      %s427 = sphi 0, %s426
      %s441 = sphi 0, %s427
      %s445 = sphi 0, %s445
      %s447 = sphi 0, %s445
      %s448 = sphi 0, %s447
      %s462 = sphi 0, %s448
      %s466 = sphi 0, %s466
      %s468 = sphi 0, %s466
      %s469 = sphi 0, %s468
      %s483 = sphi 0, %s469
      %s487 = sphi 0, %s487
      %s489 = sphi 0, %s487
      %s490 = sphi 0, %s489
      %s504 = sphi 0, %s490
      %s508 = sphi 0, %s508
      %s510 = sphi 0, %s508
      %s511 = sphi 0, %s510
      %s525 = sphi 0, %s511
      %s529 = sphi 0, %s529
      %s531 = sphi 0, %s529
      %s532 = sphi 0, %s531
      %s546 = sphi 0, %s532
      %s552 = sphi 0, %s554
      %s555 = sphi 0, %s552
      %s556 = sphi 0, %s555
      %s572 = sphi 0, %s556
    $region4: #{second_cnn_forward.1} parent=1 // loop_header_branch
      %36 = sbr.rel (%p34) target = $region8
    $region5: #{second_cnn_forward.1} parent=1 // loop_body
      %s38 = ssub.s32 %s33, 1
      %s39 = ssub.s32 %s33, 2
      %s40 = sadd.s32 %s33, 1
      %s41 = ssub.s32 %s33, %s40
      %p42 = scmp.eq.s32.totalorder %s41, 0
      %s44 = sadd.s32 %s43, 1
      %s45 = scalar_select %p42, %s43, %s44
      %p48 = pneg %p42
      %p49 = scmp.eq.s32.totalorder %s33, 1
      %p50 = por %p48, %p49
      %p51 = scmp.ne.s32.totalorder %s43, %s46
      %p52 = scmp.eq.s32.totalorder %s33, 0
      %p53 = por %p51, %p52
      %p54 = scmp.ne.s32.totalorder %s43, %s46
      %p55 = scmp.eq.s32.totalorder %s38, 1
      %p56 = por %p54, %p55
      %p57 = scmp.ne.s32.totalorder %s46, %s47
      %p58 = scmp.eq.s32.totalorder %s38, 0
      %p59 = por %p57, %p58
      %p60 = scmp.ne.s32.totalorder %s46, %s47
      %p61 = scmp.eq.s32.totalorder %s39, 1
      %p62 = por %p60, %p61
      %p64 = scmp.ne.s32.totalorder %s47, %s63
      %p65 = scmp.eq.s32.totalorder %s39, 0
      %p66 = por %p64, %p65
      %s68 = sadd.s32 %s67, 1
      %p71 = scmp.eq.s32.totalorder %s33, 1
      %p72 = scmp.ne.s32.totalorder %s67, %s69
      %p73 = scmp.eq.s32.totalorder %s33, 0
      %p74 = por %p72, %p73
      %p75 = scmp.ne.s32.totalorder %s67, %s69
      %p76 = scmp.eq.s32.totalorder %s38, 1
      %p77 = por %p75, %p76
      %p78 = scmp.ne.s32.totalorder %s69, %s70
      %p79 = scmp.eq.s32.totalorder %s38, 0
      %p80 = por %p78, %p79
      %p81 = scmp.ne.s32.totalorder %s69, %s70
      %p82 = scmp.eq.s32.totalorder %s39, 1
      %p83 = por %p81, %p82
      %p85 = scmp.ne.s32.totalorder %s70, %s84
      %p86 = scmp.eq.s32.totalorder %s39, 0
      %p87 = por %p85, %p86
      %s89 = sadd.s32 %s88, 1
      %p92 = scmp.eq.s32.totalorder %s33, 1
      %p93 = scmp.ne.s32.totalorder %s88, %s90
      %p94 = scmp.eq.s32.totalorder %s33, 0
      %p95 = por %p93, %p94
      %p96 = scmp.ne.s32.totalorder %s88, %s90
      %p97 = scmp.eq.s32.totalorder %s38, 1
      %p98 = por %p96, %p97
      %p99 = scmp.ne.s32.totalorder %s90, %s91
      %p100 = scmp.eq.s32.totalorder %s38, 0
      %p101 = por %p99, %p100
      %p102 = scmp.ne.s32.totalorder %s90, %s91
      %p103 = scmp.eq.s32.totalorder %s39, 1
      %p104 = por %p102, %p103
      %p106 = scmp.ne.s32.totalorder %s91, %s105
      %p107 = scmp.eq.s32.totalorder %s39, 0
      %p108 = por %p106, %p107
      %s110 = sadd.s32 %s109, 1
      %p113 = scmp.eq.s32.totalorder %s33, 1
      %p114 = scmp.ne.s32.totalorder %s109, %s111
      %p115 = scmp.eq.s32.totalorder %s33, 0
      %p116 = por %p114, %p115
      %p117 = scmp.ne.s32.totalorder %s109, %s111
      %p118 = scmp.eq.s32.totalorder %s38, 1
      %p119 = por %p117, %p118
      %p120 = scmp.ne.s32.totalorder %s111, %s112
      %p121 = scmp.eq.s32.totalorder %s38, 0
      %p122 = por %p120, %p121
      %p123 = scmp.ne.s32.totalorder %s111, %s112
      %p124 = scmp.eq.s32.totalorder %s39, 1
      %p125 = por %p123, %p124
      %p127 = scmp.ne.s32.totalorder %s112, %s126
      %p128 = scmp.eq.s32.totalorder %s39, 0
      %p129 = por %p127, %p128
      %s131 = sadd.s32 %s130, 1
      %p134 = scmp.eq.s32.totalorder %s33, 1
      %p135 = scmp.ne.s32.totalorder %s130, %s132
      %p136 = scmp.eq.s32.totalorder %s33, 0
      %p137 = por %p135, %p136
      %p138 = scmp.ne.s32.totalorder %s130, %s132
      %p139 = scmp.eq.s32.totalorder %s38, 1
      %p140 = por %p138, %p139
      %p141 = scmp.ne.s32.totalorder %s132, %s133
      %p142 = scmp.eq.s32.totalorder %s38, 0
      %p143 = por %p141, %p142
      %p144 = scmp.ne.s32.totalorder %s132, %s133
      %p145 = scmp.eq.s32.totalorder %s39, 1
      %p146 = por %p144, %p145
      %p148 = scmp.ne.s32.totalorder %s133, %s147
      %p149 = scmp.eq.s32.totalorder %s39, 0
      %p150 = por %p148, %p149
      %s152 = sadd.s32 %s151, 1
      %p155 = scmp.eq.s32.totalorder %s33, 1
      %p156 = scmp.ne.s32.totalorder %s151, %s153
      %p157 = scmp.eq.s32.totalorder %s33, 0
      %p158 = por %p156, %p157
      %p159 = scmp.ne.s32.totalorder %s151, %s153
      %p160 = scmp.eq.s32.totalorder %s38, 1
      %p161 = por %p159, %p160
      %p162 = scmp.ne.s32.totalorder %s153, %s154
      %p163 = scmp.eq.s32.totalorder %s38, 0
      %p164 = por %p162, %p163
      %p165 = scmp.ne.s32.totalorder %s153, %s154
      %p166 = scmp.eq.s32.totalorder %s39, 1
      %p167 = por %p165, %p166
      %p169 = scmp.ne.s32.totalorder %s154, %s168
      %p170 = scmp.eq.s32.totalorder %s39, 0
      %p171 = por %p169, %p170
      %s173 = sadd.s32 %s172, 1
      %p176 = scmp.eq.s32.totalorder %s33, 1
      %p177 = scmp.ne.s32.totalorder %s172, %s174
      %p178 = scmp.eq.s32.totalorder %s33, 0
      %p179 = por %p177, %p178
      %p180 = scmp.ne.s32.totalorder %s172, %s174
      %p181 = scmp.eq.s32.totalorder %s38, 1
      %p182 = por %p180, %p181
      %p183 = scmp.ne.s32.totalorder %s174, %s175
      %p184 = scmp.eq.s32.totalorder %s38, 0
      %p185 = por %p183, %p184
      %p186 = scmp.ne.s32.totalorder %s174, %s175
      %p187 = scmp.eq.s32.totalorder %s39, 1
      %p188 = por %p186, %p187
      %p190 = scmp.ne.s32.totalorder %s175, %s189
      %p191 = scmp.eq.s32.totalorder %s39, 0
      %p192 = por %p190, %p191
      %s194 = sadd.s32 %s193, 1
      %p197 = scmp.eq.s32.totalorder %s33, 1
      %p198 = scmp.ne.s32.totalorder %s193, %s195
      %p199 = scmp.eq.s32.totalorder %s33, 0
      %p200 = por %p198, %p199
      %p201 = scmp.ne.s32.totalorder %s193, %s195
      %p202 = scmp.eq.s32.totalorder %s38, 1
      %p203 = por %p201, %p202
      %p204 = scmp.ne.s32.totalorder %s195, %s196
      %p205 = scmp.eq.s32.totalorder %s38, 0
      %p206 = por %p204, %p205
      %p207 = scmp.ne.s32.totalorder %s195, %s196
      %p208 = scmp.eq.s32.totalorder %s39, 1
      %p209 = por %p207, %p208
      %p211 = scmp.ne.s32.totalorder %s196, %s210
      %p212 = scmp.eq.s32.totalorder %s39, 0
      %p213 = por %p211, %p212
      %s215 = sadd.s32 %s214, 1
      %p218 = scmp.eq.s32.totalorder %s33, 1
      %p219 = scmp.ne.s32.totalorder %s214, %s216
      %p220 = scmp.eq.s32.totalorder %s33, 0
      %p221 = por %p219, %p220
      %p222 = scmp.ne.s32.totalorder %s214, %s216
      %p223 = scmp.eq.s32.totalorder %s38, 1
      %p224 = por %p222, %p223
      %p225 = scmp.ne.s32.totalorder %s216, %s217
      %p226 = scmp.eq.s32.totalorder %s38, 0
      %p227 = por %p225, %p226
      %p228 = scmp.ne.s32.totalorder %s216, %s217
      %p229 = scmp.eq.s32.totalorder %s39, 1
      %p230 = por %p228, %p229
      %p232 = scmp.ne.s32.totalorder %s217, %s231
      %p233 = scmp.eq.s32.totalorder %s39, 0
      %p234 = por %p232, %p233
      %s236 = sadd.s32 %s235, 1
      %p239 = scmp.eq.s32.totalorder %s33, 1
      %p240 = scmp.ne.s32.totalorder %s235, %s237
      %p241 = scmp.eq.s32.totalorder %s33, 0
      %p242 = por %p240, %p241
      %p243 = scmp.ne.s32.totalorder %s235, %s237
      %p244 = scmp.eq.s32.totalorder %s38, 1
      %p245 = por %p243, %p244
      %p246 = scmp.ne.s32.totalorder %s237, %s238
      %p247 = scmp.eq.s32.totalorder %s38, 0
      %p248 = por %p246, %p247
      %p249 = scmp.ne.s32.totalorder %s237, %s238
      %p250 = scmp.eq.s32.totalorder %s39, 1
      %p251 = por %p249, %p250
      %p253 = scmp.ne.s32.totalorder %s238, %s252
      %p254 = scmp.eq.s32.totalorder %s39, 0
      %p255 = por %p253, %p254
      %s257 = sadd.s32 %s256, 1
      %p260 = scmp.eq.s32.totalorder %s33, 1
      %p261 = scmp.ne.s32.totalorder %s256, %s258
      %p262 = scmp.eq.s32.totalorder %s33, 0
      %p263 = por %p261, %p262
      %p264 = scmp.ne.s32.totalorder %s256, %s258
      %p265 = scmp.eq.s32.totalorder %s38, 1
      %p266 = por %p264, %p265
      %p267 = scmp.ne.s32.totalorder %s258, %s259
      %p268 = scmp.eq.s32.totalorder %s38, 0
      %p269 = por %p267, %p268
      %p270 = scmp.ne.s32.totalorder %s258, %s259
      %p271 = scmp.eq.s32.totalorder %s39, 1
      %p272 = por %p270, %p271
      %p274 = scmp.ne.s32.totalorder %s259, %s273
      %p275 = scmp.eq.s32.totalorder %s39, 0
      %p276 = por %p274, %p275
      %s278 = sadd.s32 %s277, 1
      %p281 = scmp.eq.s32.totalorder %s33, 1
      %p282 = scmp.ne.s32.totalorder %s277, %s279
      %p283 = scmp.eq.s32.totalorder %s33, 0
      %p284 = por %p282, %p283
      %p285 = scmp.ne.s32.totalorder %s277, %s279
      %p286 = scmp.eq.s32.totalorder %s38, 1
      %p287 = por %p285, %p286
      %p288 = scmp.ne.s32.totalorder %s279, %s280
      %p289 = scmp.eq.s32.totalorder %s38, 0
      %p290 = por %p288, %p289
      %p291 = scmp.ne.s32.totalorder %s279, %s280
      %p292 = scmp.eq.s32.totalorder %s39, 1
      %p293 = por %p291, %p292
      %p295 = scmp.ne.s32.totalorder %s280, %s294
      %p296 = scmp.eq.s32.totalorder %s39, 0
      %p297 = por %p295, %p296
      %s299 = sadd.s32 %s298, 1
      %p302 = scmp.eq.s32.totalorder %s33, 1
      %p303 = scmp.ne.s32.totalorder %s298, %s300
      %p304 = scmp.eq.s32.totalorder %s33, 0
      %p305 = por %p303, %p304
      %p306 = scmp.ne.s32.totalorder %s298, %s300
      %p307 = scmp.eq.s32.totalorder %s38, 1
      %p308 = por %p306, %p307
      %p309 = scmp.ne.s32.totalorder %s300, %s301
      %p310 = scmp.eq.s32.totalorder %s38, 0
      %p311 = por %p309, %p310
      %p312 = scmp.ne.s32.totalorder %s300, %s301
      %p313 = scmp.eq.s32.totalorder %s39, 1
      %p314 = por %p312, %p313
      %p316 = scmp.ne.s32.totalorder %s301, %s315
      %p317 = scmp.eq.s32.totalorder %s39, 0
      %p318 = por %p316, %p317
      %s320 = sadd.s32 %s319, 1
      %p323 = scmp.eq.s32.totalorder %s33, 1
      %p324 = scmp.ne.s32.totalorder %s319, %s321
      %p325 = scmp.eq.s32.totalorder %s33, 0
      %p326 = por %p324, %p325
      %p327 = scmp.ne.s32.totalorder %s319, %s321
      %p328 = scmp.eq.s32.totalorder %s38, 1
      %p329 = por %p327, %p328
      %p330 = scmp.ne.s32.totalorder %s321, %s322
      %p331 = scmp.eq.s32.totalorder %s38, 0
      %p332 = por %p330, %p331
      %p333 = scmp.ne.s32.totalorder %s321, %s322
      %p334 = scmp.eq.s32.totalorder %s39, 1
      %p335 = por %p333, %p334
      %p337 = scmp.ne.s32.totalorder %s322, %s336
      %p338 = scmp.eq.s32.totalorder %s39, 0
      %p339 = por %p337, %p338
      %s341 = sadd.s32 %s340, 1
      %p344 = scmp.eq.s32.totalorder %s33, 1
      %p345 = scmp.ne.s32.totalorder %s340, %s342
      %p346 = scmp.eq.s32.totalorder %s33, 0
      %p347 = por %p345, %p346
      %p348 = scmp.ne.s32.totalorder %s340, %s342
      %p349 = scmp.eq.s32.totalorder %s38, 1
      %p350 = por %p348, %p349
      %p351 = scmp.ne.s32.totalorder %s342, %s343
      %p352 = scmp.eq.s32.totalorder %s38, 0
      %p353 = por %p351, %p352
      %p354 = scmp.ne.s32.totalorder %s342, %s343
      %p355 = scmp.eq.s32.totalorder %s39, 1
      %p356 = por %p354, %p355
      %p358 = scmp.ne.s32.totalorder %s343, %s357
      %p359 = scmp.eq.s32.totalorder %s39, 0
      %p360 = por %p358, %p359
      %s362 = sadd.s32 %s361, 1
      %p365 = scmp.eq.s32.totalorder %s33, 1
      %p366 = scmp.ne.s32.totalorder %s361, %s363
      %p367 = scmp.eq.s32.totalorder %s33, 0
      %p368 = por %p366, %p367
      %p369 = scmp.ne.s32.totalorder %s361, %s363
      %p370 = scmp.eq.s32.totalorder %s38, 1
      %p371 = por %p369, %p370
      %p372 = scmp.ne.s32.totalorder %s363, %s364
      %p373 = scmp.eq.s32.totalorder %s38, 0
      %p374 = por %p372, %p373
      %p375 = scmp.ne.s32.totalorder %s363, %s364
      %p376 = scmp.eq.s32.totalorder %s39, 1
      %p377 = por %p375, %p376
      %p379 = scmp.ne.s32.totalorder %s364, %s378
      %p380 = scmp.eq.s32.totalorder %s39, 0
      %p381 = por %p379, %p380
      %s383 = sadd.s32 %s382, 1
      %p386 = scmp.eq.s32.totalorder %s33, 1
      %p387 = scmp.ne.s32.totalorder %s382, %s384
      %p388 = scmp.eq.s32.totalorder %s33, 0
      %p389 = por %p387, %p388
      %p390 = scmp.ne.s32.totalorder %s382, %s384
      %p391 = scmp.eq.s32.totalorder %s38, 1
      %p392 = por %p390, %p391
      %p393 = scmp.ne.s32.totalorder %s384, %s385
      %p394 = scmp.eq.s32.totalorder %s38, 0
      %p395 = por %p393, %p394
      %p396 = scmp.ne.s32.totalorder %s384, %s385
      %p397 = scmp.eq.s32.totalorder %s39, 1
      %p398 = por %p396, %p397
      %p400 = scmp.ne.s32.totalorder %s385, %s399
      %p401 = scmp.eq.s32.totalorder %s39, 0
      %p402 = por %p400, %p401
      %s404 = sadd.s32 %s403, 1
      %p407 = scmp.eq.s32.totalorder %s33, 1
      %p408 = scmp.ne.s32.totalorder %s403, %s405
      %p409 = scmp.eq.s32.totalorder %s33, 0
      %p410 = por %p408, %p409
      %p411 = scmp.ne.s32.totalorder %s403, %s405
      %p412 = scmp.eq.s32.totalorder %s38, 1
      %p413 = por %p411, %p412
      %p414 = scmp.ne.s32.totalorder %s405, %s406
      %p415 = scmp.eq.s32.totalorder %s38, 0
      %p416 = por %p414, %p415
      %p417 = scmp.ne.s32.totalorder %s405, %s406
      %p418 = scmp.eq.s32.totalorder %s39, 1
      %p419 = por %p417, %p418
      %p421 = scmp.ne.s32.totalorder %s406, %s420
      %p422 = scmp.eq.s32.totalorder %s39, 0
      %p423 = por %p421, %p422
      %s425 = sadd.s32 %s424, 1
      %p428 = scmp.eq.s32.totalorder %s33, 1
      %p429 = scmp.ne.s32.totalorder %s424, %s426
      %p430 = scmp.eq.s32.totalorder %s33, 0
      %p431 = por %p429, %p430
      %p432 = scmp.ne.s32.totalorder %s424, %s426
      %p433 = scmp.eq.s32.totalorder %s38, 1
      %p434 = por %p432, %p433
      %p435 = scmp.ne.s32.totalorder %s426, %s427
      %p436 = scmp.eq.s32.totalorder %s38, 0
      %p437 = por %p435, %p436
      %p438 = scmp.ne.s32.totalorder %s426, %s427
      %p439 = scmp.eq.s32.totalorder %s39, 1
      %p440 = por %p438, %p439
      %p442 = scmp.ne.s32.totalorder %s427, %s441
      %p443 = scmp.eq.s32.totalorder %s39, 0
      %p444 = por %p442, %p443
      %s446 = sadd.s32 %s445, 1
      %p449 = scmp.eq.s32.totalorder %s33, 1
      %p450 = scmp.ne.s32.totalorder %s445, %s447
      %p451 = scmp.eq.s32.totalorder %s33, 0
      %p452 = por %p450, %p451
      %p453 = scmp.ne.s32.totalorder %s445, %s447
      %p454 = scmp.eq.s32.totalorder %s38, 1
      %p455 = por %p453, %p454
      %p456 = scmp.ne.s32.totalorder %s447, %s448
      %p457 = scmp.eq.s32.totalorder %s38, 0
      %p458 = por %p456, %p457
      %p459 = scmp.ne.s32.totalorder %s447, %s448
      %p460 = scmp.eq.s32.totalorder %s39, 1
      %p461 = por %p459, %p460
      %p463 = scmp.ne.s32.totalorder %s448, %s462
      %p464 = scmp.eq.s32.totalorder %s39, 0
      %p465 = por %p463, %p464
      %s467 = sadd.s32 %s466, 1
      %p470 = scmp.eq.s32.totalorder %s33, 1
      %p471 = scmp.ne.s32.totalorder %s466, %s468
      %p472 = scmp.eq.s32.totalorder %s33, 0
      %p473 = por %p471, %p472
      %p474 = scmp.ne.s32.totalorder %s466, %s468
      %p475 = scmp.eq.s32.totalorder %s38, 1
      %p476 = por %p474, %p475
      %p477 = scmp.ne.s32.totalorder %s468, %s469
      %p478 = scmp.eq.s32.totalorder %s38, 0
      %p479 = por %p477, %p478
      %p480 = scmp.ne.s32.totalorder %s468, %s469
      %p481 = scmp.eq.s32.totalorder %s39, 1
      %p482 = por %p480, %p481
      %p484 = scmp.ne.s32.totalorder %s469, %s483
      %p485 = scmp.eq.s32.totalorder %s39, 0
      %p486 = por %p484, %p485
      %s488 = sadd.s32 %s487, 1
      %p491 = scmp.eq.s32.totalorder %s33, 1
      %p492 = scmp.ne.s32.totalorder %s487, %s489
      %p493 = scmp.eq.s32.totalorder %s33, 0
      %p494 = por %p492, %p493
      %p495 = scmp.ne.s32.totalorder %s487, %s489
      %p496 = scmp.eq.s32.totalorder %s38, 1
      %p497 = por %p495, %p496
      %p498 = scmp.ne.s32.totalorder %s489, %s490
      %p499 = scmp.eq.s32.totalorder %s38, 0
      %p500 = por %p498, %p499
      %p501 = scmp.ne.s32.totalorder %s489, %s490
      %p502 = scmp.eq.s32.totalorder %s39, 1
      %p503 = por %p501, %p502
      %p505 = scmp.ne.s32.totalorder %s490, %s504
      %p506 = scmp.eq.s32.totalorder %s39, 0
      %p507 = por %p505, %p506
      %s509 = sadd.s32 %s508, 1
      %p512 = scmp.eq.s32.totalorder %s33, 1
      %p513 = scmp.ne.s32.totalorder %s508, %s510
      %p514 = scmp.eq.s32.totalorder %s33, 0
      %p515 = por %p513, %p514
      %p516 = scmp.ne.s32.totalorder %s508, %s510
      %p517 = scmp.eq.s32.totalorder %s38, 1
      %p518 = por %p516, %p517
      %p519 = scmp.ne.s32.totalorder %s510, %s511
      %p520 = scmp.eq.s32.totalorder %s38, 0
      %p521 = por %p519, %p520
      %p522 = scmp.ne.s32.totalorder %s510, %s511
      %p523 = scmp.eq.s32.totalorder %s39, 1
      %p524 = por %p522, %p523
      %p526 = scmp.ne.s32.totalorder %s511, %s525
      %p527 = scmp.eq.s32.totalorder %s39, 0
      %p528 = por %p526, %p527
      %s530 = sadd.s32 %s529, 1
      %p533 = scmp.eq.s32.totalorder %s33, 1
      %p534 = scmp.ne.s32.totalorder %s529, %s531
      %p535 = scmp.eq.s32.totalorder %s33, 0
      %p536 = por %p534, %p535
      %p537 = scmp.ne.s32.totalorder %s529, %s531
      %p538 = scmp.eq.s32.totalorder %s38, 1
      %p539 = por %p537, %p538
      %p540 = scmp.ne.s32.totalorder %s531, %s532
      %p541 = scmp.eq.s32.totalorder %s38, 0
      %p542 = por %p540, %p541
      %p543 = scmp.ne.s32.totalorder %s531, %s532
      %p544 = scmp.eq.s32.totalorder %s39, 1
      %p545 = por %p543, %p544
      %p547 = scmp.ne.s32.totalorder %s532, %s546
      %p548 = scmp.eq.s32.totalorder %s39, 0
      %p549 = por %p547, %p548
      %s550 = ssub.s32 %s33, %s40
      %p551 = scmp.eq.s32.totalorder %s550, 0
      %s553 = sadd.s32 %s552, 1
      %s554 = scalar_select %p551, %s552, %s553
      %p557 = pneg %p551
      %p558 = scmp.eq.s32.totalorder %s33, 1
      %p559 = por %p557, %p558
      %p560 = scmp.ne.s32.totalorder %s552, %s555
      %p561 = scmp.eq.s32.totalorder %s33, 0
      %p562 = por %p560, %p561
      %p563 = scmp.ne.s32.totalorder %s552, %s555
      %p564 = scmp.eq.s32.totalorder %s38, 1
      %p565 = por %p563, %p564
      %p566 = scmp.ne.s32.totalorder %s555, %s556
      %p567 = scmp.eq.s32.totalorder %s38, 0
      %p568 = por %p566, %p567
      %p569 = scmp.ne.s32.totalorder %s555, %s556
      %p570 = scmp.eq.s32.totalorder %s39, 1
      %p571 = por %p569, %p570
      %p573 = scmp.ne.s32.totalorder %s556, %s572
      %p574 = scmp.eq.s32.totalorder %s39, 0
      %p575 = por %p573, %p574
      %p576 = scmp.le.s32.totalorder 1, %s33
      %p577 = scmp.lt.s32.totalorder %s33, 3
      %p578 = pnand %p576, %p577
      %p579 = pneg %p578
      // Predicated region
      $region9: #{second_cnn_forward.1} parent=5 // pred_check
        _
      $region10: #{second_cnn_forward.1} parent=5 // pred_check_branch
        %581 = sbr.rel (%p578) target = $region12
      $region11: #{second_cnn_forward.1} parent=5 // pred_region
        %s582 = ssub.s32 %s33, 1
        // Predicated region
        $region13: #{second_cnn_forward.1} parent=11 // pred_check
          %p583 = pneg %p80
        $region14: #{second_cnn_forward.1} parent=11 // pred_check_branch
          %585 = sbr.rel (%p583) target = $region16
        $region15: #{second_cnn_forward.1} parent=11 // pred_region
          _
        $region16: #{second_cnn_forward.1} parent=11 // pred_fallthru
          _
        // Predicated region
        $region17: #{second_cnn_forward.1} parent=11 // pred_check
          %p586 = pneg %p101
        $region18: #{second_cnn_forward.1} parent=11 // pred_check_branch
          %588 = sbr.rel (%p586) target = $region20
        $region19: #{second_cnn_forward.1} parent=11 // pred_region
          _
        $region20: #{second_cnn_forward.1} parent=11 // pred_fallthru
          _
        // Predicated region
        $region21: #{second_cnn_forward.1} parent=11 // pred_check
          %p589 = pneg %p122
        $region22: #{second_cnn_forward.1} parent=11 // pred_check_branch
          %591 = sbr.rel (%p589) target = $region24
        $region23: #{second_cnn_forward.1} parent=11 // pred_region
          _
        $region24: #{second_cnn_forward.1} parent=11 // pred_fallthru
          _
        // Predicated region
        $region25: #{second_cnn_forward.1} parent=11 // pred_check
          %p592 = pneg %p143
        $region26: #{second_cnn_forward.1} parent=11 // pred_check_branch
          %594 = sbr.rel (%p592) target = $region28
        $region27: #{second_cnn_forward.1} parent=11 // pred_region
          _
        $region28: #{second_cnn_forward.1} parent=11 // pred_fallthru
          _
        // Predicated region
        $region29: #{second_cnn_forward.1} parent=11 // pred_check
          %p595 = pneg %p164
        $region30: #{second_cnn_forward.1} parent=11 // pred_check_branch
          %597 = sbr.rel (%p595) target = $region32
        $region31: #{second_cnn_forward.1} parent=11 // pred_region
          _
        $region32: #{second_cnn_forward.1} parent=11 // pred_fallthru
          _
        // Predicated region
        $region33: #{second_cnn_forward.1} parent=11 // pred_check
          %p598 = pneg %p185
        $region34: #{second_cnn_forward.1} parent=11 // pred_check_branch
          %600 = sbr.rel (%p598) target = $region36
        $region35: #{second_cnn_forward.1} parent=11 // pred_region
          _
        $region36: #{second_cnn_forward.1} parent=11 // pred_fallthru
          _
        // Predicated region
        $region37: #{second_cnn_forward.1} parent=11 // pred_check
          %p601 = pneg %p206
        $region38: #{second_cnn_forward.1} parent=11 // pred_check_branch
          %603 = sbr.rel (%p601) target = $region40
        $region39: #{second_cnn_forward.1} parent=11 // pred_region
          _
        $region40: #{second_cnn_forward.1} parent=11 // pred_fallthru
          _
        // Predicated region
        $region41: #{second_cnn_forward.1} parent=11 // pred_check
          %p604 = pneg %p227
        $region42: #{second_cnn_forward.1} parent=11 // pred_check_branch
          %606 = sbr.rel (%p604) target = $region44
        $region43: #{second_cnn_forward.1} parent=11 // pred_region
          _
        $region44: #{second_cnn_forward.1} parent=11 // pred_fallthru
          _
        // Predicated region
        $region45: #{second_cnn_forward.1} parent=11 // pred_check
          %p607 = pneg %p248
        $region46: #{second_cnn_forward.1} parent=11 // pred_check_branch
          %609 = sbr.rel (%p607) target = $region48
        $region47: #{second_cnn_forward.1} parent=11 // pred_region
          _
        $region48: #{second_cnn_forward.1} parent=11 // pred_fallthru
          _
        // Predicated region
        $region49: #{second_cnn_forward.1} parent=11 // pred_check
          %p610 = pneg %p269
        $region50: #{second_cnn_forward.1} parent=11 // pred_check_branch
          %612 = sbr.rel (%p610) target = $region52
        $region51: #{second_cnn_forward.1} parent=11 // pred_region
          _
        $region52: #{second_cnn_forward.1} parent=11 // pred_fallthru
          _
        // Predicated region
        $region53: #{second_cnn_forward.1} parent=11 // pred_check
          %p613 = pneg %p290
        $region54: #{second_cnn_forward.1} parent=11 // pred_check_branch
          %615 = sbr.rel (%p613) target = $region56
        $region55: #{second_cnn_forward.1} parent=11 // pred_region
          _
        $region56: #{second_cnn_forward.1} parent=11 // pred_fallthru
          _
        // Predicated region
        $region57: #{second_cnn_forward.1} parent=11 // pred_check
          %p616 = pneg %p311
        $region58: #{second_cnn_forward.1} parent=11 // pred_check_branch
          %618 = sbr.rel (%p616) target = $region60
        $region59: #{second_cnn_forward.1} parent=11 // pred_region
          _
        $region60: #{second_cnn_forward.1} parent=11 // pred_fallthru
          _
        // Predicated region
        $region61: #{second_cnn_forward.1} parent=11 // pred_check
          %p619 = pneg %p332
        $region62: #{second_cnn_forward.1} parent=11 // pred_check_branch
          %621 = sbr.rel (%p619) target = $region64
        $region63: #{second_cnn_forward.1} parent=11 // pred_region
          _
        $region64: #{second_cnn_forward.1} parent=11 // pred_fallthru
          _
        // Predicated region
        $region65: #{second_cnn_forward.1} parent=11 // pred_check
          %p622 = pneg %p353
        $region66: #{second_cnn_forward.1} parent=11 // pred_check_branch
          %624 = sbr.rel (%p622) target = $region68
        $region67: #{second_cnn_forward.1} parent=11 // pred_region
          _
        $region68: #{second_cnn_forward.1} parent=11 // pred_fallthru
          _
        // Predicated region
        $region69: #{second_cnn_forward.1} parent=11 // pred_check
          %p625 = pneg %p374
        $region70: #{second_cnn_forward.1} parent=11 // pred_check_branch
          %627 = sbr.rel (%p625) target = $region72
        $region71: #{second_cnn_forward.1} parent=11 // pred_region
          _
        $region72: #{second_cnn_forward.1} parent=11 // pred_fallthru
          _
        // Predicated region
        $region73: #{second_cnn_forward.1} parent=11 // pred_check
          %p628 = pneg %p395
        $region74: #{second_cnn_forward.1} parent=11 // pred_check_branch
          %630 = sbr.rel (%p628) target = $region76
        $region75: #{second_cnn_forward.1} parent=11 // pred_region
          _
        $region76: #{second_cnn_forward.1} parent=11 // pred_fallthru
          _
        // Predicated region
        $region77: #{second_cnn_forward.1} parent=11 // pred_check
          %p631 = pneg %p416
        $region78: #{second_cnn_forward.1} parent=11 // pred_check_branch
          %633 = sbr.rel (%p631) target = $region80
        $region79: #{second_cnn_forward.1} parent=11 // pred_region
          _
        $region80: #{second_cnn_forward.1} parent=11 // pred_fallthru
          _
        // Predicated region
        $region81: #{second_cnn_forward.1} parent=11 // pred_check
          %p634 = pneg %p437
        $region82: #{second_cnn_forward.1} parent=11 // pred_check_branch
          %636 = sbr.rel (%p634) target = $region84
        $region83: #{second_cnn_forward.1} parent=11 // pred_region
          _
        $region84: #{second_cnn_forward.1} parent=11 // pred_fallthru
          _
        // Predicated region
        $region85: #{second_cnn_forward.1} parent=11 // pred_check
          %p637 = pneg %p458
        $region86: #{second_cnn_forward.1} parent=11 // pred_check_branch
          %639 = sbr.rel (%p637) target = $region88
        $region87: #{second_cnn_forward.1} parent=11 // pred_region
          _
        $region88: #{second_cnn_forward.1} parent=11 // pred_fallthru
          _
        // Predicated region
        $region89: #{second_cnn_forward.1} parent=11 // pred_check
          %p640 = pneg %p479
        $region90: #{second_cnn_forward.1} parent=11 // pred_check_branch
          %642 = sbr.rel (%p640) target = $region92
        $region91: #{second_cnn_forward.1} parent=11 // pred_region
          _
        $region92: #{second_cnn_forward.1} parent=11 // pred_fallthru
          _
        // Predicated region
        $region93: #{second_cnn_forward.1} parent=11 // pred_check
          %p643 = pneg %p500
        $region94: #{second_cnn_forward.1} parent=11 // pred_check_branch
          %645 = sbr.rel (%p643) target = $region96
        $region95: #{second_cnn_forward.1} parent=11 // pred_region
          _
        $region96: #{second_cnn_forward.1} parent=11 // pred_fallthru
          _
        // Predicated region
        $region97: #{second_cnn_forward.1} parent=11 // pred_check
          %p646 = pneg %p521
        $region98: #{second_cnn_forward.1} parent=11 // pred_check_branch
          %648 = sbr.rel (%p646) target = $region100
        $region99: #{second_cnn_forward.1} parent=11 // pred_region
          _
        $region100: #{second_cnn_forward.1} parent=11 // pred_fallthru
          _
        // Predicated region
        $region101: #{second_cnn_forward.1} parent=11 // pred_check
          %p649 = pneg %p542
        $region102: #{second_cnn_forward.1} parent=11 // pred_check_branch
          %651 = sbr.rel (%p649) target = $region104
        $region103: #{second_cnn_forward.1} parent=11 // pred_region
          _
        $region104: #{second_cnn_forward.1} parent=11 // pred_fallthru
          _
      $region12: #{second_cnn_forward.1} parent=5 // pred_fallthru
        _
      %p652 = scmp.lt.s32.totalorder %s33, 2
      // Predicated region
      $region105: #{second_cnn_forward.1} parent=5 // pred_check
        %p653 = pneg %p652
      $region106: #{second_cnn_forward.1} parent=5 // pred_check_branch
        %655 = sbr.rel (%p653) target = $region108
      $region107: #{second_cnn_forward.1} parent=5 // pred_region
        // Predicated region
        $region109: #{second_cnn_forward.1} parent=107 // pred_check
          %p656 = pneg %p53
        $region110: #{second_cnn_forward.1} parent=107 // pred_check_branch
          %658 = sbr.rel (%p656) target = $region112
        $region111: #{second_cnn_forward.1} parent=107 // pred_region
          %s659 = smul.u32 32, %s33
          %p660 = scmp.lt.s32.totalorder %s659, 63
          %s661 = scalar_select %p660, %s659, 63
          %s662 = smul.addr %s661, 8
          %s663 = scalar_lea.vmem %s0, %s662
          %s664 = smul.u32 32, %s33
        $region112: #{second_cnn_forward.1} parent=107 // pred_fallthru
          _
      $region108: #{second_cnn_forward.1} parent=5 // pred_fallthru
        _
      %p665 = scmp.le.s32.totalorder 1, %s33
      %p666 = scmp.lt.s32.totalorder %s33, 3
      %p667 = pnand %p665, %p666
      %p668 = pneg %p667
      // Predicated region
      $region113: #{second_cnn_forward.1} parent=5 // pred_check
        _
      $region114: #{second_cnn_forward.1} parent=5 // pred_check_branch
        %670 = sbr.rel (%p667) target = $region116
      $region115: #{second_cnn_forward.1} parent=5 // pred_region
        %s671 = ssub.s32 %s33, 1
        %s672 = smul.u32 32, %s38
        %p673 = scmp.lt.s32.totalorder %s672, 63
        %s674 = scalar_select %p673, %s672, 63
        %s675 = smul.addr %s674, 8
        %s676 = scalar_lea.vmem %s0, %s675
        %p677 = pneg %p59
        %p678 = pneg %p56
        %p679 = pneg %p80
        %p680 = pneg %p77
        %p681 = pneg %p101
        %p682 = pneg %p98
        %p683 = pneg %p122
        %p684 = pneg %p119
        %p685 = pneg %p143
        %p686 = pneg %p140
        %p687 = pneg %p164
        %p688 = pneg %p161
        %p689 = pneg %p185
        %p690 = pneg %p182
        %p691 = pneg %p206
        %p692 = pneg %p203
        %p693 = pneg %p227
        %p694 = pneg %p224
        %p695 = pneg %p248
        %p696 = pneg %p245
        %p697 = pneg %p269
        %p698 = pneg %p266
        %p699 = pneg %p290
        %p700 = pneg %p287
        %p701 = pneg %p311
        %p702 = pneg %p308
        %p703 = pneg %p332
        %p704 = pneg %p329
        %p705 = pneg %p353
        %p706 = pneg %p350
        %p707 = pneg %p374
        %p708 = pneg %p371
        %p709 = pneg %p395
        %p710 = pneg %p392
        %p711 = pneg %p416
        %p712 = pneg %p413
        %p713 = pneg %p437
        %p714 = pneg %p434
        %p715 = pneg %p458
        %p716 = pneg %p455
        %p717 = pneg %p479
        %p718 = pneg %p476
        %p719 = pneg %p500
        %p720 = pneg %p497
        %p721 = pneg %p521
        %p722 = pneg %p518
        %p723 = pneg %p542
        %p724 = pneg %p539
        %p725 = pneg %p568
        %p726 = pneg %p565
        %s727 = sand.u32 %s555, 1
        %s728 = scalar_lea.sflag [#allocation3], %s727
        %s729 = sand.u32 %s555, 1
        %s730 = smul.addr %s729, 8
        %s731 = scalar_lea.vmem [#allocation2], %s730
        %s732 = smul.u32 32, %s38
        %p733 = scmp.lt.s32.totalorder %s732, 63
        %s734 = scalar_select %p733, %s732, 63
        %s735 = smul.addr %s734, 8
        %s736 = scalar_lea.vmem %s0, %s735
        %s737 = smul.u32 32, %s38
        %v739 = vld [vmem:[%s736] sm:$0xff]
        %v740 = vld [vmem:[%s736 + $0x8] sm:$0xff]
        %v741 = vld [vmem:[%s736 + $0x10] sm:$0xff]
        %v742 = vld [vmem:[%s736 + $0x18] sm:$0xff]
        %v743 = vld [vmem:[%s736 + $0x20] sm:$0xff]
        %v744 = vld [vmem:[%s736 + $0x28] sm:$0xff]
        %v745 = vld [vmem:[%s736 + $0x30] sm:$0xff]
        %v746 = vld [vmem:[%s736 + $0x38] sm:$0xff]
        %v747 = vld [vmem:[%s736 + $0x40] sm:$0xff]
        %v748 = vld [vmem:[%s736 + $0x48] sm:$0xff]
        %v749 = vld [vmem:[%s736 + $0x50] sm:$0xff]
        %v750 = vld [vmem:[%s736 + $0x58] sm:$0xff]
        %v751 = vld [vmem:[%s736 + $0x60] sm:$0xff]
        %v752 = vld [vmem:[%s736 + $0x68] sm:$0xff]
        %v753 = vld [vmem:[%s736 + $0x70] sm:$0xff]
        %v754 = vld [vmem:[%s736 + $0x78] sm:$0xff]
        %v755 = vld [vmem:[%s736 + $0x80] sm:$0xff]
        %v756 = vld [vmem:[%s736 + $0x88] sm:$0xff]
        %v757 = vld [vmem:[%s736 + $0x90] sm:$0xff]
        %v758 = vld [vmem:[%s736 + $0x98] sm:$0xff]
        %v759 = vld [vmem:[%s736 + $0xa0] sm:$0xff]
        %v760 = vld [vmem:[%s736 + $0xa8] sm:$0xff]
        %v761 = vld [vmem:[%s736 + $0xb0] sm:$0xff]
        %v762 = vld [vmem:[%s736 + $0xb8] sm:$0xff]
        %v763 = vld [vmem:[%s736 + $0xc0] sm:$0xff]
        %v764 = vld [vmem:[%s736 + $0xc8] sm:$0xff]
        %v765 = vld [vmem:[%s736 + $0xd0] sm:$0xff]
        %v766 = vld [vmem:[%s736 + $0xd8] sm:$0xff]
        %v767 = vld [vmem:[%s736 + $0xe0] sm:$0xff]
        %v768 = vld [vmem:[%s736 + $0xe8] sm:$0xff]
        %v769 = vld [vmem:[%s736 + $0xf0] sm:$0xff]
        %v770 = vld [vmem:[%s736 + $0xf8] sm:$0xff]
        %vm803 = vcmask 1046528
        %v804 = vrot.slane %v739, 1
        %v805 = vrot.slane %v740, 1
        %v806 = vsel %vm803, %v804, %v805
        %v807 = vrot.slane %v741, 1
        %v808 = vsel %vm803, %v805, %v807
        %v809 = vrot.slane %v742, 1
        %v810 = vsel %vm803, %v807, %v809
        %v811 = vrot.slane %v743, 1
        %v812 = vsel %vm803, %v809, %v811
        %v813 = vrot.slane %v744, 1
        %v814 = vsel %vm803, %v811, %v813
        %v815 = vrot.slane %v745, 1
        %v816 = vsel %vm803, %v813, %v815
        %v817 = vrot.slane %v746, 1
        %v818 = vsel %vm803, %v815, %v817
        %v819 = vrot.slane %v747, 1
        %v820 = vsel %vm803, %v817, %v819
        %v821 = vrot.slane %v748, 1
        %v822 = vsel %vm803, %v819, %v821
        %v823 = vrot.slane %v749, 1
        %v824 = vsel %vm803, %v821, %v823
        %v825 = vrot.slane %v750, 1
        %v826 = vsel %vm803, %v823, %v825
        %v827 = vrot.slane %v751, 1
        %v828 = vsel %vm803, %v825, %v827
        %v829 = vrot.slane %v752, 1
        %v830 = vsel %vm803, %v827, %v829
        %v831 = vrot.slane %v753, 1
        %v832 = vsel %vm803, %v829, %v831
        %v833 = vrot.slane %v754, 1
        %v834 = vsel %vm803, %v831, %v833
        %v835 = vrot.slane %v755, 1
        %v836 = vsel %vm803, %v833, %v835
        %v837 = vrot.slane %v756, 1
        %v838 = vsel %vm803, %v835, %v837
        %v839 = vrot.slane %v757, 1
        %v840 = vsel %vm803, %v837, %v839
        %v841 = vrot.slane %v758, 1
        %v842 = vsel %vm803, %v839, %v841
        %v843 = vrot.slane %v759, 1
        %v844 = vsel %vm803, %v841, %v843
        %v845 = vrot.slane %v760, 1
        %v846 = vsel %vm803, %v843, %v845
        %v847 = vrot.slane %v761, 1
        %v848 = vsel %vm803, %v845, %v847
        %v849 = vrot.slane %v762, 1
        %v850 = vsel %vm803, %v847, %v849
        %v851 = vrot.slane %v763, 1
        %v852 = vsel %vm803, %v849, %v851
        %v853 = vrot.slane %v764, 1
        %v854 = vsel %vm803, %v851, %v853
        %v855 = vrot.slane %v765, 1
        %v856 = vsel %vm803, %v853, %v855
        %v857 = vrot.slane %v766, 1
        %v858 = vsel %vm803, %v855, %v857
        %v859 = vrot.slane %v767, 1
        %v860 = vsel %vm803, %v857, %v859
        %v861 = vrot.slane %v768, 1
        %v862 = vsel %vm803, %v859, %v861
        %v863 = vrot.slane %v769, 1
        %v864 = vsel %vm803, %v861, %v863
        %v865 = vrot.slane %v770, 1
        %v866 = vsel %vm803, %v863, %v865
        %867 = vrot.lane.b32.xlu0 %v806, 96
        %v868 = vpop.permute.xlu0 %867
        %869 = vrot.lane.b32.xlu0 %v808, 96
        %v870 = vpop.permute.xlu0 %869
        %871 = vrot.lane.b32.xlu0 %v810, 96
        %v872 = vpop.permute.xlu0 %871
        %873 = vrot.lane.b32.xlu0 %v812, 96
        %v874 = vpop.permute.xlu0 %873
        %875 = vrot.lane.b32.xlu0 %v814, 96
        %v876 = vpop.permute.xlu0 %875
        %877 = vrot.lane.b32.xlu0 %v816, 96
        %v878 = vpop.permute.xlu0 %877
        %879 = vrot.lane.b32.xlu0 %v818, 96
        %v880 = vpop.permute.xlu0 %879
        %881 = vrot.lane.b32.xlu0 %v820, 96
        %v882 = vpop.permute.xlu0 %881
        %883 = vrot.lane.b32.xlu0 %v822, 96
        %v884 = vpop.permute.xlu0 %883
        %885 = vrot.lane.b32.xlu0 %v824, 96
        %v886 = vpop.permute.xlu0 %885
        %887 = vrot.lane.b32.xlu0 %v826, 96
        %v888 = vpop.permute.xlu0 %887
        %889 = vrot.lane.b32.xlu0 %v828, 96
        %v890 = vpop.permute.xlu0 %889
        %891 = vrot.lane.b32.xlu0 %v830, 96
        %v892 = vpop.permute.xlu0 %891
        %893 = vrot.lane.b32.xlu0 %v832, 96
        %v894 = vpop.permute.xlu0 %893
        %895 = vrot.lane.b32.xlu0 %v834, 96
        %v896 = vpop.permute.xlu0 %895
        %897 = vrot.lane.b32.xlu0 %v836, 96
        %v898 = vpop.permute.xlu0 %897
        %899 = vrot.lane.b32.xlu0 %v838, 96
        %v900 = vpop.permute.xlu0 %899
        %901 = vrot.lane.b32.xlu0 %v840, 96
        %v902 = vpop.permute.xlu0 %901
        %903 = vrot.lane.b32.xlu0 %v842, 96
        %v904 = vpop.permute.xlu0 %903
        %905 = vrot.lane.b32.xlu0 %v844, 96
        %v906 = vpop.permute.xlu0 %905
        %907 = vrot.lane.b32.xlu0 %v846, 96
        %v908 = vpop.permute.xlu0 %907
        %909 = vrot.lane.b32.xlu0 %v848, 96
        %v910 = vpop.permute.xlu0 %909
        %911 = vrot.lane.b32.xlu0 %v850, 96
        %v912 = vpop.permute.xlu0 %911
        %913 = vrot.lane.b32.xlu0 %v852, 96
        %v914 = vpop.permute.xlu0 %913
        %915 = vrot.lane.b32.xlu0 %v854, 96
        %v916 = vpop.permute.xlu0 %915
        %917 = vrot.lane.b32.xlu0 %v856, 96
        %v918 = vpop.permute.xlu0 %917
        %919 = vrot.lane.b32.xlu0 %v858, 96
        %v920 = vpop.permute.xlu0 %919
        %921 = vrot.lane.b32.xlu0 %v860, 96
        %v922 = vpop.permute.xlu0 %921
        %923 = vrot.lane.b32.xlu0 %v862, 96
        %v924 = vpop.permute.xlu0 %923
        %925 = vrot.lane.b32.xlu0 %v864, 96
        %v926 = vpop.permute.xlu0 %925
        %927 = vrot.lane.b32.xlu0 %v866, 96
        %v928 = vpop.permute.xlu0 %927
        %929 = vrot.lane.b32.xlu0 %v865, 96
        %v930 = vpop.permute.xlu0 %929
        %vm963 = vcmask 1045504
        %v964 = vrot.slane %v739, 2
        %v965 = vrot.slane %v740, 2
        %v966 = vsel %vm963, %v964, %v965
        %v967 = vrot.slane %v741, 2
        %v968 = vsel %vm963, %v965, %v967
        %v969 = vrot.slane %v742, 2
        %v970 = vsel %vm963, %v967, %v969
        %v971 = vrot.slane %v743, 2
        %v972 = vsel %vm963, %v969, %v971
        %v973 = vrot.slane %v744, 2
        %v974 = vsel %vm963, %v971, %v973
        %v975 = vrot.slane %v745, 2
        %v976 = vsel %vm963, %v973, %v975
        %v977 = vrot.slane %v746, 2
        %v978 = vsel %vm963, %v975, %v977
        %v979 = vrot.slane %v747, 2
        %v980 = vsel %vm963, %v977, %v979
        %v981 = vrot.slane %v748, 2
        %v982 = vsel %vm963, %v979, %v981
        %v983 = vrot.slane %v749, 2
        %v984 = vsel %vm963, %v981, %v983
        %v985 = vrot.slane %v750, 2
        %v986 = vsel %vm963, %v983, %v985
        %v987 = vrot.slane %v751, 2
        %v988 = vsel %vm963, %v985, %v987
        %v989 = vrot.slane %v752, 2
        %v990 = vsel %vm963, %v987, %v989
        %v991 = vrot.slane %v753, 2
        %v992 = vsel %vm963, %v989, %v991
        %v993 = vrot.slane %v754, 2
        %v994 = vsel %vm963, %v991, %v993
        %v995 = vrot.slane %v755, 2
        %v996 = vsel %vm963, %v993, %v995
        %v997 = vrot.slane %v756, 2
        %v998 = vsel %vm963, %v995, %v997
        %v999 = vrot.slane %v757, 2
        %v1000 = vsel %vm963, %v997, %v999
        %v1001 = vrot.slane %v758, 2
        %v1002 = vsel %vm963, %v999, %v1001
        %v1003 = vrot.slane %v759, 2
        %v1004 = vsel %vm963, %v1001, %v1003
        %v1005 = vrot.slane %v760, 2
        %v1006 = vsel %vm963, %v1003, %v1005
        %v1007 = vrot.slane %v761, 2
        %v1008 = vsel %vm963, %v1005, %v1007
        %v1009 = vrot.slane %v762, 2
        %v1010 = vsel %vm963, %v1007, %v1009
        %v1011 = vrot.slane %v763, 2
        %v1012 = vsel %vm963, %v1009, %v1011
        %v1013 = vrot.slane %v764, 2
        %v1014 = vsel %vm963, %v1011, %v1013
        %v1015 = vrot.slane %v765, 2
        %v1016 = vsel %vm963, %v1013, %v1015
        %v1017 = vrot.slane %v766, 2
        %v1018 = vsel %vm963, %v1015, %v1017
        %v1019 = vrot.slane %v767, 2
        %v1020 = vsel %vm963, %v1017, %v1019
        %v1021 = vrot.slane %v768, 2
        %v1022 = vsel %vm963, %v1019, %v1021
        %v1023 = vrot.slane %v769, 2
        %v1024 = vsel %vm963, %v1021, %v1023
        %v1025 = vrot.slane %v770, 2
        %v1026 = vsel %vm963, %v1023, %v1025
        %1027 = vrot.lane.b32.xlu0 %v966, 64
        %v1028 = vpop.permute.xlu0 %1027
        %1029 = vrot.lane.b32.xlu0 %v968, 64
        %v1030 = vpop.permute.xlu0 %1029
        %1031 = vrot.lane.b32.xlu0 %v970, 64
        %v1032 = vpop.permute.xlu0 %1031
        %1033 = vrot.lane.b32.xlu0 %v972, 64
        %v1034 = vpop.permute.xlu0 %1033
        %1035 = vrot.lane.b32.xlu0 %v974, 64
        %v1036 = vpop.permute.xlu0 %1035
        %1037 = vrot.lane.b32.xlu0 %v976, 64
        %v1038 = vpop.permute.xlu0 %1037
        %1039 = vrot.lane.b32.xlu0 %v978, 64
        %v1040 = vpop.permute.xlu0 %1039
        %1041 = vrot.lane.b32.xlu0 %v980, 64
        %v1042 = vpop.permute.xlu0 %1041
        %1043 = vrot.lane.b32.xlu0 %v982, 64
        %v1044 = vpop.permute.xlu0 %1043
        %1045 = vrot.lane.b32.xlu0 %v984, 64
        %v1046 = vpop.permute.xlu0 %1045
        %1047 = vrot.lane.b32.xlu0 %v986, 64
        %v1048 = vpop.permute.xlu0 %1047
        %1049 = vrot.lane.b32.xlu0 %v988, 64
        %v1050 = vpop.permute.xlu0 %1049
        %1051 = vrot.lane.b32.xlu0 %v990, 64
        %v1052 = vpop.permute.xlu0 %1051
        %1053 = vrot.lane.b32.xlu0 %v992, 64
        %v1054 = vpop.permute.xlu0 %1053
        %1055 = vrot.lane.b32.xlu0 %v994, 64
        %v1056 = vpop.permute.xlu0 %1055
        %1057 = vrot.lane.b32.xlu0 %v996, 64
        %v1058 = vpop.permute.xlu0 %1057
        %1059 = vrot.lane.b32.xlu0 %v998, 64
        %v1060 = vpop.permute.xlu0 %1059
        %1061 = vrot.lane.b32.xlu0 %v1000, 64
        %v1062 = vpop.permute.xlu0 %1061
        %1063 = vrot.lane.b32.xlu0 %v1002, 64
        %v1064 = vpop.permute.xlu0 %1063
        %1065 = vrot.lane.b32.xlu0 %v1004, 64
        %v1066 = vpop.permute.xlu0 %1065
        %1067 = vrot.lane.b32.xlu0 %v1006, 64
        %v1068 = vpop.permute.xlu0 %1067
        %1069 = vrot.lane.b32.xlu0 %v1008, 64
        %v1070 = vpop.permute.xlu0 %1069
        %1071 = vrot.lane.b32.xlu0 %v1010, 64
        %v1072 = vpop.permute.xlu0 %1071
        %1073 = vrot.lane.b32.xlu0 %v1012, 64
        %v1074 = vpop.permute.xlu0 %1073
        %1075 = vrot.lane.b32.xlu0 %v1014, 64
        %v1076 = vpop.permute.xlu0 %1075
        %1077 = vrot.lane.b32.xlu0 %v1016, 64
        %v1078 = vpop.permute.xlu0 %1077
        %1079 = vrot.lane.b32.xlu0 %v1018, 64
        %v1080 = vpop.permute.xlu0 %1079
        %1081 = vrot.lane.b32.xlu0 %v1020, 64
        %v1082 = vpop.permute.xlu0 %1081
        %1083 = vrot.lane.b32.xlu0 %v1022, 64
        %v1084 = vpop.permute.xlu0 %1083
        %1085 = vrot.lane.b32.xlu0 %v1024, 64
        %v1086 = vpop.permute.xlu0 %1085
        %1087 = vrot.lane.b32.xlu0 %v1026, 64
        %v1088 = vpop.permute.xlu0 %1087
        %1089 = vrot.lane.b32.xlu0 %v1025, 64
        %v1090 = vpop.permute.xlu0 %1089
        %vm1123 = vcmask 1044480
        %v1124 = vrot.slane %v739, 3
        %v1125 = vrot.slane %v740, 3
        %v1126 = vsel %vm1123, %v1124, %v1125
        %v1127 = vrot.slane %v741, 3
        %v1128 = vsel %vm1123, %v1125, %v1127
        %v1129 = vrot.slane %v742, 3
        %v1130 = vsel %vm1123, %v1127, %v1129
        %v1131 = vrot.slane %v743, 3
        %v1132 = vsel %vm1123, %v1129, %v1131
        %v1133 = vrot.slane %v744, 3
        %v1134 = vsel %vm1123, %v1131, %v1133
        %v1135 = vrot.slane %v745, 3
        %v1136 = vsel %vm1123, %v1133, %v1135
        %v1137 = vrot.slane %v746, 3
        %v1138 = vsel %vm1123, %v1135, %v1137
        %v1139 = vrot.slane %v747, 3
        %v1140 = vsel %vm1123, %v1137, %v1139
        %v1141 = vrot.slane %v748, 3
        %v1142 = vsel %vm1123, %v1139, %v1141
        %v1143 = vrot.slane %v749, 3
        %v1144 = vsel %vm1123, %v1141, %v1143
        %v1145 = vrot.slane %v750, 3
        %v1146 = vsel %vm1123, %v1143, %v1145
        %v1147 = vrot.slane %v751, 3
        %v1148 = vsel %vm1123, %v1145, %v1147
        %v1149 = vrot.slane %v752, 3
        %v1150 = vsel %vm1123, %v1147, %v1149
        %v1151 = vrot.slane %v753, 3
        %v1152 = vsel %vm1123, %v1149, %v1151
        %v1153 = vrot.slane %v754, 3
        %v1154 = vsel %vm1123, %v1151, %v1153
        %v1155 = vrot.slane %v755, 3
        %v1156 = vsel %vm1123, %v1153, %v1155
        %v1157 = vrot.slane %v756, 3
        %v1158 = vsel %vm1123, %v1155, %v1157
        %v1159 = vrot.slane %v757, 3
        %v1160 = vsel %vm1123, %v1157, %v1159
        %v1161 = vrot.slane %v758, 3
        %v1162 = vsel %vm1123, %v1159, %v1161
        %v1163 = vrot.slane %v759, 3
        %v1164 = vsel %vm1123, %v1161, %v1163
        %v1165 = vrot.slane %v760, 3
        %v1166 = vsel %vm1123, %v1163, %v1165
        %v1167 = vrot.slane %v761, 3
        %v1168 = vsel %vm1123, %v1165, %v1167
        %v1169 = vrot.slane %v762, 3
        %v1170 = vsel %vm1123, %v1167, %v1169
        %v1171 = vrot.slane %v763, 3
        %v1172 = vsel %vm1123, %v1169, %v1171
        %v1173 = vrot.slane %v764, 3
        %v1174 = vsel %vm1123, %v1171, %v1173
        %v1175 = vrot.slane %v765, 3
        %v1176 = vsel %vm1123, %v1173, %v1175
        %v1177 = vrot.slane %v766, 3
        %v1178 = vsel %vm1123, %v1175, %v1177
        %v1179 = vrot.slane %v767, 3
        %v1180 = vsel %vm1123, %v1177, %v1179
        %v1181 = vrot.slane %v768, 3
        %v1182 = vsel %vm1123, %v1179, %v1181
        %v1183 = vrot.slane %v769, 3
        %v1184 = vsel %vm1123, %v1181, %v1183
        %v1185 = vrot.slane %v770, 3
        %v1186 = vsel %vm1123, %v1183, %v1185
        %1187 = vrot.lane.b32.xlu0 %v1126, 32
        %v1188 = vpop.permute.xlu0 %1187
        %1189 = vrot.lane.b32.xlu0 %v1128, 32
        %v1190 = vpop.permute.xlu0 %1189
        %1191 = vrot.lane.b32.xlu0 %v1130, 32
        %v1192 = vpop.permute.xlu0 %1191
        %1193 = vrot.lane.b32.xlu0 %v1132, 32
        %v1194 = vpop.permute.xlu0 %1193
        %1195 = vrot.lane.b32.xlu0 %v1134, 32
        %v1196 = vpop.permute.xlu0 %1195
        %1197 = vrot.lane.b32.xlu0 %v1136, 32
        %v1198 = vpop.permute.xlu0 %1197
        %1199 = vrot.lane.b32.xlu0 %v1138, 32
        %v1200 = vpop.permute.xlu0 %1199
        %1201 = vrot.lane.b32.xlu0 %v1140, 32
        %v1202 = vpop.permute.xlu0 %1201
        %1203 = vrot.lane.b32.xlu0 %v1142, 32
        %v1204 = vpop.permute.xlu0 %1203
        %1205 = vrot.lane.b32.xlu0 %v1144, 32
        %v1206 = vpop.permute.xlu0 %1205
        %1207 = vrot.lane.b32.xlu0 %v1146, 32
        %v1208 = vpop.permute.xlu0 %1207
        %1209 = vrot.lane.b32.xlu0 %v1148, 32
        %v1210 = vpop.permute.xlu0 %1209
        %1211 = vrot.lane.b32.xlu0 %v1150, 32
        %v1212 = vpop.permute.xlu0 %1211
        %1213 = vrot.lane.b32.xlu0 %v1152, 32
        %v1214 = vpop.permute.xlu0 %1213
        %1215 = vrot.lane.b32.xlu0 %v1154, 32
        %v1216 = vpop.permute.xlu0 %1215
        %1217 = vrot.lane.b32.xlu0 %v1156, 32
        %v1218 = vpop.permute.xlu0 %1217
        %1219 = vrot.lane.b32.xlu0 %v1158, 32
        %v1220 = vpop.permute.xlu0 %1219
        %1221 = vrot.lane.b32.xlu0 %v1160, 32
        %v1222 = vpop.permute.xlu0 %1221
        %1223 = vrot.lane.b32.xlu0 %v1162, 32
        %v1224 = vpop.permute.xlu0 %1223
        %1225 = vrot.lane.b32.xlu0 %v1164, 32
        %v1226 = vpop.permute.xlu0 %1225
        %1227 = vrot.lane.b32.xlu0 %v1166, 32
        %v1228 = vpop.permute.xlu0 %1227
        %1229 = vrot.lane.b32.xlu0 %v1168, 32
        %v1230 = vpop.permute.xlu0 %1229
        %1231 = vrot.lane.b32.xlu0 %v1170, 32
        %v1232 = vpop.permute.xlu0 %1231
        %1233 = vrot.lane.b32.xlu0 %v1172, 32
        %v1234 = vpop.permute.xlu0 %1233
        %1235 = vrot.lane.b32.xlu0 %v1174, 32
        %v1236 = vpop.permute.xlu0 %1235
        %1237 = vrot.lane.b32.xlu0 %v1176, 32
        %v1238 = vpop.permute.xlu0 %1237
        %1239 = vrot.lane.b32.xlu0 %v1178, 32
        %v1240 = vpop.permute.xlu0 %1239
        %1241 = vrot.lane.b32.xlu0 %v1180, 32
        %v1242 = vpop.permute.xlu0 %1241
        %1243 = vrot.lane.b32.xlu0 %v1182, 32
        %v1244 = vpop.permute.xlu0 %1243
        %1245 = vrot.lane.b32.xlu0 %v1184, 32
        %v1246 = vpop.permute.xlu0 %1245
        %1247 = vrot.lane.b32.xlu0 %v1186, 32
        %v1248 = vpop.permute.xlu0 %1247
        %1249 = vrot.lane.b32.xlu0 %v1185, 32
        %v1250 = vpop.permute.xlu0 %1249
        %vm1283 = vcmask 1043456
        %v1284 = vrot.slane %v739, 4
        %v1285 = vrot.slane %v740, 4
        %v1286 = vsel %vm1283, %v1284, %v1285
        %v1287 = vrot.slane %v741, 4
        %v1288 = vsel %vm1283, %v1285, %v1287
        %v1289 = vrot.slane %v742, 4
        %v1290 = vsel %vm1283, %v1287, %v1289
        %v1291 = vrot.slane %v743, 4
        %v1292 = vsel %vm1283, %v1289, %v1291
        %v1293 = vrot.slane %v744, 4
        %v1294 = vsel %vm1283, %v1291, %v1293
        %v1295 = vrot.slane %v745, 4
        %v1296 = vsel %vm1283, %v1293, %v1295
        %v1297 = vrot.slane %v746, 4
        %v1298 = vsel %vm1283, %v1295, %v1297
        %v1299 = vrot.slane %v747, 4
        %v1300 = vsel %vm1283, %v1297, %v1299
        %v1301 = vrot.slane %v748, 4
        %v1302 = vsel %vm1283, %v1299, %v1301
        %v1303 = vrot.slane %v749, 4
        %v1304 = vsel %vm1283, %v1301, %v1303
        %v1305 = vrot.slane %v750, 4
        %v1306 = vsel %vm1283, %v1303, %v1305
        %v1307 = vrot.slane %v751, 4
        %v1308 = vsel %vm1283, %v1305, %v1307
        %v1309 = vrot.slane %v752, 4
        %v1310 = vsel %vm1283, %v1307, %v1309
        %v1311 = vrot.slane %v753, 4
        %v1312 = vsel %vm1283, %v1309, %v1311
        %v1313 = vrot.slane %v754, 4
        %v1314 = vsel %vm1283, %v1311, %v1313
        %v1315 = vrot.slane %v755, 4
        %v1316 = vsel %vm1283, %v1313, %v1315
        %v1317 = vrot.slane %v756, 4
        %v1318 = vsel %vm1283, %v1315, %v1317
        %v1319 = vrot.slane %v757, 4
        %v1320 = vsel %vm1283, %v1317, %v1319
        %v1321 = vrot.slane %v758, 4
        %v1322 = vsel %vm1283, %v1319, %v1321
        %v1323 = vrot.slane %v759, 4
        %v1324 = vsel %vm1283, %v1321, %v1323
        %v1325 = vrot.slane %v760, 4
        %v1326 = vsel %vm1283, %v1323, %v1325
        %v1327 = vrot.slane %v761, 4
        %v1328 = vsel %vm1283, %v1325, %v1327
        %v1329 = vrot.slane %v762, 4
        %v1330 = vsel %vm1283, %v1327, %v1329
        %v1331 = vrot.slane %v763, 4
        %v1332 = vsel %vm1283, %v1329, %v1331
        %v1333 = vrot.slane %v764, 4
        %v1334 = vsel %vm1283, %v1331, %v1333
        %v1335 = vrot.slane %v765, 4
        %v1336 = vsel %vm1283, %v1333, %v1335
        %v1337 = vrot.slane %v766, 4
        %v1338 = vsel %vm1283, %v1335, %v1337
        %v1339 = vrot.slane %v767, 4
        %v1340 = vsel %vm1283, %v1337, %v1339
        %v1341 = vrot.slane %v768, 4
        %v1342 = vsel %vm1283, %v1339, %v1341
        %v1343 = vrot.slane %v769, 4
        %v1344 = vsel %vm1283, %v1341, %v1343
        %v1345 = vrot.slane %v770, 4
        %v1346 = vsel %vm1283, %v1343, %v1345
        %vm1379 = vcmask 785408
        %v1380 = vsel %vm1379, %v739, %v868
        %v1381 = vsel %vm1379, %v740, %v870
        %v1382 = vsel %vm1379, %v741, %v872
        %v1383 = vsel %vm1379, %v742, %v874
        %v1384 = vsel %vm1379, %v743, %v876
        %v1385 = vsel %vm1379, %v744, %v878
        %v1386 = vsel %vm1379, %v745, %v880
        %v1387 = vsel %vm1379, %v746, %v882
        %v1388 = vsel %vm1379, %v747, %v884
        %v1389 = vsel %vm1379, %v748, %v886
        %v1390 = vsel %vm1379, %v749, %v888
        %v1391 = vsel %vm1379, %v750, %v890
        %v1392 = vsel %vm1379, %v751, %v892
        %v1393 = vsel %vm1379, %v752, %v894
        %v1394 = vsel %vm1379, %v753, %v896
        %v1395 = vsel %vm1379, %v754, %v898
        %v1396 = vsel %vm1379, %v755, %v900
        %v1397 = vsel %vm1379, %v756, %v902
        %v1398 = vsel %vm1379, %v757, %v904
        %v1399 = vsel %vm1379, %v758, %v906
        %v1400 = vsel %vm1379, %v759, %v908
        %v1401 = vsel %vm1379, %v760, %v910
        %v1402 = vsel %vm1379, %v761, %v912
        %v1403 = vsel %vm1379, %v762, %v914
        %v1404 = vsel %vm1379, %v763, %v916
        %v1405 = vsel %vm1379, %v764, %v918
        %v1406 = vsel %vm1379, %v765, %v920
        %v1407 = vsel %vm1379, %v766, %v922
        %v1408 = vsel %vm1379, %v767, %v924
        %v1409 = vsel %vm1379, %v768, %v926
        %v1410 = vsel %vm1379, %v769, %v928
        %v1411 = vsel %vm1379, %v770, %v930
        %vm1412 = vcmask 523264
        %v1413 = vsel %vm1412, %v868, %v1028
        %v1414 = vsel %vm1412, %v870, %v1030
        %v1415 = vsel %vm1412, %v872, %v1032
        %v1416 = vsel %vm1412, %v874, %v1034
        %v1417 = vsel %vm1412, %v876, %v1036
        %v1418 = vsel %vm1412, %v878, %v1038
        %v1419 = vsel %vm1412, %v880, %v1040
        %v1420 = vsel %vm1412, %v882, %v1042
        %v1421 = vsel %vm1412, %v884, %v1044
        %v1422 = vsel %vm1412, %v886, %v1046
        %v1423 = vsel %vm1412, %v888, %v1048
        %v1424 = vsel %vm1412, %v890, %v1050
        %v1425 = vsel %vm1412, %v892, %v1052
        %v1426 = vsel %vm1412, %v894, %v1054
        %v1427 = vsel %vm1412, %v896, %v1056
        %v1428 = vsel %vm1412, %v898, %v1058
        %v1429 = vsel %vm1412, %v900, %v1060
        %v1430 = vsel %vm1412, %v902, %v1062
        %v1431 = vsel %vm1412, %v904, %v1064
        %v1432 = vsel %vm1412, %v906, %v1066
        %v1433 = vsel %vm1412, %v908, %v1068
        %v1434 = vsel %vm1412, %v910, %v1070
        %v1435 = vsel %vm1412, %v912, %v1072
        %v1436 = vsel %vm1412, %v914, %v1074
        %v1437 = vsel %vm1412, %v916, %v1076
        %v1438 = vsel %vm1412, %v918, %v1078
        %v1439 = vsel %vm1412, %v920, %v1080
        %v1440 = vsel %vm1412, %v922, %v1082
        %v1441 = vsel %vm1412, %v924, %v1084
        %v1442 = vsel %vm1412, %v926, %v1086
        %v1443 = vsel %vm1412, %v928, %v1088
        %v1444 = vsel %vm1412, %v930, %v1090
        %vm1445 = vcmask 261120
        %v1446 = vsel %vm1445, %v1028, %v1188
        %v1447 = vsel %vm1445, %v1030, %v1190
        %v1448 = vsel %vm1445, %v1032, %v1192
        %v1449 = vsel %vm1445, %v1034, %v1194
        %v1450 = vsel %vm1445, %v1036, %v1196
        %v1451 = vsel %vm1445, %v1038, %v1198
        %v1452 = vsel %vm1445, %v1040, %v1200
        %v1453 = vsel %vm1445, %v1042, %v1202
        %v1454 = vsel %vm1445, %v1044, %v1204
        %v1455 = vsel %vm1445, %v1046, %v1206
        %v1456 = vsel %vm1445, %v1048, %v1208
        %v1457 = vsel %vm1445, %v1050, %v1210
        %v1458 = vsel %vm1445, %v1052, %v1212
        %v1459 = vsel %vm1445, %v1054, %v1214
        %v1460 = vsel %vm1445, %v1056, %v1216
        %v1461 = vsel %vm1445, %v1058, %v1218
        %v1462 = vsel %vm1445, %v1060, %v1220
        %v1463 = vsel %vm1445, %v1062, %v1222
        %v1464 = vsel %vm1445, %v1064, %v1224
        %v1465 = vsel %vm1445, %v1066, %v1226
        %v1466 = vsel %vm1445, %v1068, %v1228
        %v1467 = vsel %vm1445, %v1070, %v1230
        %v1468 = vsel %vm1445, %v1072, %v1232
        %v1469 = vsel %vm1445, %v1074, %v1234
        %v1470 = vsel %vm1445, %v1076, %v1236
        %v1471 = vsel %vm1445, %v1078, %v1238
        %v1472 = vsel %vm1445, %v1080, %v1240
        %v1473 = vsel %vm1445, %v1082, %v1242
        %v1474 = vsel %vm1445, %v1084, %v1244
        %v1475 = vsel %vm1445, %v1086, %v1246
        %v1476 = vsel %vm1445, %v1088, %v1248
        %v1477 = vsel %vm1445, %v1090, %v1250
        %v1478 = vld [vmem:[%s1] sm:$0xff]
        %v1479 = vld [vmem:[%s1 + $0x8] sm:$0xff]
        %v1480 = vld [vmem:[%s1 + $0x10] sm:$0xff]
        %v1481 = vld [vmem:[%s1 + $0x18] sm:$0xff]
        %v1482 = vld [vmem:[%s1 + $0x20] sm:$0xff]
        %v1483 = vld [vmem:[%s1 + $0x28] sm:$0xff]
        %v1484 = vld [vmem:[%s1 + $0x30] sm:$0xff]
        %v1485 = vld [vmem:[%s1 + $0x38] sm:$0xff]
        %v1486 = vld [vmem:[%s1 + $0x40] sm:$0xff]
        %v1487 = vld [vmem:[%s1 + $0x48] sm:$0xff]
        %v1488 = vld [vmem:[%s1 + $0x50] sm:$0xff]
        %v1489 = vld [vmem:[%s1 + $0x58] sm:$0xff]
        %v1490 = vld [vmem:[%s1 + $0x60] sm:$0xff]
        %v1491 = vld [vmem:[%s1 + $0x68] sm:$0xff]
        %v1492 = vld [vmem:[%s1 + $0x70] sm:$0xff]
        %v1493 = vld [vmem:[%s1 + $0x78] sm:$0xff]
        %v1494 = vld [vmem:[%s1 + $0x80] sm:$0xff]
        %v1495 = vld [vmem:[%s1 + $0x88] sm:$0xff]
        %v1496 = vld [vmem:[%s1 + $0x90] sm:$0xff]
        %v1497 = vld [vmem:[%s1 + $0x98] sm:$0xff]
        %v1498 = vld [vmem:[%s1 + $0xa0] sm:$0xff]
        %v1499 = vld [vmem:[%s1 + $0xa8] sm:$0xff]
        %v1500 = vld [vmem:[%s1 + $0xb0] sm:$0xff]
        %v1501 = vld [vmem:[%s1 + $0xb8] sm:$0xff]
        %v1502 = vld [vmem:[%s1 + $0xc0] sm:$0xff]
        %v1503 = vld [vmem:[%s1 + $0xc8] sm:$0xff]
        %v1504 = vld [vmem:[%s1 + $0xd0] sm:$0xff]
        %v1505 = vld [vmem:[%s1 + $0xd8] sm:$0xff]
        %v1506 = vld [vmem:[%s1 + $0xe0] sm:$0xff]
        %v1507 = vld [vmem:[%s1 + $0xe8] sm:$0xff]
        %v1508 = vld [vmem:[%s1 + $0xf0] sm:$0xff]
        %v1509 = vld [vmem:[%s1 + $0xf8] sm:$0xff]
        %v1510 = vld [vmem:[%s1 + $0x100] sm:$0xff]
        %v1511 = vld [vmem:[%s1 + $0x108] sm:$0xff]
        %v1512 = vld [vmem:[%s1 + $0x110] sm:$0xff]
        %v1513 = vld [vmem:[%s1 + $0x118] sm:$0xff]
        %v1514 = vld [vmem:[%s1 + $0x120] sm:$0xff]
        %v1515 = vld [vmem:[%s1 + $0x128] sm:$0xff]
        %v1516 = vld [vmem:[%s1 + $0x130] sm:$0xff]
        %v1517 = vld [vmem:[%s1 + $0x138] sm:$0xff]
        %v1518 = vld [vmem:[%s1 + $0x140] sm:$0xff]
        %v1519 = vld [vmem:[%s1 + $0x148] sm:$0xff]
        %v1520 = vld [vmem:[%s1 + $0x150] sm:$0xff]
        %v1521 = vld [vmem:[%s1 + $0x158] sm:$0xff]
        %v1522 = vld [vmem:[%s1 + $0x160] sm:$0xff]
        %v1523 = vld [vmem:[%s1 + $0x168] sm:$0xff]
        %v1524 = vld [vmem:[%s1 + $0x170] sm:$0xff]
        %v1525 = vld [vmem:[%s1 + $0x178] sm:$0xff]
        %v1526 = vld [vmem:[%s1 + $0x180] sm:$0xff]
        %v1527 = vld [vmem:[%s1 + $0x188] sm:$0xff]
        %v1528 = vld [vmem:[%s1 + $0x190] sm:$0xff]
        %v1529 = vld [vmem:[%s1 + $0x198] sm:$0xff]
        %v1530 = vld [vmem:[%s1 + $0x1a0] sm:$0xff]
        %v1531 = vld [vmem:[%s1 + $0x1a8] sm:$0xff]
        %v1532 = vld [vmem:[%s1 + $0x1b0] sm:$0xff]
        %v1533 = vld [vmem:[%s1 + $0x1b8] sm:$0xff]
        %v1534 = vld [vmem:[%s1 + $0x1c0] sm:$0xff]
        %v1535 = vld [vmem:[%s1 + $0x1c8] sm:$0xff]
        %v1536 = vld [vmem:[%s1 + $0x1d0] sm:$0xff]
        %v1537 = vld [vmem:[%s1 + $0x1d8] sm:$0xff]
        %v1538 = vpack.c.bf16 %v1381, %v1380
        %v1539 = vpack.c.bf16 %v1414, %v1413
        %v1540 = vpack.c.bf16 %v1447, %v1446
        %v1541 = vpack.c.bf16 %v1288, %v1286
        %v1542 = vpack.c.bf16 %v1383, %v1382
        %v1543 = vpack.c.bf16 %v1416, %v1415
        %v1544 = vpack.c.bf16 %v1449, %v1448
        %v1545 = vpack.c.bf16 %v1292, %v1290
        %v1546 = vpack.c.bf16 %v1385, %v1384
        %v1547 = vpack.c.bf16 %v1418, %v1417
        %v1548 = vpack.c.bf16 %v1451, %v1450
        %v1549 = vpack.c.bf16 %v1296, %v1294
        %v1550 = vpack.c.bf16 %v1387, %v1386
        %v1551 = vpack.c.bf16 %v1420, %v1419
        %v1552 = vpack.c.bf16 %v1453, %v1452
        %v1553 = vpack.c.bf16 %v1300, %v1298
        %v1554 = vpack.c.bf16 %v1389, %v1388
        %v1555 = vpack.c.bf16 %v1422, %v1421
        %v1556 = vpack.c.bf16 %v1455, %v1454
        %v1557 = vpack.c.bf16 %v1304, %v1302
        %v1558 = vpack.c.bf16 %v1391, %v1390
        %v1559 = vpack.c.bf16 %v1424, %v1423
        %v1560 = vpack.c.bf16 %v1457, %v1456
        %v1561 = vpack.c.bf16 %v1308, %v1306
        %v1562 = vpack.c.bf16 %v1393, %v1392
        %v1563 = vpack.c.bf16 %v1426, %v1425
        %v1564 = vpack.c.bf16 %v1459, %v1458
        %v1565 = vpack.c.bf16 %v1312, %v1310
        %v1566 = vpack.c.bf16 %v1395, %v1394
        %v1567 = vpack.c.bf16 %v1428, %v1427
        %v1568 = vpack.c.bf16 %v1461, %v1460
        %v1569 = vpack.c.bf16 %v1316, %v1314
        %v1570 = vpack.c.bf16 %v1397, %v1396
        %v1571 = vpack.c.bf16 %v1430, %v1429
        %v1572 = vpack.c.bf16 %v1463, %v1462
        %v1573 = vpack.c.bf16 %v1320, %v1318
        %v1574 = vpack.c.bf16 %v1399, %v1398
        %v1575 = vpack.c.bf16 %v1432, %v1431
        %v1576 = vpack.c.bf16 %v1465, %v1464
        %v1577 = vpack.c.bf16 %v1324, %v1322
        %v1578 = vpack.c.bf16 %v1401, %v1400
        %v1579 = vpack.c.bf16 %v1434, %v1433
        %v1580 = vpack.c.bf16 %v1467, %v1466
        %v1581 = vpack.c.bf16 %v1328, %v1326
        %v1582 = vpack.c.bf16 %v1403, %v1402
        %v1583 = vpack.c.bf16 %v1436, %v1435
        %v1584 = vpack.c.bf16 %v1469, %v1468
        %v1585 = vpack.c.bf16 %v1332, %v1330
        %v1586 = vpack.c.bf16 %v1405, %v1404
        %v1587 = vpack.c.bf16 %v1438, %v1437
        %v1588 = vpack.c.bf16 %v1471, %v1470
        %v1589 = vpack.c.bf16 %v1336, %v1334
        %v1590 = vpack.c.bf16 %v1407, %v1406
        %v1591 = vpack.c.bf16 %v1440, %v1439
        %v1592 = vpack.c.bf16 %v1473, %v1472
        %v1593 = vpack.c.bf16 %v1340, %v1338
        %v1594 = vpack.c.bf16 %v1409, %v1408
        %v1595 = vpack.c.bf16 %v1442, %v1441
        %v1596 = vpack.c.bf16 %v1475, %v1474
        %v1597 = vpack.c.bf16 %v1344, %v1342
        %v1598 = vpack.c.bf16 %v1411, %v1410
        %v1599 = vpack.c.bf16 %v1444, %v1443
        %v1600 = vpack.c.bf16 %v1477, %v1476
        %v1601 = vpack.c.bf16 %v1345, %v1346
        %v1602 = vld [vmem:[%s2] sm:$0x3]
        %v1604 = vlaneseq
        %v1605 = vshrl.u32 %v1604, 7
        %v1606 = vsub.s32 0, %v1605
        %v1607 = vrot.slane %v1602, %v1606
        %v1608 = vlaneseq
        %v1609 = vshrl.u32 %v1608, 7
        %v1610 = vsub.s32 1, %v1609
        %v1611 = vrot.slane %v1602, %v1610
        %v1674 = vunpack.c.l.b16 %v1478
        %v1675 = vunpack.c.h.b16 %v1478
        %v1676 = vunpack.c.l.b16 %v1479
        %v1677 = vunpack.c.h.b16 %v1479
        %v1678 = vunpack.c.l.b16 %v1480
        %v1679 = vunpack.c.h.b16 %v1480
        %v1680 = vunpack.c.l.b16 %v1481
        %v1681 = vunpack.c.h.b16 %v1481
        %v1682 = vunpack.c.l.b16 %v1482
        %v1683 = vunpack.c.h.b16 %v1482
        %v1684 = vunpack.c.l.b16 %v1483
        %v1685 = vunpack.c.h.b16 %v1483
        %v1686 = vunpack.c.l.b16 %v1484
        %v1687 = vunpack.c.h.b16 %v1484
        %v1688 = vunpack.c.l.b16 %v1485
        %v1689 = vunpack.c.h.b16 %v1485
        %v1690 = vunpack.c.l.b16 %v1486
        %v1691 = vunpack.c.h.b16 %v1486
        %v1692 = vunpack.c.l.b16 %v1487
        %v1693 = vunpack.c.h.b16 %v1487
        %v1694 = vunpack.c.l.b16 %v1488
        %v1695 = vunpack.c.h.b16 %v1488
        %v1696 = vunpack.c.l.b16 %v1489
        %v1697 = vunpack.c.h.b16 %v1489
        %v1698 = vunpack.c.l.b16 %v1490
        %v1699 = vunpack.c.h.b16 %v1490
        %v1700 = vunpack.c.l.b16 %v1491
        %v1701 = vunpack.c.h.b16 %v1491
        %v1702 = vunpack.c.l.b16 %v1492
        %v1703 = vunpack.c.h.b16 %v1492
        %v1704 = vunpack.c.l.b16 %v1493
        %v1705 = vunpack.c.h.b16 %v1493
        %v1706 = vunpack.c.l.b16 %v1494
        %v1707 = vunpack.c.h.b16 %v1494
        %v1708 = vunpack.c.l.b16 %v1495
        %v1709 = vunpack.c.h.b16 %v1495
        %v1710 = vunpack.c.l.b16 %v1496
        %v1711 = vunpack.c.h.b16 %v1496
        %v1712 = vunpack.c.l.b16 %v1497
        %v1713 = vunpack.c.h.b16 %v1497
        %v1714 = vunpack.c.l.b16 %v1498
        %v1715 = vunpack.c.h.b16 %v1498
        %v1716 = vunpack.c.l.b16 %v1499
        %v1717 = vunpack.c.h.b16 %v1499
        %v1718 = vunpack.c.l.b16 %v1500
        %v1719 = vunpack.c.h.b16 %v1500
        %v1720 = vunpack.c.l.b16 %v1501
        %v1721 = vunpack.c.h.b16 %v1501
        %v1722 = vunpack.c.l.b16 %v1502
        %v1723 = vunpack.c.h.b16 %v1502
        %v1724 = vunpack.c.l.b16 %v1503
        %v1725 = vunpack.c.h.b16 %v1503
        %v1726 = vunpack.c.l.b16 %v1504
        %v1727 = vunpack.c.h.b16 %v1504
        %v1728 = vunpack.c.l.b16 %v1505
        %v1729 = vunpack.c.h.b16 %v1505
        %v1730 = vunpack.c.l.b16 %v1506
        %v1731 = vunpack.c.h.b16 %v1506
        %v1732 = vunpack.c.l.b16 %v1507
        %v1733 = vunpack.c.h.b16 %v1507
        %v1734 = vunpack.c.l.b16 %v1508
        %v1735 = vunpack.c.h.b16 %v1508
        %v1736 = vunpack.c.l.b16 %v1509
        %v1737 = vunpack.c.h.b16 %v1509
        %v1738 = vunpack.c.l.b16 %v1510
        %v1739 = vunpack.c.h.b16 %v1510
        %v1740 = vunpack.c.l.b16 %v1511
        %v1741 = vunpack.c.h.b16 %v1511
        %v1742 = vunpack.c.l.b16 %v1512
        %v1743 = vunpack.c.h.b16 %v1512
        %v1744 = vunpack.c.l.b16 %v1513
        %v1745 = vunpack.c.h.b16 %v1513
        %v1746 = vunpack.c.l.b16 %v1514
        %v1747 = vunpack.c.h.b16 %v1514
        %v1748 = vunpack.c.l.b16 %v1515
        %v1749 = vunpack.c.h.b16 %v1515
        %v1750 = vunpack.c.l.b16 %v1516
        %v1751 = vunpack.c.h.b16 %v1516
        %v1752 = vunpack.c.l.b16 %v1517
        %v1753 = vunpack.c.h.b16 %v1517
        %v1754 = vunpack.c.l.b16 %v1518
        %v1755 = vunpack.c.h.b16 %v1518
        %v1756 = vunpack.c.l.b16 %v1519
        %v1757 = vunpack.c.h.b16 %v1519
        %v1758 = vunpack.c.l.b16 %v1520
        %v1759 = vunpack.c.h.b16 %v1520
        %v1760 = vunpack.c.l.b16 %v1521
        %v1761 = vunpack.c.h.b16 %v1521
        %v1762 = vunpack.c.l.b16 %v1522
        %v1763 = vunpack.c.h.b16 %v1522
        %v1764 = vunpack.c.l.b16 %v1523
        %v1765 = vunpack.c.h.b16 %v1523
        %v1766 = vunpack.c.l.b16 %v1524
        %v1767 = vunpack.c.h.b16 %v1524
        %v1768 = vunpack.c.l.b16 %v1525
        %v1769 = vunpack.c.h.b16 %v1525
        %v1770 = vunpack.c.l.b16 %v1526
        %v1771 = vunpack.c.h.b16 %v1526
        %v1772 = vunpack.c.l.b16 %v1527
        %v1773 = vunpack.c.h.b16 %v1527
        %v1774 = vunpack.c.l.b16 %v1528
        %v1775 = vunpack.c.h.b16 %v1528
        %v1776 = vunpack.c.l.b16 %v1529
        %v1777 = vunpack.c.h.b16 %v1529
        %v1778 = vunpack.c.l.b16 %v1530
        %v1779 = vunpack.c.h.b16 %v1530
        %v1780 = vunpack.c.l.b16 %v1531
        %v1781 = vunpack.c.h.b16 %v1531
        %v1782 = vunpack.c.l.b16 %v1532
        %v1783 = vunpack.c.h.b16 %v1532
        %v1784 = vunpack.c.l.b16 %v1533
        %v1785 = vunpack.c.h.b16 %v1533
        %v1786 = vunpack.c.l.b16 %v1534
        %v1787 = vunpack.c.h.b16 %v1534
        %v1788 = vunpack.c.l.b16 %v1535
        %v1789 = vunpack.c.h.b16 %v1535
        %v1790 = vunpack.c.l.b16 %v1536
        %v1791 = vunpack.c.h.b16 %v1536
        %v1792 = vunpack.c.l.b16 %v1537
        %v1793 = vunpack.c.h.b16 %v1537
        %v1794 = vpack.c.b16 %v1676, %v1674
        %v1795 = vpack.c.b16 %v1677, %v1675
        %v1796 = vpack.c.b16 %v1680, %v1678
        %v1797 = vpack.c.b16 %v1681, %v1679
        %v1798 = vpack.c.b16 %v1684, %v1682
        %v1799 = vpack.c.b16 %v1685, %v1683
        %v1800 = vpack.c.b16 %v1688, %v1686
        %v1801 = vpack.c.b16 %v1689, %v1687
        %v1802 = vpack.c.b16 %v1692, %v1690
        %v1803 = vpack.c.b16 %v1693, %v1691
        %v1804 = vpack.c.b16 %v1696, %v1694
        %v1805 = vpack.c.b16 %v1697, %v1695
        %v1806 = vpack.c.b16 %v1700, %v1698
        %v1807 = vpack.c.b16 %v1701, %v1699
        %v1808 = vpack.c.b16 %v1704, %v1702
        %v1809 = vpack.c.b16 %v1705, %v1703
        %v1810 = vpack.c.b16 %v1708, %v1706
        %v1811 = vpack.c.b16 %v1709, %v1707
        %v1812 = vpack.c.b16 %v1712, %v1710
        %v1813 = vpack.c.b16 %v1713, %v1711
        %v1814 = vpack.c.b16 %v1716, %v1714
        %v1815 = vpack.c.b16 %v1717, %v1715
        %v1816 = vpack.c.b16 %v1720, %v1718
        %v1817 = vpack.c.b16 %v1721, %v1719
        %v1818 = vpack.c.b16 %v1724, %v1722
        %v1819 = vpack.c.b16 %v1725, %v1723
        %v1820 = vpack.c.b16 %v1728, %v1726
        %v1821 = vpack.c.b16 %v1729, %v1727
        %v1822 = vpack.c.b16 %v1732, %v1730
        %v1823 = vpack.c.b16 %v1733, %v1731
        %v1824 = vpack.c.b16 %v1736, %v1734
        %v1825 = vpack.c.b16 %v1737, %v1735
        %v1826 = vpack.c.b16 %v1740, %v1738
        %v1827 = vpack.c.b16 %v1741, %v1739
        %v1828 = vpack.c.b16 %v1744, %v1742
        %v1829 = vpack.c.b16 %v1745, %v1743
        %v1830 = vpack.c.b16 %v1748, %v1746
        %v1831 = vpack.c.b16 %v1749, %v1747
        %v1832 = vpack.c.b16 %v1752, %v1750
        %v1833 = vpack.c.b16 %v1753, %v1751
        %v1834 = vpack.c.b16 %v1756, %v1754
        %v1835 = vpack.c.b16 %v1757, %v1755
        %v1836 = vpack.c.b16 %v1760, %v1758
        %v1837 = vpack.c.b16 %v1761, %v1759
        %v1838 = vpack.c.b16 %v1764, %v1762
        %v1839 = vpack.c.b16 %v1765, %v1763
        %v1840 = vpack.c.b16 %v1768, %v1766
        %v1841 = vpack.c.b16 %v1769, %v1767
        %v1842 = vpack.c.b16 %v1772, %v1770
        %v1843 = vpack.c.b16 %v1773, %v1771
        %v1844 = vpack.c.b16 %v1776, %v1774
        %v1845 = vpack.c.b16 %v1777, %v1775
        %v1846 = vpack.c.b16 %v1780, %v1778
        %v1847 = vpack.c.b16 %v1781, %v1779
        %v1848 = vpack.c.b16 %v1784, %v1782
        %v1849 = vpack.c.b16 %v1785, %v1783
        %v1850 = vpack.c.b16 %v1788, %v1786
        %v1851 = vpack.c.b16 %v1789, %v1787
        %v1852 = vpack.c.b16 %v1792, %v1790
        %v1853 = vpack.c.b16 %v1793, %v1791
        %v1915 = vsel %vm1379, %v1541, 0
        %v1918 = vsel %vm1379, %v1545, 0
        %v1921 = vsel %vm1379, %v1549, 0
        %v1924 = vsel %vm1379, %v1553, 0
        %v1927 = vsel %vm1379, %v1557, 0
        %v1930 = vsel %vm1379, %v1561, 0
        %v1933 = vsel %vm1379, %v1565, 0
        %v1936 = vsel %vm1379, %v1569, 0
        %v1939 = vsel %vm1379, %v1573, 0
        %v1942 = vsel %vm1379, %v1577, 0
        %v1945 = vsel %vm1379, %v1581, 0
        %v1948 = vsel %vm1379, %v1585, 0
        %v1951 = vsel %vm1379, %v1589, 0
        %v1954 = vsel %vm1379, %v1593, 0
        %v1957 = vsel %vm1379, %v1597, 0
        %v1960 = vsel %vm1379, %v1601, 0
        %1962 = vmatprep.subr.bf16.mxu0 %v1795
        %1963 = vmatpush1.bf16.msra.mxu0 %v1794
        %1964 = vmatprep.subr.bf16.mxu0 %v1797
        %1965 = vmatpush1.bf16.msra.mxu0 %v1796
        %1966 = vmatprep.subr.bf16.mxu0 %v1799
        %1967 = vmatpush1.bf16.msra.mxu0 %v1798
        %1968 = vmatprep.subr.bf16.mxu0 %v1801
        %1969 = vmatpush1.bf16.msra.mxu0 %v1800
        %1970 = vmatprep.subr.bf16.mxu0 %v1803
        %1971 = vmatpush1.bf16.msra.mxu0 %v1802
        %1972 = vmatprep.subr.bf16.mxu0 %v1805
        %1973 = vmatpush1.bf16.msra.mxu0 %v1804
        %1974 = vmatprep.subr.bf16.mxu0 %v1807
        %1975 = vmatpush1.bf16.msra.mxu0 %v1806
        %1976 = vmatprep.subr.bf16.mxu0 %v1809
        %1977 = vmatpush1.bf16.msra.mxu0 %v1808
        %1978 = vmatprep.subr.bf16.mxu0 %v1811
        %1979 = vmatpush1.bf16.msra.mxu0 %v1810
        %1980 = vmatprep.subr.bf16.mxu0 %v1813
        %1981 = vmatpush1.bf16.msra.mxu0 %v1812
        %1982 = vmatprep.subr.bf16.mxu0 %v1815
        %1983 = vmatpush1.bf16.msra.mxu0 %v1814
        %1984 = vmatprep.subr.bf16.mxu0 %v1817
        %1985 = vmatpush1.bf16.msra.mxu0 %v1816
        %1986 = vmatprep.subr.bf16.mxu0 %v1819
        %1987 = vmatpush1.bf16.msra.mxu0 %v1818
        %1988 = vmatprep.subr.bf16.mxu0 %v1821
        %1989 = vmatpush1.bf16.msra.mxu0 %v1820
        %1990 = vmatprep.subr.bf16.mxu0 %v1823
        %1991 = vmatpush1.bf16.msra.mxu0 %v1822
        %1992 = vmatprep.subr.bf16.mxu0 %v1825
        %1993 = vmatpush1.bf16.msra.mxu0 %v1824
        %1994 = vmatprep.mubr.bf16.mxu0 %v1539
        %1995 = vmatmul.mubr.bf16.gmra.mrb[0].mxu0 %v1538
        %v1996 = vpop.f32.mrb[0].mxu0
        %v1997 = vadd.f32 %v1607, %v1996
        %v1998 = vpop.f32.mrb[0].mxu0
        %v1999 = vadd.f32 %v1611, %v1998
        %v2000 = vpop.f32.mrb[0].mxu0
        %v2001 = vadd.f32 %v1607, %v2000
        %v2002 = vpop.f32.mrb[0].mxu0
        %v2003 = vadd.f32 %v1611, %v2002
        %2004 = vmatprep.mubr.bf16.mxu0 %v1543
        %2005 = vmatmul.mubr.bf16.gmra.mrb[0].mxu0 %v1542
        %v2006 = vpop.f32.mrb[0].mxu0
        %v2007 = vadd.f32 %v1607, %v2006
        %v2008 = vpop.f32.mrb[0].mxu0
        %v2009 = vadd.f32 %v1611, %v2008
        %v2010 = vpop.f32.mrb[0].mxu0
        %v2011 = vadd.f32 %v1607, %v2010
        %v2012 = vpop.f32.mrb[0].mxu0
        %v2013 = vadd.f32 %v1611, %v2012
        %2014 = vmatprep.mubr.bf16.mxu0 %v1547
        %2015 = vmatmul.mubr.bf16.gmra.mrb[0].mxu0 %v1546
        %v2016 = vpop.f32.mrb[0].mxu0
        %v2017 = vadd.f32 %v1607, %v2016
        %v2018 = vpop.f32.mrb[0].mxu0
        %v2019 = vadd.f32 %v1611, %v2018
        %v2020 = vpop.f32.mrb[0].mxu0
        %v2021 = vadd.f32 %v1607, %v2020
        %v2022 = vpop.f32.mrb[0].mxu0
        %v2023 = vadd.f32 %v1611, %v2022
        %2024 = vmatprep.mubr.bf16.mxu0 %v1551
        %2025 = vmatmul.mubr.bf16.gmra.mrb[0].mxu0 %v1550
        %v2026 = vpop.f32.mrb[0].mxu0
        %v2027 = vadd.f32 %v1607, %v2026
        %v2028 = vpop.f32.mrb[0].mxu0
        %v2029 = vadd.f32 %v1611, %v2028
        %v2030 = vpop.f32.mrb[0].mxu0
        %v2031 = vadd.f32 %v1607, %v2030
        %v2032 = vpop.f32.mrb[0].mxu0
        %v2033 = vadd.f32 %v1611, %v2032
        %2034 = vmatprep.mubr.bf16.mxu0 %v1555
        %2035 = vmatmul.mubr.bf16.gmra.mrb[0].mxu0 %v1554
        %v2036 = vpop.f32.mrb[0].mxu0
        %v2037 = vadd.f32 %v1607, %v2036
        %v2038 = vpop.f32.mrb[0].mxu0
        %v2039 = vadd.f32 %v1611, %v2038
        %v2040 = vpop.f32.mrb[0].mxu0
        %v2041 = vadd.f32 %v1607, %v2040
        %v2042 = vpop.f32.mrb[0].mxu0
        %v2043 = vadd.f32 %v1611, %v2042
        %2044 = vmatprep.mubr.bf16.mxu0 %v1559
        %2045 = vmatmul.mubr.bf16.gmra.mrb[0].mxu0 %v1558
        %v2046 = vpop.f32.mrb[0].mxu0
        %v2047 = vadd.f32 %v1607, %v2046
        %v2048 = vpop.f32.mrb[0].mxu0
        %v2049 = vadd.f32 %v1611, %v2048
        %v2050 = vpop.f32.mrb[0].mxu0
        %v2051 = vadd.f32 %v1607, %v2050
        %v2052 = vpop.f32.mrb[0].mxu0
        %v2053 = vadd.f32 %v1611, %v2052
        %2054 = vmatprep.mubr.bf16.mxu0 %v1563
        %2055 = vmatmul.mubr.bf16.gmra.mrb[0].mxu0 %v1562
        %v2056 = vpop.f32.mrb[0].mxu0
        %v2057 = vadd.f32 %v1607, %v2056
        %v2058 = vpop.f32.mrb[0].mxu0
        %v2059 = vadd.f32 %v1611, %v2058
        %v2060 = vpop.f32.mrb[0].mxu0
        %v2061 = vadd.f32 %v1607, %v2060
        %v2062 = vpop.f32.mrb[0].mxu0
        %v2063 = vadd.f32 %v1611, %v2062
        %2064 = vmatprep.mubr.bf16.mxu0 %v1567
        %2065 = vmatmul.mubr.bf16.gmra.mrb[0].mxu0 %v1566
        %v2066 = vpop.f32.mrb[0].mxu0
        %v2067 = vadd.f32 %v1607, %v2066
        %v2068 = vpop.f32.mrb[0].mxu0
        %v2069 = vadd.f32 %v1611, %v2068
        %v2070 = vpop.f32.mrb[0].mxu0
        %v2071 = vadd.f32 %v1607, %v2070
        %v2072 = vpop.f32.mrb[0].mxu0
        %v2073 = vadd.f32 %v1611, %v2072
        %2074 = vmatprep.mubr.bf16.mxu0 %v1571
        %2075 = vmatmul.mubr.bf16.gmra.mrb[0].mxu0 %v1570
        %v2076 = vpop.f32.mrb[0].mxu0
        %v2077 = vadd.f32 %v1607, %v2076
        %v2078 = vpop.f32.mrb[0].mxu0
        %v2079 = vadd.f32 %v1611, %v2078
        %v2080 = vpop.f32.mrb[0].mxu0
        %v2081 = vadd.f32 %v1607, %v2080
        %v2082 = vpop.f32.mrb[0].mxu0
        %v2083 = vadd.f32 %v1611, %v2082
        %2084 = vmatprep.mubr.bf16.mxu0 %v1575
        %2085 = vmatmul.mubr.bf16.gmra.mrb[0].mxu0 %v1574
        %v2086 = vpop.f32.mrb[0].mxu0
        %v2087 = vadd.f32 %v1607, %v2086
        %v2088 = vpop.f32.mrb[0].mxu0
        %v2089 = vadd.f32 %v1611, %v2088
        %v2090 = vpop.f32.mrb[0].mxu0
        %v2091 = vadd.f32 %v1607, %v2090
        %v2092 = vpop.f32.mrb[0].mxu0
        %v2093 = vadd.f32 %v1611, %v2092
        %2094 = vmatprep.mubr.bf16.mxu0 %v1579
        %2095 = vmatmul.mubr.bf16.gmra.mrb[0].mxu0 %v1578
        %v2096 = vpop.f32.mrb[0].mxu0
        %v2097 = vadd.f32 %v1607, %v2096
        %v2098 = vpop.f32.mrb[0].mxu0
        %v2099 = vadd.f32 %v1611, %v2098
        %v2100 = vpop.f32.mrb[0].mxu0
        %v2101 = vadd.f32 %v1607, %v2100
        %v2102 = vpop.f32.mrb[0].mxu0
        %v2103 = vadd.f32 %v1611, %v2102
        %2104 = vmatprep.mubr.bf16.mxu0 %v1583
        %2105 = vmatmul.mubr.bf16.gmra.mrb[0].mxu0 %v1582
        %v2106 = vpop.f32.mrb[0].mxu0
        %v2107 = vadd.f32 %v1607, %v2106
        %v2108 = vpop.f32.mrb[0].mxu0
        %v2109 = vadd.f32 %v1611, %v2108
        %v2110 = vpop.f32.mrb[0].mxu0
        %v2111 = vadd.f32 %v1607, %v2110
        %v2112 = vpop.f32.mrb[0].mxu0
        %v2113 = vadd.f32 %v1611, %v2112
        %2114 = vmatprep.mubr.bf16.mxu0 %v1587
        %2115 = vmatmul.mubr.bf16.gmra.mrb[0].mxu0 %v1586
        %v2116 = vpop.f32.mrb[0].mxu0
        %v2117 = vadd.f32 %v1607, %v2116
        %v2118 = vpop.f32.mrb[0].mxu0
        %v2119 = vadd.f32 %v1611, %v2118
        %v2120 = vpop.f32.mrb[0].mxu0
        %v2121 = vadd.f32 %v1607, %v2120
        %v2122 = vpop.f32.mrb[0].mxu0
        %v2123 = vadd.f32 %v1611, %v2122
        %2124 = vmatprep.mubr.bf16.mxu0 %v1591
        %2125 = vmatmul.mubr.bf16.gmra.mrb[0].mxu0 %v1590
        %v2126 = vpop.f32.mrb[0].mxu0
        %v2127 = vadd.f32 %v1607, %v2126
        %v2128 = vpop.f32.mrb[0].mxu0
        %v2129 = vadd.f32 %v1611, %v2128
        %v2130 = vpop.f32.mrb[0].mxu0
        %v2131 = vadd.f32 %v1607, %v2130
        %v2132 = vpop.f32.mrb[0].mxu0
        %v2133 = vadd.f32 %v1611, %v2132
        %2134 = vmatprep.mubr.bf16.mxu0 %v1595
        %2135 = vmatmul.mubr.bf16.gmra.mrb[0].mxu0 %v1594
        %v2136 = vpop.f32.mrb[0].mxu0
        %v2137 = vadd.f32 %v1607, %v2136
        %v2138 = vpop.f32.mrb[0].mxu0
        %v2139 = vadd.f32 %v1611, %v2138
        %v2140 = vpop.f32.mrb[0].mxu0
        %v2141 = vadd.f32 %v1607, %v2140
        %v2142 = vpop.f32.mrb[0].mxu0
        %v2143 = vadd.f32 %v1611, %v2142
        %2144 = vmatprep.mubr.bf16.mxu0 %v1599
        %2145 = vmatmul.mubr.bf16.gmra.mrb[0].mxu0 %v1598
        %v2146 = vpop.f32.mrb[0].mxu0
        %v2147 = vadd.f32 %v1607, %v2146
        %v2148 = vpop.f32.mrb[0].mxu0
        %v2149 = vadd.f32 %v1611, %v2148
        %v2150 = vpop.f32.mrb[0].mxu0
        %v2151 = vadd.f32 %v1607, %v2150
        %v2152 = vpop.f32.mrb[0].mxu0
        %v2153 = vadd.f32 %v1611, %v2152
        %2154 = vdwg.mxu0
        %2155 = vmatprep.subr.bf16.mxu0 %v1827
        %2156 = vmatpush1.bf16.msra.mxu0 %v1826
        %2157 = vmatprep.subr.bf16.mxu0 %v1829
        %2158 = vmatpush1.bf16.msra.mxu0 %v1828
        %2159 = vmatprep.subr.bf16.mxu0 %v1831
        %2160 = vmatpush1.bf16.msra.mxu0 %v1830
        %2161 = vmatprep.subr.bf16.mxu0 %v1833
        %2162 = vmatpush1.bf16.msra.mxu0 %v1832
        %2163 = vmatprep.subr.bf16.mxu0 %v1835
        %2164 = vmatpush1.bf16.msra.mxu0 %v1834
        %2165 = vmatprep.subr.bf16.mxu0 %v1837
        %2166 = vmatpush1.bf16.msra.mxu0 %v1836
        %2167 = vmatprep.subr.bf16.mxu0 %v1839
        %2168 = vmatpush1.bf16.msra.mxu0 %v1838
        %2169 = vmatprep.subr.bf16.mxu0 %v1841
        %2170 = vmatpush1.bf16.msra.mxu0 %v1840
        %2171 = vmatprep.subr.bf16.mxu0 %v1843
        %2172 = vmatpush1.bf16.msra.mxu0 %v1842
        %2173 = vmatprep.subr.bf16.mxu0 %v1845
        %2174 = vmatpush1.bf16.msra.mxu0 %v1844
        %2175 = vmatprep.subr.bf16.mxu0 %v1847
        %2176 = vmatpush1.bf16.msra.mxu0 %v1846
        %2177 = vmatprep.subr.bf16.mxu0 %v1849
        %2178 = vmatpush1.bf16.msra.mxu0 %v1848
        %2179 = vmatprep.subr.bf16.mxu0 %v1851
        %2180 = vmatpush1.bf16.msra.mxu0 %v1850
        %2181 = vmatprep.subr.bf16.mxu0 %v1853
        %2182 = vmatpush1.bf16.msra.mxu0 %v1852
        %2183 = vmatprep.subr.bf16.mxu0 0
        %2184 = vmatpush1.bf16.msra.mxu0 0
        %2185 = vmatprep.subr.bf16.mxu0 0
        %2186 = vmatpush1.bf16.msra.mxu0 0
        %2187 = vmatprep.mubr.bf16.mxu0 %v1915
        %2188 = vmatmul.mubr.bf16.gmra.mrb[0].mxu0 %v1540
        %v2189 = vpop.f32.mrb[0].mxu0
        %v2190 = vadd.f32 %v1997, %v2189
        %v2191 = vpop.f32.mrb[0].mxu0
        %v2192 = vadd.f32 %v1999, %v2191
        %v2193 = vpop.f32.mrb[0].mxu0
        %v2194 = vadd.f32 %v2001, %v2193
        %v2195 = vpop.f32.mrb[0].mxu0
        %v2196 = vadd.f32 %v2003, %v2195
        %2197 = vmatprep.mubr.bf16.mxu0 %v1918
        %2198 = vmatmul.mubr.bf16.gmra.mrb[0].mxu0 %v1544
        %v2199 = vpop.f32.mrb[0].mxu0
        %v2200 = vadd.f32 %v2007, %v2199
        %v2201 = vpop.f32.mrb[0].mxu0
        %v2202 = vadd.f32 %v2009, %v2201
        %v2203 = vpop.f32.mrb[0].mxu0
        %v2204 = vadd.f32 %v2011, %v2203
        %v2205 = vpop.f32.mrb[0].mxu0
        %v2206 = vadd.f32 %v2013, %v2205
        %2207 = vmatprep.mubr.bf16.mxu0 %v1921
        %2208 = vmatmul.mubr.bf16.gmra.mrb[0].mxu0 %v1548
        %v2209 = vpop.f32.mrb[0].mxu0
        %v2210 = vadd.f32 %v2017, %v2209
        %v2211 = vpop.f32.mrb[0].mxu0
        %v2212 = vadd.f32 %v2019, %v2211
        %v2213 = vpop.f32.mrb[0].mxu0
        %v2214 = vadd.f32 %v2021, %v2213
        %v2215 = vpop.f32.mrb[0].mxu0
        %v2216 = vadd.f32 %v2023, %v2215
        %2217 = vmatprep.mubr.bf16.mxu0 %v1924
        %2218 = vmatmul.mubr.bf16.gmra.mrb[0].mxu0 %v1552
        %v2219 = vpop.f32.mrb[0].mxu0
        %v2220 = vadd.f32 %v2027, %v2219
        %v2221 = vpop.f32.mrb[0].mxu0
        %v2222 = vadd.f32 %v2029, %v2221
        %v2223 = vpop.f32.mrb[0].mxu0
        %v2224 = vadd.f32 %v2031, %v2223
        %v2225 = vpop.f32.mrb[0].mxu0
        %v2226 = vadd.f32 %v2033, %v2225
        %2227 = vmatprep.mubr.bf16.mxu0 %v1927
        %2228 = vmatmul.mubr.bf16.gmra.mrb[0].mxu0 %v1556
        %v2229 = vpop.f32.mrb[0].mxu0
        %v2230 = vadd.f32 %v2037, %v2229
        %v2231 = vpop.f32.mrb[0].mxu0
        %v2232 = vadd.f32 %v2039, %v2231
        %v2233 = vpop.f32.mrb[0].mxu0
        %v2234 = vadd.f32 %v2041, %v2233
        %v2235 = vpop.f32.mrb[0].mxu0
        %v2236 = vadd.f32 %v2043, %v2235
        %2237 = vmatprep.mubr.bf16.mxu0 %v1930
        %2238 = vmatmul.mubr.bf16.gmra.mrb[0].mxu0 %v1560
        %v2239 = vpop.f32.mrb[0].mxu0
        %v2240 = vadd.f32 %v2047, %v2239
        %v2241 = vpop.f32.mrb[0].mxu0
        %v2242 = vadd.f32 %v2049, %v2241
        %v2243 = vpop.f32.mrb[0].mxu0
        %v2244 = vadd.f32 %v2051, %v2243
        %v2245 = vpop.f32.mrb[0].mxu0
        %v2246 = vadd.f32 %v2053, %v2245
        %2247 = vmatprep.mubr.bf16.mxu0 %v1933
        %2248 = vmatmul.mubr.bf16.gmra.mrb[0].mxu0 %v1564
        %v2249 = vpop.f32.mrb[0].mxu0
        %v2250 = vadd.f32 %v2057, %v2249
        %v2251 = vpop.f32.mrb[0].mxu0
        %v2252 = vadd.f32 %v2059, %v2251
        %v2253 = vpop.f32.mrb[0].mxu0
        %v2254 = vadd.f32 %v2061, %v2253
        %v2255 = vpop.f32.mrb[0].mxu0
        %v2256 = vadd.f32 %v2063, %v2255
        %2257 = vmatprep.mubr.bf16.mxu0 %v1936
        %2258 = vmatmul.mubr.bf16.gmra.mrb[0].mxu0 %v1568
        %v2259 = vpop.f32.mrb[0].mxu0
        %v2260 = vadd.f32 %v2067, %v2259
        %v2261 = vpop.f32.mrb[0].mxu0
        %v2262 = vadd.f32 %v2069, %v2261
        %v2263 = vpop.f32.mrb[0].mxu0
        %v2264 = vadd.f32 %v2071, %v2263
        %v2265 = vpop.f32.mrb[0].mxu0
        %v2266 = vadd.f32 %v2073, %v2265
        %2267 = vmatprep.mubr.bf16.mxu0 %v1939
        %2268 = vmatmul.mubr.bf16.gmra.mrb[0].mxu0 %v1572
        %v2269 = vpop.f32.mrb[0].mxu0
        %v2270 = vadd.f32 %v2077, %v2269
        %v2271 = vpop.f32.mrb[0].mxu0
        %v2272 = vadd.f32 %v2079, %v2271
        %v2273 = vpop.f32.mrb[0].mxu0
        %v2274 = vadd.f32 %v2081, %v2273
        %v2275 = vpop.f32.mrb[0].mxu0
        %v2276 = vadd.f32 %v2083, %v2275
        %2277 = vmatprep.mubr.bf16.mxu0 %v1942
        %2278 = vmatmul.mubr.bf16.gmra.mrb[0].mxu0 %v1576
        %v2279 = vpop.f32.mrb[0].mxu0
        %v2280 = vadd.f32 %v2087, %v2279
        %v2281 = vpop.f32.mrb[0].mxu0
        %v2282 = vadd.f32 %v2089, %v2281
        %v2283 = vpop.f32.mrb[0].mxu0
        %v2284 = vadd.f32 %v2091, %v2283
        %v2285 = vpop.f32.mrb[0].mxu0
        %v2286 = vadd.f32 %v2093, %v2285
        %2287 = vmatprep.mubr.bf16.mxu0 %v1945
        %2288 = vmatmul.mubr.bf16.gmra.mrb[0].mxu0 %v1580
        %v2289 = vpop.f32.mrb[0].mxu0
        %v2290 = vadd.f32 %v2097, %v2289
        %v2291 = vpop.f32.mrb[0].mxu0
        %v2292 = vadd.f32 %v2099, %v2291
        %v2293 = vpop.f32.mrb[0].mxu0
        %v2294 = vadd.f32 %v2101, %v2293
        %v2295 = vpop.f32.mrb[0].mxu0
        %v2296 = vadd.f32 %v2103, %v2295
        %2297 = vmatprep.mubr.bf16.mxu0 %v1948
        %2298 = vmatmul.mubr.bf16.gmra.mrb[0].mxu0 %v1584
        %v2299 = vpop.f32.mrb[0].mxu0
        %v2300 = vadd.f32 %v2107, %v2299
        %v2301 = vpop.f32.mrb[0].mxu0
        %v2302 = vadd.f32 %v2109, %v2301
        %v2303 = vpop.f32.mrb[0].mxu0
        %v2304 = vadd.f32 %v2111, %v2303
        %v2305 = vpop.f32.mrb[0].mxu0
        %v2306 = vadd.f32 %v2113, %v2305
        %2307 = vmatprep.mubr.bf16.mxu0 %v1951
        %2308 = vmatmul.mubr.bf16.gmra.mrb[0].mxu0 %v1588
        %v2309 = vpop.f32.mrb[0].mxu0
        %v2310 = vadd.f32 %v2117, %v2309
        %v2311 = vpop.f32.mrb[0].mxu0
        %v2312 = vadd.f32 %v2119, %v2311
        %v2313 = vpop.f32.mrb[0].mxu0
        %v2314 = vadd.f32 %v2121, %v2313
        %v2315 = vpop.f32.mrb[0].mxu0
        %v2316 = vadd.f32 %v2123, %v2315
        %2317 = vmatprep.mubr.bf16.mxu0 %v1954
        %2318 = vmatmul.mubr.bf16.gmra.mrb[0].mxu0 %v1592
        %v2319 = vpop.f32.mrb[0].mxu0
        %v2320 = vadd.f32 %v2127, %v2319
        %v2321 = vpop.f32.mrb[0].mxu0
        %v2322 = vadd.f32 %v2129, %v2321
        %v2323 = vpop.f32.mrb[0].mxu0
        %v2324 = vadd.f32 %v2131, %v2323
        %v2325 = vpop.f32.mrb[0].mxu0
        %v2326 = vadd.f32 %v2133, %v2325
        %2327 = vmatprep.mubr.bf16.mxu0 %v1957
        %2328 = vmatmul.mubr.bf16.gmra.mrb[0].mxu0 %v1596
        %v2329 = vpop.f32.mrb[0].mxu0
        %v2330 = vadd.f32 %v2137, %v2329
        %v2331 = vpop.f32.mrb[0].mxu0
        %v2332 = vadd.f32 %v2139, %v2331
        %v2333 = vpop.f32.mrb[0].mxu0
        %v2334 = vadd.f32 %v2141, %v2333
        %v2335 = vpop.f32.mrb[0].mxu0
        %v2336 = vadd.f32 %v2143, %v2335
        %2337 = vmatprep.mubr.bf16.mxu0 %v1960
        %2338 = vmatmul.mubr.bf16.gmra.mrb[0].mxu0 %v1600
        %v2339 = vpop.f32.mrb[0].mxu0
        %v2340 = vadd.f32 %v2147, %v2339
        %v2341 = vpop.f32.mrb[0].mxu0
        %v2342 = vadd.f32 %v2149, %v2341
        %v2343 = vpop.f32.mrb[0].mxu0
        %v2344 = vadd.f32 %v2151, %v2343
        %v2345 = vpop.f32.mrb[0].mxu0
        %v2346 = vadd.f32 %v2153, %v2345
        %2347 = vdwg.mxu0
        %v2348 = vmax.f32 %v2190, 0.0
        %v2349 = vmax.f32 %v2192, 0.0
        %v2350 = vmax.f32 %v2194, 0.0
        %v2351 = vmax.f32 %v2196, 0.0
        %v2352 = vmax.f32 %v2200, 0.0
        %v2353 = vmax.f32 %v2202, 0.0
        %v2354 = vmax.f32 %v2204, 0.0
        %v2355 = vmax.f32 %v2206, 0.0
        %v2356 = vmax.f32 %v2210, 0.0
        %v2357 = vmax.f32 %v2212, 0.0
        %v2358 = vmax.f32 %v2214, 0.0
        %v2359 = vmax.f32 %v2216, 0.0
        %v2360 = vmax.f32 %v2220, 0.0
        %v2361 = vmax.f32 %v2222, 0.0
        %v2362 = vmax.f32 %v2224, 0.0
        %v2363 = vmax.f32 %v2226, 0.0
        %v2364 = vmax.f32 %v2230, 0.0
        %v2365 = vmax.f32 %v2232, 0.0
        %v2366 = vmax.f32 %v2234, 0.0
        %v2367 = vmax.f32 %v2236, 0.0
        %v2368 = vmax.f32 %v2240, 0.0
        %v2369 = vmax.f32 %v2242, 0.0
        %v2370 = vmax.f32 %v2244, 0.0
        %v2371 = vmax.f32 %v2246, 0.0
        %v2372 = vmax.f32 %v2250, 0.0
        %v2373 = vmax.f32 %v2252, 0.0
        %v2374 = vmax.f32 %v2254, 0.0
        %v2375 = vmax.f32 %v2256, 0.0
        %v2376 = vmax.f32 %v2260, 0.0
        %v2377 = vmax.f32 %v2262, 0.0
        %v2378 = vmax.f32 %v2264, 0.0
        %v2379 = vmax.f32 %v2266, 0.0
        %v2380 = vmax.f32 %v2270, 0.0
        %v2381 = vmax.f32 %v2272, 0.0
        %v2382 = vmax.f32 %v2274, 0.0
        %v2383 = vmax.f32 %v2276, 0.0
        %v2384 = vmax.f32 %v2280, 0.0
        %v2385 = vmax.f32 %v2282, 0.0
        %v2386 = vmax.f32 %v2284, 0.0
        %v2387 = vmax.f32 %v2286, 0.0
        %v2388 = vmax.f32 %v2290, 0.0
        %v2389 = vmax.f32 %v2292, 0.0
        %v2390 = vmax.f32 %v2294, 0.0
        %v2391 = vmax.f32 %v2296, 0.0
        %v2392 = vmax.f32 %v2300, 0.0
        %v2393 = vmax.f32 %v2302, 0.0
        %v2394 = vmax.f32 %v2304, 0.0
        %v2395 = vmax.f32 %v2306, 0.0
        %v2396 = vmax.f32 %v2310, 0.0
        %v2397 = vmax.f32 %v2312, 0.0
        %v2398 = vmax.f32 %v2314, 0.0
        %v2399 = vmax.f32 %v2316, 0.0
        %v2400 = vmax.f32 %v2320, 0.0
        %v2401 = vmax.f32 %v2322, 0.0
        %v2402 = vmax.f32 %v2324, 0.0
        %v2403 = vmax.f32 %v2326, 0.0
        %v2404 = vmax.f32 %v2330, 0.0
        %v2405 = vmax.f32 %v2332, 0.0
        %v2406 = vmax.f32 %v2334, 0.0
        %v2407 = vmax.f32 %v2336, 0.0
        %v2408 = vmax.f32 %v2340, 0.0
        %v2409 = vmax.f32 %v2342, 0.0
        %v2410 = vmax.f32 %v2344, 0.0
        %v2411 = vmax.f32 %v2346, 0.0
        %v2412 = vpack.c.bf16 %v2350, %v2348
        %v2413 = vpack.c.bf16 %v2351, %v2349
        %v2414 = vpack.c.bf16 %v2354, %v2352
        %v2415 = vpack.c.bf16 %v2355, %v2353
        %v2416 = vpack.c.bf16 %v2358, %v2356
        %v2417 = vpack.c.bf16 %v2359, %v2357
        %v2418 = vpack.c.bf16 %v2362, %v2360
        %v2419 = vpack.c.bf16 %v2363, %v2361
        %v2420 = vpack.c.bf16 %v2366, %v2364
        %v2421 = vpack.c.bf16 %v2367, %v2365
        %v2422 = vpack.c.bf16 %v2370, %v2368
        %v2423 = vpack.c.bf16 %v2371, %v2369
        %v2424 = vpack.c.bf16 %v2374, %v2372
        %v2425 = vpack.c.bf16 %v2375, %v2373
        %v2426 = vpack.c.bf16 %v2378, %v2376
        %v2427 = vpack.c.bf16 %v2379, %v2377
        %v2428 = vpack.c.bf16 %v2382, %v2380
        %v2429 = vpack.c.bf16 %v2383, %v2381
        %v2430 = vpack.c.bf16 %v2386, %v2384
        %v2431 = vpack.c.bf16 %v2387, %v2385
        %v2432 = vpack.c.bf16 %v2390, %v2388
        %v2433 = vpack.c.bf16 %v2391, %v2389
        %v2434 = vpack.c.bf16 %v2394, %v2392
        %v2435 = vpack.c.bf16 %v2395, %v2393
        %v2436 = vpack.c.bf16 %v2398, %v2396
        %v2437 = vpack.c.bf16 %v2399, %v2397
        %v2438 = vpack.c.bf16 %v2402, %v2400
        %v2439 = vpack.c.bf16 %v2403, %v2401
        %v2440 = vpack.c.bf16 %v2406, %v2404
        %v2441 = vpack.c.bf16 %v2407, %v2405
        %v2442 = vpack.c.bf16 %v2410, %v2408
        %v2443 = vpack.c.bf16 %v2411, %v2409
        %v2444 = vld [vmem:[%s9] sm:$0xff]
        %v2445 = vld [vmem:[%s9 + $0x8] sm:$0xff]
        %v2446 = vld [vmem:[%s9 + $0x10] sm:$0xff]
        %v2447 = vld [vmem:[%s9 + $0x18] sm:$0xff]
        %v2448 = vld [vmem:[%s9 + $0x20] sm:$0xff]
        %v2449 = vld [vmem:[%s9 + $0x28] sm:$0xff]
        %v2450 = vld [vmem:[%s9 + $0x30] sm:$0xff]
        %v2451 = vld [vmem:[%s9 + $0x38] sm:$0xff]
        %v2452 = vld [vmem:[%s9 + $0x40] sm:$0xff]
        %v2453 = vld [vmem:[%s9 + $0x48] sm:$0xff]
        %v2454 = vld [vmem:[%s9 + $0x50] sm:$0xff]
        %v2455 = vld [vmem:[%s9 + $0x58] sm:$0xff]
        %v2456 = vld [vmem:[%s9 + $0x60] sm:$0xff]
        %v2457 = vld [vmem:[%s9 + $0x68] sm:$0xff]
        %v2458 = vld [vmem:[%s9 + $0x70] sm:$0xff]
        %v2459 = vld [vmem:[%s9 + $0x78] sm:$0xff]
        %v2476 = vunpack.c.l.b16 %v2444
        %v2477 = vunpack.c.h.b16 %v2444
        %v2478 = vunpack.c.l.b16 %v2445
        %v2479 = vunpack.c.h.b16 %v2445
        %v2480 = vunpack.c.l.b16 %v2446
        %v2481 = vunpack.c.h.b16 %v2446
        %v2482 = vunpack.c.l.b16 %v2447
        %v2483 = vunpack.c.h.b16 %v2447
        %v2484 = vunpack.c.l.b16 %v2448
        %v2485 = vunpack.c.h.b16 %v2448
        %v2486 = vunpack.c.l.b16 %v2449
        %v2487 = vunpack.c.h.b16 %v2449
        %v2488 = vunpack.c.l.b16 %v2450
        %v2489 = vunpack.c.h.b16 %v2450
        %v2490 = vunpack.c.l.b16 %v2451
        %v2491 = vunpack.c.h.b16 %v2451
        %v2492 = vunpack.c.l.b16 %v2452
        %v2493 = vunpack.c.h.b16 %v2452
        %v2494 = vunpack.c.l.b16 %v2453
        %v2495 = vunpack.c.h.b16 %v2453
        %v2496 = vunpack.c.l.b16 %v2454
        %v2497 = vunpack.c.h.b16 %v2454
        %v2498 = vunpack.c.l.b16 %v2455
        %v2499 = vunpack.c.h.b16 %v2455
        %v2500 = vunpack.c.l.b16 %v2456
        %v2501 = vunpack.c.h.b16 %v2456
        %v2502 = vunpack.c.l.b16 %v2457
        %v2503 = vunpack.c.h.b16 %v2457
        %v2504 = vunpack.c.l.b16 %v2458
        %v2505 = vunpack.c.h.b16 %v2458
        %v2506 = vunpack.c.l.b16 %v2459
        %v2507 = vunpack.c.h.b16 %v2459
        %v2508 = vpack.c.b16 %v2478, %v2476
        %v2509 = vpack.c.b16 %v2479, %v2477
        %v2510 = vpack.c.b16 %v2482, %v2480
        %v2511 = vpack.c.b16 %v2483, %v2481
        %v2512 = vpack.c.b16 %v2486, %v2484
        %v2513 = vpack.c.b16 %v2487, %v2485
        %v2514 = vpack.c.b16 %v2490, %v2488
        %v2515 = vpack.c.b16 %v2491, %v2489
        %v2516 = vpack.c.b16 %v2494, %v2492
        %v2517 = vpack.c.b16 %v2495, %v2493
        %v2518 = vpack.c.b16 %v2498, %v2496
        %v2519 = vpack.c.b16 %v2499, %v2497
        %v2520 = vpack.c.b16 %v2502, %v2500
        %v2521 = vpack.c.b16 %v2503, %v2501
        %v2522 = vpack.c.b16 %v2506, %v2504
        %v2523 = vpack.c.b16 %v2507, %v2505
        %vm2532 = vcmask 1014784
        %v2534 = vsel %vm2532, %v2509, 0
        %v2537 = vsel %vm2532, %v2511, 0
        %v2540 = vsel %vm2532, %v2513, 0
        %v2543 = vsel %vm2532, %v2515, 0
        %v2546 = vsel %vm2532, %v2517, 0
        %v2549 = vsel %vm2532, %v2519, 0
        %v2552 = vsel %vm2532, %v2521, 0
        %v2555 = vsel %vm2532, %v2523, 0
        %v2558 = vsel %vm963, %v2442, 0
        %v2561 = vsel %vm963, %v2443, 0
        %2563 = vmatprep.subr.bf16.mxu0 %v2413
        %2564 = vmatpush1.bf16.msra.mxu0 %v2412
        %2565 = vmatprep.subr.bf16.mxu0 %v2415
        %2566 = vmatpush1.bf16.msra.mxu0 %v2414
        %2567 = vmatprep.subr.bf16.mxu0 %v2417
        %2568 = vmatpush1.bf16.msra.mxu0 %v2416
        %2569 = vmatprep.subr.bf16.mxu0 %v2419
        %2570 = vmatpush1.bf16.msra.mxu0 %v2418
        %2571 = vmatprep.subr.bf16.mxu0 %v2421
        %2572 = vmatpush1.bf16.msra.mxu0 %v2420
        %2573 = vmatprep.subr.bf16.mxu0 %v2423
        %2574 = vmatpush1.bf16.msra.mxu0 %v2422
        %2575 = vmatprep.subr.bf16.mxu0 %v2425
        %2576 = vmatpush1.bf16.msra.mxu0 %v2424
        %2577 = vmatprep.subr.bf16.mxu0 %v2427
        %2578 = vmatpush1.bf16.msra.mxu0 %v2426
        %2579 = vmatprep.subr.bf16.mxu0 %v2429
        %2580 = vmatpush1.bf16.msra.mxu0 %v2428
        %2581 = vmatprep.subr.bf16.mxu0 %v2431
        %2582 = vmatpush1.bf16.msra.mxu0 %v2430
        %2583 = vmatprep.subr.bf16.mxu0 %v2433
        %2584 = vmatpush1.bf16.msra.mxu0 %v2432
        %2585 = vmatprep.subr.bf16.mxu0 %v2435
        %2586 = vmatpush1.bf16.msra.mxu0 %v2434
        %2587 = vmatprep.subr.bf16.mxu0 %v2437
        %2588 = vmatpush1.bf16.msra.mxu0 %v2436
        %2589 = vmatprep.subr.bf16.mxu0 %v2439
        %2590 = vmatpush1.bf16.msra.mxu0 %v2438
        %2591 = vmatprep.subr.bf16.mxu0 %v2441
        %2592 = vmatpush1.bf16.msra.mxu0 %v2440
        %2593 = vmatprep.subr.bf16.mxu0 %v2561
        %2594 = vmatpush1.bf16.msra.mxu0 %v2558
        %2595 = vmatprep.mubr.bf16.mxu0 %v2534
        %2596 = vmatmul.mubr.bf16.gmra.mrb[0].mxu0 %v2508
        %v2597 = vpop.f32.mrb[0].mxu0
        %v2598 = vadd.f32 0.0, %v2597
        %v2599 = vpop.f32.mrb[0].mxu0
        %v2600 = vadd.f32 0.0, %v2599
        %v2601 = vpop.f32.mrb[0].mxu0
        %v2602 = vadd.f32 0.0, %v2601
        %v2603 = vpop.f32.mrb[0].mxu0
        %v2604 = vadd.f32 0.0, %v2603
        %2605 = vmatprep.mubr.bf16.mxu0 %v2537
        %2606 = vmatmul.mubr.bf16.gmra.mrb[0].mxu0 %v2510
        %v2607 = vpop.f32.mrb[0].mxu0
        %v2608 = vadd.f32 0.0, %v2607
        %v2609 = vpop.f32.mrb[0].mxu0
        %v2610 = vadd.f32 0.0, %v2609
        %v2611 = vpop.f32.mrb[0].mxu0
        %v2612 = vadd.f32 0.0, %v2611
        %v2613 = vpop.f32.mrb[0].mxu0
        %v2614 = vadd.f32 0.0, %v2613
        %2615 = vmatprep.mubr.bf16.mxu0 %v2540
        %2616 = vmatmul.mubr.bf16.gmra.mrb[0].mxu0 %v2512
        %v2617 = vpop.f32.mrb[0].mxu0
        %v2618 = vadd.f32 0.0, %v2617
        %v2619 = vpop.f32.mrb[0].mxu0
        %v2620 = vadd.f32 0.0, %v2619
        %v2621 = vpop.f32.mrb[0].mxu0
        %v2622 = vadd.f32 0.0, %v2621
        %v2623 = vpop.f32.mrb[0].mxu0
        %v2624 = vadd.f32 0.0, %v2623
        %2625 = vmatprep.mubr.bf16.mxu0 %v2543
        %2626 = vmatmul.mubr.bf16.gmra.mrb[0].mxu0 %v2514
        %v2627 = vpop.f32.mrb[0].mxu0
        %v2628 = vadd.f32 0.0, %v2627
        %v2629 = vpop.f32.mrb[0].mxu0
        %v2630 = vadd.f32 0.0, %v2629
        %v2631 = vpop.f32.mrb[0].mxu0
        %v2632 = vadd.f32 0.0, %v2631
        %v2633 = vpop.f32.mrb[0].mxu0
        %v2634 = vadd.f32 0.0, %v2633
        %2635 = vmatprep.mubr.bf16.mxu0 %v2546
        %2636 = vmatmul.mubr.bf16.gmra.mrb[0].mxu0 %v2516
        %v2637 = vpop.f32.mrb[0].mxu0
        %v2638 = vadd.f32 0.0, %v2637
        %v2639 = vpop.f32.mrb[0].mxu0
        %v2640 = vadd.f32 0.0, %v2639
        %v2641 = vpop.f32.mrb[0].mxu0
        %v2642 = vadd.f32 0.0, %v2641
        %v2643 = vpop.f32.mrb[0].mxu0
        %v2644 = vadd.f32 0.0, %v2643
        %2645 = vmatprep.mubr.bf16.mxu0 %v2549
        %2646 = vmatmul.mubr.bf16.gmra.mrb[0].mxu0 %v2518
        %v2647 = vpop.f32.mrb[0].mxu0
        %v2648 = vadd.f32 0.0, %v2647
        %v2649 = vpop.f32.mrb[0].mxu0
        %v2650 = vadd.f32 0.0, %v2649
        %v2651 = vpop.f32.mrb[0].mxu0
        %v2652 = vadd.f32 0.0, %v2651
        %v2653 = vpop.f32.mrb[0].mxu0
        %v2654 = vadd.f32 0.0, %v2653
        %2655 = vmatprep.mubr.bf16.mxu0 %v2552
        %2656 = vmatmul.mubr.bf16.gmra.mrb[0].mxu0 %v2520
        %v2657 = vpop.f32.mrb[0].mxu0
        %v2658 = vadd.f32 0.0, %v2657
        %v2659 = vpop.f32.mrb[0].mxu0
        %v2660 = vadd.f32 0.0, %v2659
        %v2661 = vpop.f32.mrb[0].mxu0
        %v2662 = vadd.f32 0.0, %v2661
        %v2663 = vpop.f32.mrb[0].mxu0
        %v2664 = vadd.f32 0.0, %v2663
        %2665 = vmatprep.mubr.bf16.mxu0 %v2555
        %2666 = vmatmul.mubr.bf16.gmra.mrb[0].mxu0 %v2522
        %v2667 = vpop.f32.mrb[0].mxu0
        %v2668 = vadd.f32 0.0, %v2667
        %v2669 = vpop.f32.mrb[0].mxu0
        %v2670 = vadd.f32 0.0, %v2669
        %v2671 = vpop.f32.mrb[0].mxu0
        %v2672 = vadd.f32 0.0, %v2671
        %v2673 = vpop.f32.mrb[0].mxu0
        %v2674 = vadd.f32 0.0, %v2673
        %2675 = vdwg.mxu0
        %v2676 = vld [vmem:[%s10] sm:$0xff]
        %v2677 = vld [vmem:[%s10 + $0x8] sm:$0xff]
        %v2678 = vld [vmem:[%s10 + $0x10] sm:$0xff]
        %v2679 = vld [vmem:[%s10 + $0x18] sm:$0xff]
        %v2680 = vld [vmem:[%s10 + $0x20] sm:$0xff]
        %v2681 = vld [vmem:[%s10 + $0x28] sm:$0xff]
        %v2682 = vld [vmem:[%s10 + $0x30] sm:$0xff]
        %v2683 = vld [vmem:[%s10 + $0x38] sm:$0xff]
        %v2684 = vld [vmem:[%s10 + $0x40] sm:$0xff]
        %v2685 = vld [vmem:[%s10 + $0x48] sm:$0xff]
        %v2686 = vld [vmem:[%s10 + $0x50] sm:$0xff]
        %v2687 = vld [vmem:[%s10 + $0x58] sm:$0xff]
        %v2688 = vld [vmem:[%s10 + $0x60] sm:$0xff]
        %v2689 = vld [vmem:[%s10 + $0x68] sm:$0xff]
        %v2690 = vld [vmem:[%s10 + $0x70] sm:$0xff]
        %v2691 = vld [vmem:[%s10 + $0x78] sm:$0xff]
        %v2708 = vunpack.c.l.b16 %v2676
        %v2709 = vunpack.c.h.b16 %v2676
        %v2710 = vunpack.c.l.b16 %v2677
        %v2711 = vunpack.c.h.b16 %v2677
        %v2712 = vunpack.c.l.b16 %v2678
        %v2713 = vunpack.c.h.b16 %v2678
        %v2714 = vunpack.c.l.b16 %v2679
        %v2715 = vunpack.c.h.b16 %v2679
        %v2716 = vunpack.c.l.b16 %v2680
        %v2717 = vunpack.c.h.b16 %v2680
        %v2718 = vunpack.c.l.b16 %v2681
        %v2719 = vunpack.c.h.b16 %v2681
        %v2720 = vunpack.c.l.b16 %v2682
        %v2721 = vunpack.c.h.b16 %v2682
        %v2722 = vunpack.c.l.b16 %v2683
        %v2723 = vunpack.c.h.b16 %v2683
        %v2724 = vunpack.c.l.b16 %v2684
        %v2725 = vunpack.c.h.b16 %v2684
        %v2726 = vunpack.c.l.b16 %v2685
        %v2727 = vunpack.c.h.b16 %v2685
        %v2728 = vunpack.c.l.b16 %v2686
        %v2729 = vunpack.c.h.b16 %v2686
        %v2730 = vunpack.c.l.b16 %v2687
        %v2731 = vunpack.c.h.b16 %v2687
        %v2732 = vunpack.c.l.b16 %v2688
        %v2733 = vunpack.c.h.b16 %v2688
        %v2734 = vunpack.c.l.b16 %v2689
        %v2735 = vunpack.c.h.b16 %v2689
        %v2736 = vunpack.c.l.b16 %v2690
        %v2737 = vunpack.c.h.b16 %v2690
        %v2738 = vunpack.c.l.b16 %v2691
        %v2739 = vunpack.c.h.b16 %v2691
        %v2740 = vpack.c.b16 %v2710, %v2708
        %v2741 = vpack.c.b16 %v2711, %v2709
        %v2742 = vpack.c.b16 %v2714, %v2712
        %v2743 = vpack.c.b16 %v2715, %v2713
        %v2744 = vpack.c.b16 %v2718, %v2716
        %v2745 = vpack.c.b16 %v2719, %v2717
        %v2746 = vpack.c.b16 %v2722, %v2720
        %v2747 = vpack.c.b16 %v2723, %v2721
        %v2748 = vpack.c.b16 %v2726, %v2724
        %v2749 = vpack.c.b16 %v2727, %v2725
        %v2750 = vpack.c.b16 %v2730, %v2728
        %v2751 = vpack.c.b16 %v2731, %v2729
        %v2752 = vpack.c.b16 %v2734, %v2732
        %v2753 = vpack.c.b16 %v2735, %v2733
        %v2754 = vpack.c.b16 %v2738, %v2736
        %v2755 = vpack.c.b16 %v2739, %v2737
        %v2765 = vsel %vm2532, %v2741, 0
        %v2768 = vsel %vm2532, %v2743, 0
        %v2771 = vsel %vm2532, %v2745, 0
        %v2774 = vsel %vm2532, %v2747, 0
        %v2777 = vsel %vm2532, %v2749, 0
        %v2780 = vsel %vm2532, %v2751, 0
        %v2783 = vsel %vm2532, %v2753, 0
        %v2786 = vsel %vm2532, %v2755, 0
        %2788 = vmatprep.subr.bf16.mxu0 %v2413
        %2789 = vmatpush1.bf16.msra.mxu0 %v2412
        %2790 = vmatprep.subr.bf16.mxu0 %v2415
        %2791 = vmatpush1.bf16.msra.mxu0 %v2414
        %2792 = vmatprep.subr.bf16.mxu0 %v2417
        %2793 = vmatpush1.bf16.msra.mxu0 %v2416
        %2794 = vmatprep.subr.bf16.mxu0 %v2419
        %2795 = vmatpush1.bf16.msra.mxu0 %v2418
        %2796 = vmatprep.subr.bf16.mxu0 %v2421
        %2797 = vmatpush1.bf16.msra.mxu0 %v2420
        %2798 = vmatprep.subr.bf16.mxu0 %v2423
        %2799 = vmatpush1.bf16.msra.mxu0 %v2422
        %2800 = vmatprep.subr.bf16.mxu0 %v2425
        %2801 = vmatpush1.bf16.msra.mxu0 %v2424
        %2802 = vmatprep.subr.bf16.mxu0 %v2427
        %2803 = vmatpush1.bf16.msra.mxu0 %v2426
        %2804 = vmatprep.subr.bf16.mxu0 %v2429
        %2805 = vmatpush1.bf16.msra.mxu0 %v2428
        %2806 = vmatprep.subr.bf16.mxu0 %v2431
        %2807 = vmatpush1.bf16.msra.mxu0 %v2430
        %2808 = vmatprep.subr.bf16.mxu0 %v2433
        %2809 = vmatpush1.bf16.msra.mxu0 %v2432
        %2810 = vmatprep.subr.bf16.mxu0 %v2435
        %2811 = vmatpush1.bf16.msra.mxu0 %v2434
        %2812 = vmatprep.subr.bf16.mxu0 %v2437
        %2813 = vmatpush1.bf16.msra.mxu0 %v2436
        %2814 = vmatprep.subr.bf16.mxu0 %v2439
        %2815 = vmatpush1.bf16.msra.mxu0 %v2438
        %2816 = vmatprep.subr.bf16.mxu0 %v2441
        %2817 = vmatpush1.bf16.msra.mxu0 %v2440
        %2818 = vmatprep.subr.bf16.mxu0 %v2561
        %2819 = vmatpush1.bf16.msra.mxu0 %v2558
        %2820 = vmatprep.mubr.bf16.mxu0 %v2765
        %2821 = vmatmul.mubr.bf16.gmra.mrb[0].mxu0 %v2740
        %v2822 = vpop.f32.mrb[0].mxu0
        %v2823 = vadd.f32 0.0, %v2822
        %v2824 = vpop.f32.mrb[0].mxu0
        %v2825 = vadd.f32 0.0, %v2824
        %v2826 = vpop.f32.mrb[0].mxu0
        %v2827 = vadd.f32 0.0, %v2826
        %v2828 = vpop.f32.mrb[0].mxu0
        %v2829 = vadd.f32 0.0, %v2828
        %2830 = vmatprep.mubr.bf16.mxu0 %v2768
        %2831 = vmatmul.mubr.bf16.gmra.mrb[0].mxu0 %v2742
        %v2832 = vpop.f32.mrb[0].mxu0
        %v2833 = vadd.f32 0.0, %v2832
        %v2834 = vpop.f32.mrb[0].mxu0
        %v2835 = vadd.f32 0.0, %v2834
        %v2836 = vpop.f32.mrb[0].mxu0
        %v2837 = vadd.f32 0.0, %v2836
        %v2838 = vpop.f32.mrb[0].mxu0
        %v2839 = vadd.f32 0.0, %v2838
        %2840 = vmatprep.mubr.bf16.mxu0 %v2771
        %2841 = vmatmul.mubr.bf16.gmra.mrb[0].mxu0 %v2744
        %v2842 = vpop.f32.mrb[0].mxu0
        %v2843 = vadd.f32 0.0, %v2842
        %v2844 = vpop.f32.mrb[0].mxu0
        %v2845 = vadd.f32 0.0, %v2844
        %v2846 = vpop.f32.mrb[0].mxu0
        %v2847 = vadd.f32 0.0, %v2846
        %v2848 = vpop.f32.mrb[0].mxu0
        %v2849 = vadd.f32 0.0, %v2848
        %2850 = vmatprep.mubr.bf16.mxu0 %v2774
        %2851 = vmatmul.mubr.bf16.gmra.mrb[0].mxu0 %v2746
        %v2852 = vpop.f32.mrb[0].mxu0
        %v2853 = vadd.f32 0.0, %v2852
        %v2854 = vpop.f32.mrb[0].mxu0
        %v2855 = vadd.f32 0.0, %v2854
        %v2856 = vpop.f32.mrb[0].mxu0
        %v2857 = vadd.f32 0.0, %v2856
        %v2858 = vpop.f32.mrb[0].mxu0
        %v2859 = vadd.f32 0.0, %v2858
        %2860 = vmatprep.mubr.bf16.mxu0 %v2777
        %2861 = vmatmul.mubr.bf16.gmra.mrb[0].mxu0 %v2748
        %v2862 = vpop.f32.mrb[0].mxu0
        %v2863 = vadd.f32 0.0, %v2862
        %v2864 = vpop.f32.mrb[0].mxu0
        %v2865 = vadd.f32 0.0, %v2864
        %v2866 = vpop.f32.mrb[0].mxu0
        %v2867 = vadd.f32 0.0, %v2866
        %v2868 = vpop.f32.mrb[0].mxu0
        %v2869 = vadd.f32 0.0, %v2868
        %2870 = vmatprep.mubr.bf16.mxu0 %v2780
        %2871 = vmatmul.mubr.bf16.gmra.mrb[0].mxu0 %v2750
        %v2872 = vpop.f32.mrb[0].mxu0
        %v2873 = vadd.f32 0.0, %v2872
        %v2874 = vpop.f32.mrb[0].mxu0
        %v2875 = vadd.f32 0.0, %v2874
        %v2876 = vpop.f32.mrb[0].mxu0
        %v2877 = vadd.f32 0.0, %v2876
        %v2878 = vpop.f32.mrb[0].mxu0
        %v2879 = vadd.f32 0.0, %v2878
        %2880 = vmatprep.mubr.bf16.mxu0 %v2783
        %2881 = vmatmul.mubr.bf16.gmra.mrb[0].mxu0 %v2752
        %v2882 = vpop.f32.mrb[0].mxu0
        %v2883 = vadd.f32 0.0, %v2882
        %v2884 = vpop.f32.mrb[0].mxu0
        %v2885 = vadd.f32 0.0, %v2884
        %v2886 = vpop.f32.mrb[0].mxu0
        %v2887 = vadd.f32 0.0, %v2886
        %v2888 = vpop.f32.mrb[0].mxu0
        %v2889 = vadd.f32 0.0, %v2888
        %2890 = vmatprep.mubr.bf16.mxu0 %v2786
        %2891 = vmatmul.mubr.bf16.gmra.mrb[0].mxu0 %v2754
        %v2892 = vpop.f32.mrb[0].mxu0
        %v2893 = vadd.f32 0.0, %v2892
        %v2894 = vpop.f32.mrb[0].mxu0
        %v2895 = vadd.f32 0.0, %v2894
        %v2896 = vpop.f32.mrb[0].mxu0
        %v2897 = vadd.f32 0.0, %v2896
        %v2898 = vpop.f32.mrb[0].mxu0
        %v2899 = vadd.f32 0.0, %v2898
        %2900 = vdwg.mxu0
        %v2901 = vmax.f32 %v2598, %v2823
        %v2902 = vmax.f32 %v2600, %v2825
        %v2903 = vmax.f32 %v2602, %v2827
        %v2904 = vmax.f32 %v2604, %v2829
        %v2905 = vmax.f32 %v2608, %v2833
        %v2906 = vmax.f32 %v2610, %v2835
        %v2907 = vmax.f32 %v2612, %v2837
        %v2908 = vmax.f32 %v2614, %v2839
        %v2909 = vmax.f32 %v2618, %v2843
        %v2910 = vmax.f32 %v2620, %v2845
        %v2911 = vmax.f32 %v2622, %v2847
        %v2912 = vmax.f32 %v2624, %v2849
        %v2913 = vmax.f32 %v2628, %v2853
        %v2914 = vmax.f32 %v2630, %v2855
        %v2915 = vmax.f32 %v2632, %v2857
        %v2916 = vmax.f32 %v2634, %v2859
        %v2917 = vmax.f32 %v2638, %v2863
        %v2918 = vmax.f32 %v2640, %v2865
        %v2919 = vmax.f32 %v2642, %v2867
        %v2920 = vmax.f32 %v2644, %v2869
        %v2921 = vmax.f32 %v2648, %v2873
        %v2922 = vmax.f32 %v2650, %v2875
        %v2923 = vmax.f32 %v2652, %v2877
        %v2924 = vmax.f32 %v2654, %v2879
        %v2925 = vmax.f32 %v2658, %v2883
        %v2926 = vmax.f32 %v2660, %v2885
        %v2927 = vmax.f32 %v2662, %v2887
        %v2928 = vmax.f32 %v2664, %v2889
        %v2929 = vmax.f32 %v2668, %v2893
        %v2930 = vmax.f32 %v2670, %v2895
        %v2931 = vmax.f32 %v2672, %v2897
        %v2932 = vmax.f32 %v2674, %v2899
        %v2933 = vld [vmem:[%s11] sm:$0xf]
        %v2934 = vld [vmem:[%s11 + $0x4] sm:$0xf]
        %v2935 = vld [vmem:[%s11 + $0x8] sm:$0xf]
        %v2936 = vld [vmem:[%s11 + $0xc] sm:$0xf]
        %v2937 = vld [vmem:[%s11 + $0x10] sm:$0xf]
        %v2938 = vld [vmem:[%s11 + $0x14] sm:$0xf]
        %v2939 = vld [vmem:[%s11 + $0x18] sm:$0xf]
        %v2940 = vld [vmem:[%s11 + $0x1c] sm:$0xf]
        %v2941 = vld [vmem:[%s11 + $0x20] sm:$0xf]
        %v2942 = vld [vmem:[%s11 + $0x24] sm:$0xf]
        %v2943 = vld [vmem:[%s11 + $0x28] sm:$0xf]
        %v2944 = vld [vmem:[%s11 + $0x2c] sm:$0xf]
        %v2945 = vld [vmem:[%s11 + $0x30] sm:$0xf]
        %v2946 = vld [vmem:[%s11 + $0x34] sm:$0xf]
        %v2947 = vld [vmem:[%s11 + $0x38] sm:$0xf]
        %v2948 = vld [vmem:[%s11 + $0x3c] sm:$0xf]
        %v2949 = vld [vmem:[%s11 + $0x40] sm:$0xf]
        %v2950 = vld [vmem:[%s11 + $0x44] sm:$0xf]
        %v2951 = vld [vmem:[%s11 + $0x48] sm:$0xf]
        %v2952 = vld [vmem:[%s11 + $0x4c] sm:$0xf]
        %v2953 = vld [vmem:[%s11 + $0x50] sm:$0xf]
        %v2954 = vpack.c.bf16 %v2903, %v2901
        %v2955 = vpack.c.bf16 %v2904, %v2902
        %v2956 = vpack.c.bf16 %v2907, %v2905
        %v2957 = vpack.c.bf16 %v2908, %v2906
        %v2958 = vpack.c.bf16 %v2911, %v2909
        %v2959 = vpack.c.bf16 %v2912, %v2910
        %v2960 = vpack.c.bf16 %v2915, %v2913
        %v2961 = vpack.c.bf16 %v2916, %v2914
        %v2962 = vpack.c.bf16 %v2919, %v2917
        %v2963 = vpack.c.bf16 %v2920, %v2918
        %v2964 = vpack.c.bf16 %v2923, %v2921
        %v2965 = vpack.c.bf16 %v2924, %v2922
        %v2966 = vpack.c.bf16 %v2927, %v2925
        %v2967 = vpack.c.bf16 %v2928, %v2926
        %v2968 = vpack.c.bf16 %v2931, %v2929
        %v2969 = vpack.c.bf16 %v2932, %v2930
        %v2991 = vunpack.c.l.b16 %v2933
        %v2992 = vunpack.c.l.b16 %v2934
        %v2993 = vunpack.c.l.b16 %v2935
        %v2994 = vunpack.c.l.b16 %v2936
        %v2995 = vunpack.c.l.b16 %v2937
        %v2996 = vunpack.c.l.b16 %v2938
        %v2997 = vunpack.c.l.b16 %v2939
        %v2998 = vunpack.c.l.b16 %v2940
        %v2999 = vunpack.c.l.b16 %v2941
        %v3000 = vunpack.c.l.b16 %v2942
        %v3001 = vunpack.c.l.b16 %v2943
        %v3002 = vunpack.c.l.b16 %v2944
        %v3003 = vunpack.c.l.b16 %v2945
        %v3004 = vunpack.c.l.b16 %v2946
        %v3005 = vunpack.c.l.b16 %v2947
        %v3006 = vunpack.c.l.b16 %v2948
        %v3007 = vunpack.c.l.b16 %v2949
        %v3008 = vunpack.c.l.b16 %v2950
        %v3009 = vunpack.c.l.b16 %v2951
        %v3010 = vunpack.c.l.b16 %v2952
        %v3011 = vunpack.c.l.b16 %v2953
        %v3012 = vpack.c.b16 %v2992, %v2991
        %v3013 = vpack.c.b16 %v2994, %v2993
        %v3014 = vpack.c.b16 %v2996, %v2995
        %v3015 = vpack.c.b16 %v2998, %v2997
        %v3016 = vpack.c.b16 %v3000, %v2999
        %v3017 = vpack.c.b16 %v3002, %v3001
        %v3018 = vpack.c.b16 %v3004, %v3003
        %v3019 = vpack.c.b16 %v3006, %v3005
        %v3020 = vpack.c.b16 %v3008, %v3007
        %v3021 = vpack.c.b16 %v3010, %v3009
        %v3022 = vpack.c.b16 %v3011, %v3011
        %vm3033 = vcmask 326656
        %v3035 = vsel %vm3033, %v2955, 0
        %v3038 = vsel %vm3033, %v2957, 0
        %v3041 = vsel %vm3033, %v2959, 0
        %v3044 = vsel %vm3033, %v2961, 0
        %v3047 = vsel %vm3033, %v2963, 0
        %v3050 = vsel %vm3033, %v2965, 0
        %v3053 = vsel %vm3033, %v2967, 0
        %v3056 = vsel %vm3033, %v2969, 0
        %v3059 = vsel %vm1283, %v3022, 0
        %3061 = vmatprep.subr.bf16.mxu0 0
        %3062 = vmatpush1.bf16.msra.mxu0 %v3012
        %3063 = vmatprep.subr.bf16.mxu0 0
        %3064 = vmatpush1.bf16.msra.mxu0 %v3013
        %3065 = vmatprep.subr.bf16.mxu0 0
        %3066 = vmatpush1.bf16.msra.mxu0 %v3014
        %3067 = vmatprep.subr.bf16.mxu0 0
        %3068 = vmatpush1.bf16.msra.mxu0 %v3015
        %3069 = vmatprep.subr.bf16.mxu0 0
        %3070 = vmatpush1.bf16.msra.mxu0 %v3016
        %3071 = vmatprep.subr.bf16.mxu0 0
        %3072 = vmatpush1.bf16.msra.mxu0 %v3017
        %3073 = vmatprep.subr.bf16.mxu0 0
        %3074 = vmatpush1.bf16.msra.mxu0 %v3018
        %3075 = vmatprep.subr.bf16.mxu0 0
        %3076 = vmatpush1.bf16.msra.mxu0 %v3019
        %3077 = vmatprep.subr.bf16.mxu0 0
        %3078 = vmatpush1.bf16.msra.mxu0 %v3020
        %3079 = vmatprep.subr.bf16.mxu0 0
        %3080 = vmatpush1.bf16.msra.mxu0 %v3021
        %3081 = vmatprep.subr.bf16.mxu0 0
        %3082 = vmatpush1.bf16.msra.mxu0 %v3059
        %3083 = vmatprep.subr.bf16.mxu0 0
        %3084 = vmatpush1.bf16.msra.mxu0 0
        %3085 = vmatprep.subr.bf16.mxu0 0
        %3086 = vmatpush1.bf16.msra.mxu0 0
        %3087 = vmatprep.subr.bf16.mxu0 0
        %3088 = vmatpush1.bf16.msra.mxu0 0
        %3089 = vmatprep.subr.bf16.mxu0 0
        %3090 = vmatpush1.bf16.msra.mxu0 0
        %3091 = vmatprep.subr.bf16.mxu0 0
        %3092 = vmatpush1.bf16.msra.mxu0 0
        %3093 = vmatprep.mubr.bf16.mxu0 %v3035
        %3094 = vmatmul.mubr.bf16.gmra.mrb[0].mxu0 %v2954
        %v3095 = vpop.f32.mrb[0].mxu0
        %v3096 = vadd.f32 0.0, %v3095
        %v3097 = vpop.f32.mrb[0].mxu0
        %v3098 = vpop.f32.mrb[0].mxu0
        %v3099 = vadd.f32 0.0, %v3098
        %v3100 = vpop.f32.mrb[0].mxu0
        %3101 = vmatprep.mubr.bf16.mxu0 %v3038
        %3102 = vmatmul.mubr.bf16.gmra.mrb[0].mxu0 %v2956
        %v3103 = vpop.f32.mrb[0].mxu0
        %v3104 = vadd.f32 0.0, %v3103
        %v3105 = vpop.f32.mrb[0].mxu0
        %v3106 = vpop.f32.mrb[0].mxu0
        %v3107 = vadd.f32 0.0, %v3106
        %v3108 = vpop.f32.mrb[0].mxu0
        %3109 = vmatprep.mubr.bf16.mxu0 %v3041
        %3110 = vmatmul.mubr.bf16.gmra.mrb[0].mxu0 %v2958
        %v3111 = vpop.f32.mrb[0].mxu0
        %v3112 = vadd.f32 0.0, %v3111
        %v3113 = vpop.f32.mrb[0].mxu0
        %v3114 = vpop.f32.mrb[0].mxu0
        %v3115 = vadd.f32 0.0, %v3114
        %v3116 = vpop.f32.mrb[0].mxu0
        %3117 = vmatprep.mubr.bf16.mxu0 %v3044
        %3118 = vmatmul.mubr.bf16.gmra.mrb[0].mxu0 %v2960
        %v3119 = vpop.f32.mrb[0].mxu0
        %v3120 = vadd.f32 0.0, %v3119
        %v3121 = vpop.f32.mrb[0].mxu0
        %v3122 = vpop.f32.mrb[0].mxu0
        %v3123 = vadd.f32 0.0, %v3122
        %v3124 = vpop.f32.mrb[0].mxu0
        %3125 = vmatprep.mubr.bf16.mxu0 %v3047
        %3126 = vmatmul.mubr.bf16.gmra.mrb[0].mxu0 %v2962
        %v3127 = vpop.f32.mrb[0].mxu0
        %v3128 = vadd.f32 0.0, %v3127
        %v3129 = vpop.f32.mrb[0].mxu0
        %v3130 = vpop.f32.mrb[0].mxu0
        %v3131 = vadd.f32 0.0, %v3130
        %v3132 = vpop.f32.mrb[0].mxu0
        %3133 = vmatprep.mubr.bf16.mxu0 %v3050
        %3134 = vmatmul.mubr.bf16.gmra.mrb[0].mxu0 %v2964
        %v3135 = vpop.f32.mrb[0].mxu0
        %v3136 = vadd.f32 0.0, %v3135
        %v3137 = vpop.f32.mrb[0].mxu0
        %v3138 = vpop.f32.mrb[0].mxu0
        %v3139 = vadd.f32 0.0, %v3138
        %v3140 = vpop.f32.mrb[0].mxu0
        %3141 = vmatprep.mubr.bf16.mxu0 %v3053
        %3142 = vmatmul.mubr.bf16.gmra.mrb[0].mxu0 %v2966
        %v3143 = vpop.f32.mrb[0].mxu0
        %v3144 = vadd.f32 0.0, %v3143
        %v3145 = vpop.f32.mrb[0].mxu0
        %v3146 = vpop.f32.mrb[0].mxu0
        %v3147 = vadd.f32 0.0, %v3146
        %v3148 = vpop.f32.mrb[0].mxu0
        %3149 = vmatprep.mubr.bf16.mxu0 %v3056
        %3150 = vmatmul.mubr.bf16.gmra.mrb[0].mxu0 %v2968
        %v3151 = vpop.f32.mrb[0].mxu0
        %v3152 = vadd.f32 0.0, %v3151
        %v3153 = vpop.f32.mrb[0].mxu0
        %v3154 = vpop.f32.mrb[0].mxu0
        %v3155 = vadd.f32 0.0, %v3154
        %v3156 = vpop.f32.mrb[0].mxu0
        %3157 = vdwg.mxu0
        %v3158 = vld [vmem:[%s12] sm:$0xf]
        %v3159 = vld [vmem:[%s12 + $0x4] sm:$0xf]
        %v3160 = vld [vmem:[%s12 + $0x8] sm:$0xf]
        %v3161 = vld [vmem:[%s12 + $0xc] sm:$0xf]
        %v3162 = vld [vmem:[%s12 + $0x10] sm:$0xf]
        %v3163 = vld [vmem:[%s12 + $0x14] sm:$0xf]
        %v3164 = vld [vmem:[%s12 + $0x18] sm:$0xf]
        %v3165 = vld [vmem:[%s12 + $0x1c] sm:$0xf]
        %v3166 = vld [vmem:[%s12 + $0x20] sm:$0xf]
        %v3167 = vld [vmem:[%s12 + $0x24] sm:$0xf]
        %v3168 = vld [vmem:[%s12 + $0x28] sm:$0xf]
        %v3169 = vld [vmem:[%s12 + $0x2c] sm:$0xf]
        %v3170 = vld [vmem:[%s12 + $0x30] sm:$0xf]
        %v3171 = vld [vmem:[%s12 + $0x34] sm:$0xf]
        %v3172 = vld [vmem:[%s12 + $0x38] sm:$0xf]
        %v3173 = vld [vmem:[%s12 + $0x3c] sm:$0xf]
        %v3174 = vld [vmem:[%s12 + $0x40] sm:$0xf]
        %v3175 = vld [vmem:[%s12 + $0x44] sm:$0xf]
        %v3176 = vld [vmem:[%s12 + $0x48] sm:$0xf]
        %v3177 = vld [vmem:[%s12 + $0x4c] sm:$0xf]
        %v3178 = vld [vmem:[%s12 + $0x50] sm:$0xf]
        %v3200 = vunpack.c.l.b16 %v3158
        %v3201 = vunpack.c.l.b16 %v3159
        %v3202 = vunpack.c.l.b16 %v3160
        %v3203 = vunpack.c.l.b16 %v3161
        %v3204 = vunpack.c.l.b16 %v3162
        %v3205 = vunpack.c.l.b16 %v3163
        %v3206 = vunpack.c.l.b16 %v3164
        %v3207 = vunpack.c.l.b16 %v3165
        %v3208 = vunpack.c.l.b16 %v3166
        %v3209 = vunpack.c.l.b16 %v3167
        %v3210 = vunpack.c.l.b16 %v3168
        %v3211 = vunpack.c.l.b16 %v3169
        %v3212 = vunpack.c.l.b16 %v3170
        %v3213 = vunpack.c.l.b16 %v3171
        %v3214 = vunpack.c.l.b16 %v3172
        %v3215 = vunpack.c.l.b16 %v3173
        %v3216 = vunpack.c.l.b16 %v3174
        %v3217 = vunpack.c.l.b16 %v3175
        %v3218 = vunpack.c.l.b16 %v3176
        %v3219 = vunpack.c.l.b16 %v3177
        %v3220 = vunpack.c.l.b16 %v3178
        %v3221 = vpack.c.b16 %v3201, %v3200
        %v3222 = vpack.c.b16 %v3203, %v3202
        %v3223 = vpack.c.b16 %v3205, %v3204
        %v3224 = vpack.c.b16 %v3207, %v3206
        %v3225 = vpack.c.b16 %v3209, %v3208
        %v3226 = vpack.c.b16 %v3211, %v3210
        %v3227 = vpack.c.b16 %v3213, %v3212
        %v3228 = vpack.c.b16 %v3215, %v3214
        %v3229 = vpack.c.b16 %v3217, %v3216
        %v3230 = vpack.c.b16 %v3219, %v3218
        %v3231 = vpack.c.b16 %v3220, %v3220
        %v3243 = vsel %vm1283, %v3231, 0
        %3245 = vmatprep.subr.bf16.mxu0 0
        %3246 = vmatpush1.bf16.msra.mxu0 %v3221
        %3247 = vmatprep.subr.bf16.mxu0 0
        %3248 = vmatpush1.bf16.msra.mxu0 %v3222
        %3249 = vmatprep.subr.bf16.mxu0 0
        %3250 = vmatpush1.bf16.msra.mxu0 %v3223
        %3251 = vmatprep.subr.bf16.mxu0 0
        %3252 = vmatpush1.bf16.msra.mxu0 %v3224
        %3253 = vmatprep.subr.bf16.mxu0 0
        %3254 = vmatpush1.bf16.msra.mxu0 %v3225
        %3255 = vmatprep.subr.bf16.mxu0 0
        %3256 = vmatpush1.bf16.msra.mxu0 %v3226
        %3257 = vmatprep.subr.bf16.mxu0 0
        %3258 = vmatpush1.bf16.msra.mxu0 %v3227
        %3259 = vmatprep.subr.bf16.mxu0 0
        %3260 = vmatpush1.bf16.msra.mxu0 %v3228
        %3261 = vmatprep.subr.bf16.mxu0 0
        %3262 = vmatpush1.bf16.msra.mxu0 %v3229
        %3263 = vmatprep.subr.bf16.mxu0 0
        %3264 = vmatpush1.bf16.msra.mxu0 %v3230
        %3265 = vmatprep.subr.bf16.mxu0 0
        %3266 = vmatpush1.bf16.msra.mxu0 %v3243
        %3267 = vmatprep.subr.bf16.mxu0 0
        %3268 = vmatpush1.bf16.msra.mxu0 0
        %3269 = vmatprep.subr.bf16.mxu0 0
        %3270 = vmatpush1.bf16.msra.mxu0 0
        %3271 = vmatprep.subr.bf16.mxu0 0
        %3272 = vmatpush1.bf16.msra.mxu0 0
        %3273 = vmatprep.subr.bf16.mxu0 0
        %3274 = vmatpush1.bf16.msra.mxu0 0
        %3275 = vmatprep.subr.bf16.mxu0 0
        %3276 = vmatpush1.bf16.msra.mxu0 0
        %3277 = vmatprep.mubr.bf16.mxu0 %v3035
        %3278 = vmatmul.mubr.bf16.gmra.mrb[0].mxu0 %v2954
        %v3279 = vpop.f32.mrb[0].mxu0
        %v3280 = vadd.f32 0.0, %v3279
        %v3281 = vpop.f32.mrb[0].mxu0
        %v3282 = vpop.f32.mrb[0].mxu0
        %v3283 = vadd.f32 0.0, %v3282
        %v3284 = vpop.f32.mrb[0].mxu0
        %3285 = vmatprep.mubr.bf16.mxu0 %v3038
        %3286 = vmatmul.mubr.bf16.gmra.mrb[0].mxu0 %v2956
        %v3287 = vpop.f32.mrb[0].mxu0
        %v3288 = vadd.f32 0.0, %v3287
        %v3289 = vpop.f32.mrb[0].mxu0
        %v3290 = vpop.f32.mrb[0].mxu0
        %v3291 = vadd.f32 0.0, %v3290
        %v3292 = vpop.f32.mrb[0].mxu0
        %3293 = vmatprep.mubr.bf16.mxu0 %v3041
        %3294 = vmatmul.mubr.bf16.gmra.mrb[0].mxu0 %v2958
        %v3295 = vpop.f32.mrb[0].mxu0
        %v3296 = vadd.f32 0.0, %v3295
        %v3297 = vpop.f32.mrb[0].mxu0
        %v3298 = vpop.f32.mrb[0].mxu0
        %v3299 = vadd.f32 0.0, %v3298
        %v3300 = vpop.f32.mrb[0].mxu0
        %3301 = vmatprep.mubr.bf16.mxu0 %v3044
        %3302 = vmatmul.mubr.bf16.gmra.mrb[0].mxu0 %v2960
        %v3303 = vpop.f32.mrb[0].mxu0
        %v3304 = vadd.f32 0.0, %v3303
        %v3305 = vpop.f32.mrb[0].mxu0
        %v3306 = vpop.f32.mrb[0].mxu0
        %v3307 = vadd.f32 0.0, %v3306
        %v3308 = vpop.f32.mrb[0].mxu0
        %3309 = vmatprep.mubr.bf16.mxu0 %v3047
        %3310 = vmatmul.mubr.bf16.gmra.mrb[0].mxu0 %v2962
        %v3311 = vpop.f32.mrb[0].mxu0
        %v3312 = vadd.f32 0.0, %v3311
        %v3313 = vpop.f32.mrb[0].mxu0
        %v3314 = vpop.f32.mrb[0].mxu0
        %v3315 = vadd.f32 0.0, %v3314
        %v3316 = vpop.f32.mrb[0].mxu0
        %3317 = vmatprep.mubr.bf16.mxu0 %v3050
        %3318 = vmatmul.mubr.bf16.gmra.mrb[0].mxu0 %v2964
        %v3319 = vpop.f32.mrb[0].mxu0
        %v3320 = vadd.f32 0.0, %v3319
        %v3321 = vpop.f32.mrb[0].mxu0
        %v3322 = vpop.f32.mrb[0].mxu0
        %v3323 = vadd.f32 0.0, %v3322
        %v3324 = vpop.f32.mrb[0].mxu0
        %3325 = vmatprep.mubr.bf16.mxu0 %v3053
        %3326 = vmatmul.mubr.bf16.gmra.mrb[0].mxu0 %v2966
        %v3327 = vpop.f32.mrb[0].mxu0
        %v3328 = vadd.f32 0.0, %v3327
        %v3329 = vpop.f32.mrb[0].mxu0
        %v3330 = vpop.f32.mrb[0].mxu0
        %v3331 = vadd.f32 0.0, %v3330
        %v3332 = vpop.f32.mrb[0].mxu0
        %3333 = vmatprep.mubr.bf16.mxu0 %v3056
        %3334 = vmatmul.mubr.bf16.gmra.mrb[0].mxu0 %v2968
        %v3335 = vpop.f32.mrb[0].mxu0
        %v3336 = vadd.f32 0.0, %v3335
        %v3337 = vpop.f32.mrb[0].mxu0
        %v3338 = vpop.f32.mrb[0].mxu0
        %v3339 = vadd.f32 0.0, %v3338
        %v3340 = vpop.f32.mrb[0].mxu0
        %3341 = vdwg.mxu0
        %v3342 = vmax.f32 %v3096, %v3280
        %v3343 = vmax.f32 %v3099, %v3283
        %v3344 = vmax.f32 %v3104, %v3288
        %v3345 = vmax.f32 %v3107, %v3291
        %v3346 = vmax.f32 %v3112, %v3296
        %v3347 = vmax.f32 %v3115, %v3299
        %v3348 = vmax.f32 %v3120, %v3304
        %v3349 = vmax.f32 %v3123, %v3307
        %v3350 = vmax.f32 %v3128, %v3312
        %v3351 = vmax.f32 %v3131, %v3315
        %v3352 = vmax.f32 %v3136, %v3320
        %v3353 = vmax.f32 %v3139, %v3323
        %v3354 = vmax.f32 %v3144, %v3328
        %v3355 = vmax.f32 %v3147, %v3331
        %v3356 = vmax.f32 %v3152, %v3336
        %v3357 = vmax.f32 %v3155, %v3339
        %v3374 = vrot.slane %v3342, 1
        %v3375 = vrot.slane %v3343, 1
        %v3376 = vsel %vm803, %v3374, %v3375
        %v3377 = vrot.slane %v3344, 1
        %v3378 = vsel %vm803, %v3375, %v3377
        %v3379 = vrot.slane %v3345, 1
        %v3380 = vsel %vm803, %v3377, %v3379
        %v3381 = vrot.slane %v3346, 1
        %v3382 = vsel %vm803, %v3379, %v3381
        %v3383 = vrot.slane %v3347, 1
        %v3384 = vsel %vm803, %v3381, %v3383
        %v3385 = vrot.slane %v3348, 1
        %v3386 = vsel %vm803, %v3383, %v3385
        %v3387 = vrot.slane %v3349, 1
        %v3388 = vsel %vm803, %v3385, %v3387
        %v3389 = vrot.slane %v3350, 1
        %v3390 = vsel %vm803, %v3387, %v3389
        %v3391 = vrot.slane %v3351, 1
        %v3392 = vsel %vm803, %v3389, %v3391
        %v3393 = vrot.slane %v3352, 1
        %v3394 = vsel %vm803, %v3391, %v3393
        %v3395 = vrot.slane %v3353, 1
        %v3396 = vsel %vm803, %v3393, %v3395
        %v3397 = vrot.slane %v3354, 1
        %v3398 = vsel %vm803, %v3395, %v3397
        %v3399 = vrot.slane %v3355, 1
        %v3400 = vsel %vm803, %v3397, %v3399
        %v3401 = vrot.slane %v3356, 1
        %v3402 = vsel %vm803, %v3399, %v3401
        %v3403 = vrot.slane %v3357, 1
        %v3404 = vsel %vm803, %v3401, %v3403
        %3405 = vrot.lane.b32.xlu0 %v3376, 84
        %v3406 = vpop.permute.xlu0 %3405
        %3407 = vrot.lane.b32.xlu0 %v3378, 84
        %v3408 = vpop.permute.xlu0 %3407
        %3409 = vrot.lane.b32.xlu0 %v3380, 84
        %v3410 = vpop.permute.xlu0 %3409
        %3411 = vrot.lane.b32.xlu0 %v3382, 84
        %v3412 = vpop.permute.xlu0 %3411
        %3413 = vrot.lane.b32.xlu0 %v3384, 84
        %v3414 = vpop.permute.xlu0 %3413
        %3415 = vrot.lane.b32.xlu0 %v3386, 84
        %v3416 = vpop.permute.xlu0 %3415
        %3417 = vrot.lane.b32.xlu0 %v3388, 84
        %v3418 = vpop.permute.xlu0 %3417
        %3419 = vrot.lane.b32.xlu0 %v3390, 84
        %v3420 = vpop.permute.xlu0 %3419
        %3421 = vrot.lane.b32.xlu0 %v3392, 84
        %v3422 = vpop.permute.xlu0 %3421
        %3423 = vrot.lane.b32.xlu0 %v3394, 84
        %v3424 = vpop.permute.xlu0 %3423
        %3425 = vrot.lane.b32.xlu0 %v3396, 84
        %v3426 = vpop.permute.xlu0 %3425
        %3427 = vrot.lane.b32.xlu0 %v3398, 84
        %v3428 = vpop.permute.xlu0 %3427
        %3429 = vrot.lane.b32.xlu0 %v3400, 84
        %v3430 = vpop.permute.xlu0 %3429
        %3431 = vrot.lane.b32.xlu0 %v3402, 84
        %v3432 = vpop.permute.xlu0 %3431
        %3433 = vrot.lane.b32.xlu0 %v3404, 84
        %v3434 = vpop.permute.xlu0 %3433
        %3435 = vrot.lane.b32.xlu0 %v3403, 84
        %v3436 = vpop.permute.xlu0 %3435
        %v3453 = vrot.slane %v3342, 2
        %v3454 = vrot.slane %v3343, 2
        %v3455 = vsel %vm963, %v3453, %v3454
        %v3456 = vrot.slane %v3344, 2
        %v3457 = vsel %vm963, %v3454, %v3456
        %v3458 = vrot.slane %v3345, 2
        %v3459 = vsel %vm963, %v3456, %v3458
        %v3460 = vrot.slane %v3346, 2
        %v3461 = vsel %vm963, %v3458, %v3460
        %v3462 = vrot.slane %v3347, 2
        %v3463 = vsel %vm963, %v3460, %v3462
        %v3464 = vrot.slane %v3348, 2
        %v3465 = vsel %vm963, %v3462, %v3464
        %v3466 = vrot.slane %v3349, 2
        %v3467 = vsel %vm963, %v3464, %v3466
        %v3468 = vrot.slane %v3350, 2
        %v3469 = vsel %vm963, %v3466, %v3468
        %v3470 = vrot.slane %v3351, 2
        %v3471 = vsel %vm963, %v3468, %v3470
        %v3472 = vrot.slane %v3352, 2
        %v3473 = vsel %vm963, %v3470, %v3472
        %v3474 = vrot.slane %v3353, 2
        %v3475 = vsel %vm963, %v3472, %v3474
        %v3476 = vrot.slane %v3354, 2
        %v3477 = vsel %vm963, %v3474, %v3476
        %v3478 = vrot.slane %v3355, 2
        %v3479 = vsel %vm963, %v3476, %v3478
        %v3480 = vrot.slane %v3356, 2
        %v3481 = vsel %vm963, %v3478, %v3480
        %v3482 = vrot.slane %v3357, 2
        %v3483 = vsel %vm963, %v3480, %v3482
        %3484 = vrot.lane.b32.xlu0 %v3455, 40
        %v3485 = vpop.permute.xlu0 %3484
        %3486 = vrot.lane.b32.xlu0 %v3457, 40
        %v3487 = vpop.permute.xlu0 %3486
        %3488 = vrot.lane.b32.xlu0 %v3459, 40
        %v3489 = vpop.permute.xlu0 %3488
        %3490 = vrot.lane.b32.xlu0 %v3461, 40
        %v3491 = vpop.permute.xlu0 %3490
        %3492 = vrot.lane.b32.xlu0 %v3463, 40
        %v3493 = vpop.permute.xlu0 %3492
        %3494 = vrot.lane.b32.xlu0 %v3465, 40
        %v3495 = vpop.permute.xlu0 %3494
        %3496 = vrot.lane.b32.xlu0 %v3467, 40
        %v3497 = vpop.permute.xlu0 %3496
        %3498 = vrot.lane.b32.xlu0 %v3469, 40
        %v3499 = vpop.permute.xlu0 %3498
        %3500 = vrot.lane.b32.xlu0 %v3471, 40
        %v3501 = vpop.permute.xlu0 %3500
        %3502 = vrot.lane.b32.xlu0 %v3473, 40
        %v3503 = vpop.permute.xlu0 %3502
        %3504 = vrot.lane.b32.xlu0 %v3475, 40
        %v3505 = vpop.permute.xlu0 %3504
        %3506 = vrot.lane.b32.xlu0 %v3477, 40
        %v3507 = vpop.permute.xlu0 %3506
        %3508 = vrot.lane.b32.xlu0 %v3479, 40
        %v3509 = vpop.permute.xlu0 %3508
        %3510 = vrot.lane.b32.xlu0 %v3481, 40
        %v3511 = vpop.permute.xlu0 %3510
        %3512 = vrot.lane.b32.xlu0 %v3483, 40
        %v3513 = vpop.permute.xlu0 %3512
        %3514 = vrot.lane.b32.xlu0 %v3482, 40
        %v3515 = vpop.permute.xlu0 %3514
        %v3532 = vrot.slane %v3342, 3
        %v3533 = vrot.slane %v3343, 3
        %v3534 = vsel %vm1123, %v3532, %v3533
        %v3535 = vrot.slane %v3344, 3
        %v3536 = vsel %vm1123, %v3533, %v3535
        %v3537 = vrot.slane %v3345, 3
        %v3538 = vsel %vm1123, %v3535, %v3537
        %v3539 = vrot.slane %v3346, 3
        %v3540 = vsel %vm1123, %v3537, %v3539
        %v3541 = vrot.slane %v3347, 3
        %v3542 = vsel %vm1123, %v3539, %v3541
        %v3543 = vrot.slane %v3348, 3
        %v3544 = vsel %vm1123, %v3541, %v3543
        %v3545 = vrot.slane %v3349, 3
        %v3546 = vsel %vm1123, %v3543, %v3545
        %v3547 = vrot.slane %v3350, 3
        %v3548 = vsel %vm1123, %v3545, %v3547
        %v3549 = vrot.slane %v3351, 3
        %v3550 = vsel %vm1123, %v3547, %v3549
        %v3551 = vrot.slane %v3352, 3
        %v3552 = vsel %vm1123, %v3549, %v3551
        %v3553 = vrot.slane %v3353, 3
        %v3554 = vsel %vm1123, %v3551, %v3553
        %v3555 = vrot.slane %v3354, 3
        %v3556 = vsel %vm1123, %v3553, %v3555
        %v3557 = vrot.slane %v3355, 3
        %v3558 = vsel %vm1123, %v3555, %v3557
        %v3559 = vrot.slane %v3356, 3
        %v3560 = vsel %vm1123, %v3557, %v3559
        %v3561 = vrot.slane %v3357, 3
        %v3562 = vsel %vm1123, %v3559, %v3561
        %3563 = vrot.lane.b32.xlu0 %v3534, 124
        %v3564 = vpop.permute.xlu0 %3563
        %3565 = vrot.lane.b32.xlu0 %v3536, 124
        %v3566 = vpop.permute.xlu0 %3565
        %3567 = vrot.lane.b32.xlu0 %v3538, 124
        %v3568 = vpop.permute.xlu0 %3567
        %3569 = vrot.lane.b32.xlu0 %v3540, 124
        %v3570 = vpop.permute.xlu0 %3569
        %3571 = vrot.lane.b32.xlu0 %v3542, 124
        %v3572 = vpop.permute.xlu0 %3571
        %3573 = vrot.lane.b32.xlu0 %v3544, 124
        %v3574 = vpop.permute.xlu0 %3573
        %3575 = vrot.lane.b32.xlu0 %v3546, 124
        %v3576 = vpop.permute.xlu0 %3575
        %3577 = vrot.lane.b32.xlu0 %v3548, 124
        %v3578 = vpop.permute.xlu0 %3577
        %3579 = vrot.lane.b32.xlu0 %v3550, 124
        %v3580 = vpop.permute.xlu0 %3579
        %3581 = vrot.lane.b32.xlu0 %v3552, 124
        %v3582 = vpop.permute.xlu0 %3581
        %3583 = vrot.lane.b32.xlu0 %v3554, 124
        %v3584 = vpop.permute.xlu0 %3583
        %3585 = vrot.lane.b32.xlu0 %v3556, 124
        %v3586 = vpop.permute.xlu0 %3585
        %3587 = vrot.lane.b32.xlu0 %v3558, 124
        %v3588 = vpop.permute.xlu0 %3587
        %3589 = vrot.lane.b32.xlu0 %v3560, 124
        %v3590 = vpop.permute.xlu0 %3589
        %3591 = vrot.lane.b32.xlu0 %v3562, 124
        %v3592 = vpop.permute.xlu0 %3591
        %3593 = vrot.lane.b32.xlu0 %v3561, 124
        %v3594 = vpop.permute.xlu0 %3593
        %v3611 = vrot.slane %v3342, 4
        %v3612 = vrot.slane %v3343, 4
        %v3613 = vsel %vm1283, %v3611, %v3612
        %v3614 = vrot.slane %v3344, 4
        %v3615 = vsel %vm1283, %v3612, %v3614
        %v3616 = vrot.slane %v3345, 4
        %v3617 = vsel %vm1283, %v3614, %v3616
        %v3618 = vrot.slane %v3346, 4
        %v3619 = vsel %vm1283, %v3616, %v3618
        %v3620 = vrot.slane %v3347, 4
        %v3621 = vsel %vm1283, %v3618, %v3620
        %v3622 = vrot.slane %v3348, 4
        %v3623 = vsel %vm1283, %v3620, %v3622
        %v3624 = vrot.slane %v3349, 4
        %v3625 = vsel %vm1283, %v3622, %v3624
        %v3626 = vrot.slane %v3350, 4
        %v3627 = vsel %vm1283, %v3624, %v3626
        %v3628 = vrot.slane %v3351, 4
        %v3629 = vsel %vm1283, %v3626, %v3628
        %v3630 = vrot.slane %v3352, 4
        %v3631 = vsel %vm1283, %v3628, %v3630
        %v3632 = vrot.slane %v3353, 4
        %v3633 = vsel %vm1283, %v3630, %v3632
        %v3634 = vrot.slane %v3354, 4
        %v3635 = vsel %vm1283, %v3632, %v3634
        %v3636 = vrot.slane %v3355, 4
        %v3637 = vsel %vm1283, %v3634, %v3636
        %v3638 = vrot.slane %v3356, 4
        %v3639 = vsel %vm1283, %v3636, %v3638
        %v3640 = vrot.slane %v3357, 4
        %v3641 = vsel %vm1283, %v3638, %v3640
        %3642 = vrot.lane.b32.xlu0 %v3613, 80
        %v3643 = vpop.permute.xlu0 %3642
        %3644 = vrot.lane.b32.xlu0 %v3615, 80
        %v3645 = vpop.permute.xlu0 %3644
        %3646 = vrot.lane.b32.xlu0 %v3617, 80
        %v3647 = vpop.permute.xlu0 %3646
        %3648 = vrot.lane.b32.xlu0 %v3619, 80
        %v3649 = vpop.permute.xlu0 %3648
        %3650 = vrot.lane.b32.xlu0 %v3621, 80
        %v3651 = vpop.permute.xlu0 %3650
        %3652 = vrot.lane.b32.xlu0 %v3623, 80
        %v3653 = vpop.permute.xlu0 %3652
        %3654 = vrot.lane.b32.xlu0 %v3625, 80
        %v3655 = vpop.permute.xlu0 %3654
        %3656 = vrot.lane.b32.xlu0 %v3627, 80
        %v3657 = vpop.permute.xlu0 %3656
        %3658 = vrot.lane.b32.xlu0 %v3629, 80
        %v3659 = vpop.permute.xlu0 %3658
        %3660 = vrot.lane.b32.xlu0 %v3631, 80
        %v3661 = vpop.permute.xlu0 %3660
        %3662 = vrot.lane.b32.xlu0 %v3633, 80
        %v3663 = vpop.permute.xlu0 %3662
        %3664 = vrot.lane.b32.xlu0 %v3635, 80
        %v3665 = vpop.permute.xlu0 %3664
        %3666 = vrot.lane.b32.xlu0 %v3637, 80
        %v3667 = vpop.permute.xlu0 %3666
        %3668 = vrot.lane.b32.xlu0 %v3639, 80
        %v3669 = vpop.permute.xlu0 %3668
        %3670 = vrot.lane.b32.xlu0 %v3641, 80
        %v3671 = vpop.permute.xlu0 %3670
        %3672 = vrot.lane.b32.xlu0 %v3640, 80
        %v3673 = vpop.permute.xlu0 %3672
        %vm3690 = vcmask 687104
        %v3691 = vsel %vm3690, %v3342, %v3406
        %v3692 = vsel %vm3690, %v3343, %v3408
        %v3693 = vsel %vm3690, %v3344, %v3410
        %v3694 = vsel %vm3690, %v3345, %v3412
        %v3695 = vsel %vm3690, %v3346, %v3414
        %v3696 = vsel %vm3690, %v3347, %v3416
        %v3697 = vsel %vm3690, %v3348, %v3418
        %v3698 = vsel %vm3690, %v3349, %v3420
        %v3699 = vsel %vm3690, %v3350, %v3422
        %v3700 = vsel %vm3690, %v3351, %v3424
        %v3701 = vsel %vm3690, %v3352, %v3426
        %v3702 = vsel %vm3690, %v3353, %v3428
        %v3703 = vsel %vm3690, %v3354, %v3430
        %v3704 = vsel %vm3690, %v3355, %v3432
        %v3705 = vsel %vm3690, %v3356, %v3434
        %v3706 = vsel %vm3690, %v3357, %v3436
        %v3707 = vsel %vm3033, %v3406, %v3485
        %v3708 = vsel %vm3033, %v3408, %v3487
        %v3709 = vsel %vm3033, %v3410, %v3489
        %v3710 = vsel %vm3033, %v3412, %v3491
        %v3711 = vsel %vm3033, %v3414, %v3493
        %v3712 = vsel %vm3033, %v3416, %v3495
        %v3713 = vsel %vm3033, %v3418, %v3497
        %v3714 = vsel %vm3033, %v3420, %v3499
        %v3715 = vsel %vm3033, %v3422, %v3501
        %v3716 = vsel %vm3033, %v3424, %v3503
        %v3717 = vsel %vm3033, %v3426, %v3505
        %v3718 = vsel %vm3033, %v3428, %v3507
        %v3719 = vsel %vm3033, %v3430, %v3509
        %v3720 = vsel %vm3033, %v3432, %v3511
        %v3721 = vsel %vm3033, %v3434, %v3513
        %v3722 = vsel %vm3033, %v3436, %v3515
        %v3723 = vsel %vm2532, %v3707, %v3564
        %v3724 = vsel %vm2532, %v3708, %v3566
        %v3725 = vsel %vm2532, %v3709, %v3568
        %v3726 = vsel %vm2532, %v3710, %v3570
        %v3727 = vsel %vm2532, %v3711, %v3572
        %v3728 = vsel %vm2532, %v3712, %v3574
        %v3729 = vsel %vm2532, %v3713, %v3576
        %v3730 = vsel %vm2532, %v3714, %v3578
        %v3731 = vsel %vm2532, %v3715, %v3580
        %v3732 = vsel %vm2532, %v3716, %v3582
        %v3733 = vsel %vm2532, %v3717, %v3584
        %v3734 = vsel %vm2532, %v3718, %v3586
        %v3735 = vsel %vm2532, %v3719, %v3588
        %v3736 = vsel %vm2532, %v3720, %v3590
        %v3737 = vsel %vm2532, %v3721, %v3592
        %v3738 = vsel %vm2532, %v3722, %v3594
        %vm3739 = vcmask 654336
        %v3740 = vsel %vm3739, %v3564, %v3643
        %v3741 = vsel %vm3739, %v3566, %v3645
        %v3742 = vsel %vm3739, %v3568, %v3647
        %v3743 = vsel %vm3739, %v3570, %v3649
        %v3744 = vsel %vm3739, %v3572, %v3651
        %v3745 = vsel %vm3739, %v3574, %v3653
        %v3746 = vsel %vm3739, %v3576, %v3655
        %v3747 = vsel %vm3739, %v3578, %v3657
        %v3748 = vsel %vm3739, %v3580, %v3659
        %v3749 = vsel %vm3739, %v3582, %v3661
        %v3750 = vsel %vm3739, %v3584, %v3663
        %v3751 = vsel %vm3739, %v3586, %v3665
        %v3752 = vsel %vm3739, %v3588, %v3667
        %v3753 = vsel %vm3739, %v3590, %v3669
        %v3754 = vsel %vm3739, %v3592, %v3671
        %v3755 = vsel %vm3739, %v3594, %v3673
        %v3756 = vld [vmem:[%s3] sm:$0xff]
        %v3757 = vld [vmem:[%s3 + $0x8] sm:$0xff]
        %v3758 = vld [vmem:[%s3 + $0x10] sm:$0xff]
        %v3759 = vld [vmem:[%s3 + $0x18] sm:$0xff]
        %v3760 = vld [vmem:[%s3 + $0x20] sm:$0xff]
        %v3761 = vld [vmem:[%s3 + $0x28] sm:$0xff]
        %v3762 = vld [vmem:[%s3 + $0x30] sm:$0xff]
        %v3763 = vld [vmem:[%s3 + $0x38] sm:$0xff]
        %v3764 = vld [vmem:[%s3 + $0x40] sm:$0xff]
        %v3765 = vld [vmem:[%s3 + $0x48] sm:$0xff]
        %v3766 = vld [vmem:[%s3 + $0x50] sm:$0xff]
        %v3767 = vld [vmem:[%s3 + $0x58] sm:$0xff]
        %v3768 = vld [vmem:[%s3 + $0x60] sm:$0xff]
        %v3769 = vld [vmem:[%s3 + $0x68] sm:$0xff]
        %v3770 = vld [vmem:[%s3 + $0x70] sm:$0xff]
        %v3771 = vld [vmem:[%s3 + $0x78] sm:$0xff]
        %v3772 = vld [vmem:[%s3 + $0x80] sm:$0xff]
        %v3773 = vld [vmem:[%s3 + $0x88] sm:$0xff]
        %v3774 = vld [vmem:[%s3 + $0x90] sm:$0xff]
        %v3775 = vld [vmem:[%s3 + $0x98] sm:$0xff]
        %v3776 = vld [vmem:[%s3 + $0xa0] sm:$0xff]
        %v3777 = vld [vmem:[%s3 + $0xa8] sm:$0xff]
        %v3778 = vld [vmem:[%s3 + $0xb0] sm:$0xff]
        %v3779 = vld [vmem:[%s3 + $0xb8] sm:$0xff]
        %v3780 = vld [vmem:[%s3 + $0xc0] sm:$0xff]
        %v3781 = vld [vmem:[%s3 + $0xc8] sm:$0xff]
        %v3782 = vld [vmem:[%s3 + $0xd0] sm:$0xff]
        %v3783 = vld [vmem:[%s3 + $0xd8] sm:$0xff]
        %v3784 = vld [vmem:[%s3 + $0xe0] sm:$0xff]
        %v3785 = vld [vmem:[%s3 + $0xe8] sm:$0xff]
        %v3786 = vld [vmem:[%s3 + $0xf0] sm:$0xff]
        %v3787 = vld [vmem:[%s3 + $0xf8] sm:$0xff]
        %v3788 = vld [vmem:[%s3 + $0x100] sm:$0xff]
        %v3789 = vld [vmem:[%s3 + $0x108] sm:$0xff]
        %v3790 = vld [vmem:[%s3 + $0x110] sm:$0xff]
        %v3791 = vld [vmem:[%s3 + $0x118] sm:$0xff]
        %v3792 = vld [vmem:[%s3 + $0x120] sm:$0xff]
        %v3793 = vld [vmem:[%s3 + $0x128] sm:$0xff]
        %v3794 = vld [vmem:[%s3 + $0x130] sm:$0xff]
        %v3795 = vld [vmem:[%s3 + $0x138] sm:$0xff]
        %v3796 = vld [vmem:[%s3 + $0x140] sm:$0xff]
        %v3797 = vld [vmem:[%s3 + $0x148] sm:$0xff]
        %v3798 = vld [vmem:[%s3 + $0x150] sm:$0xff]
        %v3799 = vld [vmem:[%s3 + $0x158] sm:$0xff]
        %v3800 = vld [vmem:[%s3 + $0x160] sm:$0xff]
        %v3801 = vld [vmem:[%s3 + $0x168] sm:$0xff]
        %v3802 = vld [vmem:[%s3 + $0x170] sm:$0xff]
        %v3803 = vld [vmem:[%s3 + $0x178] sm:$0xff]
        %v3804 = vld [vmem:[%s3 + $0x180] sm:$0xff]
        %v3805 = vld [vmem:[%s3 + $0x188] sm:$0xff]
        %v3806 = vld [vmem:[%s3 + $0x190] sm:$0xff]
        %v3807 = vld [vmem:[%s3 + $0x198] sm:$0xff]
        %v3808 = vld [vmem:[%s3 + $0x1a0] sm:$0x33]
        %v3809 = vpack.c.bf16 %v3692, %v3691
        %v3810 = vpack.c.bf16 %v3724, %v3723
        %v3811 = vpack.c.bf16 %v3741, %v3740
        %v3812 = vpack.c.bf16 %v3645, %v3643
        %v3813 = vpack.c.bf16 %v3694, %v3693
        %v3814 = vpack.c.bf16 %v3726, %v3725
        %v3815 = vpack.c.bf16 %v3743, %v3742
        %v3816 = vpack.c.bf16 %v3649, %v3647
        %v3817 = vpack.c.bf16 %v3696, %v3695
        %v3818 = vpack.c.bf16 %v3728, %v3727
        %v3819 = vpack.c.bf16 %v3745, %v3744
        %v3820 = vpack.c.bf16 %v3653, %v3651
        %v3821 = vpack.c.bf16 %v3698, %v3697
        %v3822 = vpack.c.bf16 %v3730, %v3729
        %v3823 = vpack.c.bf16 %v3747, %v3746
        %v3824 = vpack.c.bf16 %v3657, %v3655
        %v3825 = vpack.c.bf16 %v3700, %v3699
        %v3826 = vpack.c.bf16 %v3732, %v3731
        %v3827 = vpack.c.bf16 %v3749, %v3748
        %v3828 = vpack.c.bf16 %v3661, %v3659
        %v3829 = vpack.c.bf16 %v3702, %v3701
        %v3830 = vpack.c.bf16 %v3734, %v3733
        %v3831 = vpack.c.bf16 %v3751, %v3750
        %v3832 = vpack.c.bf16 %v3665, %v3663
        %v3833 = vpack.c.bf16 %v3704, %v3703
        %v3834 = vpack.c.bf16 %v3736, %v3735
        %v3835 = vpack.c.bf16 %v3753, %v3752
        %v3836 = vpack.c.bf16 %v3669, %v3667
        %v3837 = vpack.c.bf16 %v3706, %v3705
        %v3838 = vpack.c.bf16 %v3738, %v3737
        %v3839 = vpack.c.bf16 %v3755, %v3754
        %v3840 = vpack.c.bf16 %v3673, %v3671
        %v3841 = vld [vmem:[%s4] sm:$0x3]
        %v3843 = vlaneseq
        %v3844 = vshrl.u32 %v3843, 7
        %v3845 = vsub.s32 0, %v3844
        %v3846 = vrot.slane %v3841, %v3845
        %v3847 = vlaneseq
        %v3848 = vshrl.u32 %v3847, 7
        %v3849 = vsub.s32 1, %v3848
        %v3850 = vrot.slane %v3841, %v3849
        %v3906 = vunpack.c.l.b16 %v3756
        %v3907 = vunpack.c.h.b16 %v3756
        %v3908 = vunpack.c.l.b16 %v3757
        %v3909 = vunpack.c.h.b16 %v3757
        %v3910 = vunpack.c.l.b16 %v3758
        %v3911 = vunpack.c.h.b16 %v3758
        %v3912 = vunpack.c.l.b16 %v3759
        %v3913 = vunpack.c.h.b16 %v3759
        %v3914 = vunpack.c.l.b16 %v3760
        %v3915 = vunpack.c.h.b16 %v3760
        %v3916 = vunpack.c.l.b16 %v3761
        %v3917 = vunpack.c.h.b16 %v3761
        %v3918 = vunpack.c.l.b16 %v3762
        %v3919 = vunpack.c.h.b16 %v3762
        %v3920 = vunpack.c.l.b16 %v3763
        %v3921 = vunpack.c.h.b16 %v3763
        %v3922 = vunpack.c.l.b16 %v3764
        %v3923 = vunpack.c.h.b16 %v3764
        %v3924 = vunpack.c.l.b16 %v3765
        %v3925 = vunpack.c.h.b16 %v3765
        %v3926 = vunpack.c.l.b16 %v3766
        %v3927 = vunpack.c.h.b16 %v3766
        %v3928 = vunpack.c.l.b16 %v3767
        %v3929 = vunpack.c.h.b16 %v3767
        %v3930 = vunpack.c.l.b16 %v3768
        %v3931 = vunpack.c.h.b16 %v3768
        %v3932 = vunpack.c.l.b16 %v3769
        %v3933 = vunpack.c.h.b16 %v3769
        %v3934 = vunpack.c.l.b16 %v3770
        %v3935 = vunpack.c.h.b16 %v3770
        %v3936 = vunpack.c.l.b16 %v3771
        %v3937 = vunpack.c.h.b16 %v3771
        %v3938 = vunpack.c.l.b16 %v3772
        %v3939 = vunpack.c.h.b16 %v3772
        %v3940 = vunpack.c.l.b16 %v3773
        %v3941 = vunpack.c.h.b16 %v3773
        %v3942 = vunpack.c.l.b16 %v3774
        %v3943 = vunpack.c.h.b16 %v3774
        %v3944 = vunpack.c.l.b16 %v3775
        %v3945 = vunpack.c.h.b16 %v3775
        %v3946 = vunpack.c.l.b16 %v3776
        %v3947 = vunpack.c.h.b16 %v3776
        %v3948 = vunpack.c.l.b16 %v3777
        %v3949 = vunpack.c.h.b16 %v3777
        %v3950 = vunpack.c.l.b16 %v3778
        %v3951 = vunpack.c.h.b16 %v3778
        %v3952 = vunpack.c.l.b16 %v3779
        %v3953 = vunpack.c.h.b16 %v3779
        %v3954 = vunpack.c.l.b16 %v3780
        %v3955 = vunpack.c.h.b16 %v3780
        %v3956 = vunpack.c.l.b16 %v3781
        %v3957 = vunpack.c.h.b16 %v3781
        %v3958 = vunpack.c.l.b16 %v3782
        %v3959 = vunpack.c.h.b16 %v3782
        %v3960 = vunpack.c.l.b16 %v3783
        %v3961 = vunpack.c.h.b16 %v3783
        %v3962 = vunpack.c.l.b16 %v3784
        %v3963 = vunpack.c.h.b16 %v3784
        %v3964 = vunpack.c.l.b16 %v3785
        %v3965 = vunpack.c.h.b16 %v3785
        %v3966 = vunpack.c.l.b16 %v3786
        %v3967 = vunpack.c.h.b16 %v3786
        %v3968 = vunpack.c.l.b16 %v3787
        %v3969 = vunpack.c.h.b16 %v3787
        %v3970 = vunpack.c.l.b16 %v3788
        %v3971 = vunpack.c.h.b16 %v3788
        %v3972 = vunpack.c.l.b16 %v3789
        %v3973 = vunpack.c.h.b16 %v3789
        %v3974 = vunpack.c.l.b16 %v3790
        %v3975 = vunpack.c.h.b16 %v3790
        %v3976 = vunpack.c.l.b16 %v3791
        %v3977 = vunpack.c.h.b16 %v3791
        %v3978 = vunpack.c.l.b16 %v3792
        %v3979 = vunpack.c.h.b16 %v3792
        %v3980 = vunpack.c.l.b16 %v3793
        %v3981 = vunpack.c.h.b16 %v3793
        %v3982 = vunpack.c.l.b16 %v3794
        %v3983 = vunpack.c.h.b16 %v3794
        %v3984 = vunpack.c.l.b16 %v3795
        %v3985 = vunpack.c.h.b16 %v3795
        %v3986 = vunpack.c.l.b16 %v3796
        %v3987 = vunpack.c.h.b16 %v3796
        %v3988 = vunpack.c.l.b16 %v3797
        %v3989 = vunpack.c.h.b16 %v3797
        %v3990 = vunpack.c.l.b16 %v3798
        %v3991 = vunpack.c.h.b16 %v3798
        %v3992 = vunpack.c.l.b16 %v3799
        %v3993 = vunpack.c.h.b16 %v3799
        %v3994 = vunpack.c.l.b16 %v3800
        %v3995 = vunpack.c.h.b16 %v3800
        %v3996 = vunpack.c.l.b16 %v3801
        %v3997 = vunpack.c.h.b16 %v3801
        %v3998 = vunpack.c.l.b16 %v3802
        %v3999 = vunpack.c.h.b16 %v3802
        %v4000 = vunpack.c.l.b16 %v3803
        %v4001 = vunpack.c.h.b16 %v3803
        %v4002 = vunpack.c.l.b16 %v3804
        %v4003 = vunpack.c.h.b16 %v3804
        %v4004 = vunpack.c.l.b16 %v3805
        %v4005 = vunpack.c.h.b16 %v3805
        %v4006 = vunpack.c.l.b16 %v3806
        %v4007 = vunpack.c.h.b16 %v3806
        %v4008 = vunpack.c.l.b16 %v3807
        %v4009 = vunpack.c.h.b16 %v3807
        %v4010 = vunpack.c.l.b16 %v3808
        %v4011 = vunpack.c.h.b16 %v3808
        %v4012 = vpack.c.b16 %v3908, %v3906
        %v4013 = vpack.c.b16 %v3909, %v3907
        %v4014 = vpack.c.b16 %v3912, %v3910
        %v4015 = vpack.c.b16 %v3913, %v3911
        %v4016 = vpack.c.b16 %v3916, %v3914
        %v4017 = vpack.c.b16 %v3917, %v3915
        %v4018 = vpack.c.b16 %v3920, %v3918
        %v4019 = vpack.c.b16 %v3921, %v3919
        %v4020 = vpack.c.b16 %v3924, %v3922
        %v4021 = vpack.c.b16 %v3925, %v3923
        %v4022 = vpack.c.b16 %v3928, %v3926
        %v4023 = vpack.c.b16 %v3929, %v3927
        %v4024 = vpack.c.b16 %v3932, %v3930
        %v4025 = vpack.c.b16 %v3933, %v3931
        %v4026 = vpack.c.b16 %v3936, %v3934
        %v4027 = vpack.c.b16 %v3937, %v3935
        %v4028 = vpack.c.b16 %v3940, %v3938
        %v4029 = vpack.c.b16 %v3941, %v3939
        %v4030 = vpack.c.b16 %v3944, %v3942
        %v4031 = vpack.c.b16 %v3945, %v3943
        %v4032 = vpack.c.b16 %v3948, %v3946
        %v4033 = vpack.c.b16 %v3949, %v3947
        %v4034 = vpack.c.b16 %v3952, %v3950
        %v4035 = vpack.c.b16 %v3953, %v3951
        %v4036 = vpack.c.b16 %v3956, %v3954
        %v4037 = vpack.c.b16 %v3957, %v3955
        %v4038 = vpack.c.b16 %v3960, %v3958
        %v4039 = vpack.c.b16 %v3961, %v3959
        %v4040 = vpack.c.b16 %v3964, %v3962
        %v4041 = vpack.c.b16 %v3965, %v3963
        %v4042 = vpack.c.b16 %v3968, %v3966
        %v4043 = vpack.c.b16 %v3969, %v3967
        %v4044 = vpack.c.b16 %v3972, %v3970
        %v4045 = vpack.c.b16 %v3973, %v3971
        %v4046 = vpack.c.b16 %v3976, %v3974
        %v4047 = vpack.c.b16 %v3977, %v3975
        %v4048 = vpack.c.b16 %v3980, %v3978
        %v4049 = vpack.c.b16 %v3981, %v3979
        %v4050 = vpack.c.b16 %v3984, %v3982
        %v4051 = vpack.c.b16 %v3985, %v3983
        %v4052 = vpack.c.b16 %v3988, %v3986
        %v4053 = vpack.c.b16 %v3989, %v3987
        %v4054 = vpack.c.b16 %v3992, %v3990
        %v4055 = vpack.c.b16 %v3993, %v3991
        %v4056 = vpack.c.b16 %v3996, %v3994
        %v4057 = vpack.c.b16 %v3997, %v3995
        %v4058 = vpack.c.b16 %v4000, %v3998
        %v4059 = vpack.c.b16 %v4001, %v3999
        %v4060 = vpack.c.b16 %v4004, %v4002
        %v4061 = vpack.c.b16 %v4005, %v4003
        %v4062 = vpack.c.b16 %v4008, %v4006
        %v4063 = vpack.c.b16 %v4009, %v4007
        %v4064 = vpack.c.b16 %v4010, %v4010
        %v4065 = vpack.c.b16 %v4011, %v4011
        %vm4118 = vcmask 293888
        %v4120 = vsel %vm4118, %v3812, 0
        %v4123 = vsel %vm4118, %v3816, 0
        %v4126 = vsel %vm4118, %v3820, 0
        %v4129 = vsel %vm4118, %v3824, 0
        %v4132 = vsel %vm4118, %v3828, 0
        %v4135 = vsel %vm4118, %v3832, 0
        %v4138 = vsel %vm4118, %v3836, 0
        %v4141 = vsel %vm4118, %v3840, 0
        %vm4143 = vcmask 1041408
        %v4145 = vsel %vm4143, %v4064, 0
        %v4148 = vsel %vm4143, %v4065, 0
        %4150 = vmatprep.subr.bf16.mxu0 %v4013
        %4151 = vmatpush1.bf16.msra.mxu0 %v4012
        %4152 = vmatprep.subr.bf16.mxu0 %v4015
        %4153 = vmatpush1.bf16.msra.mxu0 %v4014
        %4154 = vmatprep.subr.bf16.mxu0 %v4017
        %4155 = vmatpush1.bf16.msra.mxu0 %v4016
        %4156 = vmatprep.subr.bf16.mxu0 %v4019
        %4157 = vmatpush1.bf16.msra.mxu0 %v4018
        %4158 = vmatprep.subr.bf16.mxu0 %v4021
        %4159 = vmatpush1.bf16.msra.mxu0 %v4020
        %4160 = vmatprep.subr.bf16.mxu0 %v4023
        %4161 = vmatpush1.bf16.msra.mxu0 %v4022
        %4162 = vmatprep.subr.bf16.mxu0 %v4025
        %4163 = vmatpush1.bf16.msra.mxu0 %v4024
        %4164 = vmatprep.subr.bf16.mxu0 %v4027
        %4165 = vmatpush1.bf16.msra.mxu0 %v4026
        %4166 = vmatprep.subr.bf16.mxu0 %v4029
        %4167 = vmatpush1.bf16.msra.mxu0 %v4028
        %4168 = vmatprep.subr.bf16.mxu0 %v4031
        %4169 = vmatpush1.bf16.msra.mxu0 %v4030
        %4170 = vmatprep.subr.bf16.mxu0 %v4033
        %4171 = vmatpush1.bf16.msra.mxu0 %v4032
        %4172 = vmatprep.subr.bf16.mxu0 %v4035
        %4173 = vmatpush1.bf16.msra.mxu0 %v4034
        %4174 = vmatprep.subr.bf16.mxu0 %v4037
        %4175 = vmatpush1.bf16.msra.mxu0 %v4036
        %4176 = vmatprep.subr.bf16.mxu0 %v4039
        %4177 = vmatpush1.bf16.msra.mxu0 %v4038
        %4178 = vmatprep.subr.bf16.mxu0 %v4041
        %4179 = vmatpush1.bf16.msra.mxu0 %v4040
        %4180 = vmatprep.subr.bf16.mxu0 %v4043
        %4181 = vmatpush1.bf16.msra.mxu0 %v4042
        %4182 = vmatprep.mubr.bf16.mxu0 %v3810
        %4183 = vmatmul.mubr.bf16.gmra.mrb[0].mxu0 %v3809
        %v4184 = vpop.f32.mrb[0].mxu0
        %v4185 = vadd.f32 %v3846, %v4184
        %v4186 = vpop.f32.mrb[0].mxu0
        %v4187 = vadd.f32 %v3850, %v4186
        %v4188 = vpop.f32.mrb[0].mxu0
        %v4189 = vadd.f32 %v3846, %v4188
        %v4190 = vpop.f32.mrb[0].mxu0
        %v4191 = vadd.f32 %v3850, %v4190
        %4192 = vmatprep.mubr.bf16.mxu0 %v3814
        %4193 = vmatmul.mubr.bf16.gmra.mrb[0].mxu0 %v3813
        %v4194 = vpop.f32.mrb[0].mxu0
        %v4195 = vadd.f32 %v3846, %v4194
        %v4196 = vpop.f32.mrb[0].mxu0
        %v4197 = vadd.f32 %v3850, %v4196
        %v4198 = vpop.f32.mrb[0].mxu0
        %v4199 = vadd.f32 %v3846, %v4198
        %v4200 = vpop.f32.mrb[0].mxu0
        %v4201 = vadd.f32 %v3850, %v4200
        %4202 = vmatprep.mubr.bf16.mxu0 %v3818
        %4203 = vmatmul.mubr.bf16.gmra.mrb[0].mxu0 %v3817
        %v4204 = vpop.f32.mrb[0].mxu0
        %v4205 = vadd.f32 %v3846, %v4204
        %v4206 = vpop.f32.mrb[0].mxu0
        %v4207 = vadd.f32 %v3850, %v4206
        %v4208 = vpop.f32.mrb[0].mxu0
        %v4209 = vadd.f32 %v3846, %v4208
        %v4210 = vpop.f32.mrb[0].mxu0
        %v4211 = vadd.f32 %v3850, %v4210
        %4212 = vmatprep.mubr.bf16.mxu0 %v3822
        %4213 = vmatmul.mubr.bf16.gmra.mrb[0].mxu0 %v3821
        %v4214 = vpop.f32.mrb[0].mxu0
        %v4215 = vadd.f32 %v3846, %v4214
        %v4216 = vpop.f32.mrb[0].mxu0
        %v4217 = vadd.f32 %v3850, %v4216
        %v4218 = vpop.f32.mrb[0].mxu0
        %v4219 = vadd.f32 %v3846, %v4218
        %v4220 = vpop.f32.mrb[0].mxu0
        %v4221 = vadd.f32 %v3850, %v4220
        %4222 = vmatprep.mubr.bf16.mxu0 %v3826
        %4223 = vmatmul.mubr.bf16.gmra.mrb[0].mxu0 %v3825
        %v4224 = vpop.f32.mrb[0].mxu0
        %v4225 = vadd.f32 %v3846, %v4224
        %v4226 = vpop.f32.mrb[0].mxu0
        %v4227 = vadd.f32 %v3850, %v4226
        %v4228 = vpop.f32.mrb[0].mxu0
        %v4229 = vadd.f32 %v3846, %v4228
        %v4230 = vpop.f32.mrb[0].mxu0
        %v4231 = vadd.f32 %v3850, %v4230
        %4232 = vmatprep.mubr.bf16.mxu0 %v3830
        %4233 = vmatmul.mubr.bf16.gmra.mrb[0].mxu0 %v3829
        %v4234 = vpop.f32.mrb[0].mxu0
        %v4235 = vadd.f32 %v3846, %v4234
        %v4236 = vpop.f32.mrb[0].mxu0
        %v4237 = vadd.f32 %v3850, %v4236
        %v4238 = vpop.f32.mrb[0].mxu0
        %v4239 = vadd.f32 %v3846, %v4238
        %v4240 = vpop.f32.mrb[0].mxu0
        %v4241 = vadd.f32 %v3850, %v4240
        %4242 = vmatprep.mubr.bf16.mxu0 %v3834
        %4243 = vmatmul.mubr.bf16.gmra.mrb[0].mxu0 %v3833
        %v4244 = vpop.f32.mrb[0].mxu0
        %v4245 = vadd.f32 %v3846, %v4244
        %v4246 = vpop.f32.mrb[0].mxu0
        %v4247 = vadd.f32 %v3850, %v4246
        %v4248 = vpop.f32.mrb[0].mxu0
        %v4249 = vadd.f32 %v3846, %v4248
        %v4250 = vpop.f32.mrb[0].mxu0
        %v4251 = vadd.f32 %v3850, %v4250
        %4252 = vmatprep.mubr.bf16.mxu0 %v3838
        %4253 = vmatmul.mubr.bf16.gmra.mrb[0].mxu0 %v3837
        %v4254 = vpop.f32.mrb[0].mxu0
        %v4255 = vadd.f32 %v3846, %v4254
        %v4256 = vpop.f32.mrb[0].mxu0
        %v4257 = vadd.f32 %v3850, %v4256
        %v4258 = vpop.f32.mrb[0].mxu0
        %v4259 = vadd.f32 %v3846, %v4258
        %v4260 = vpop.f32.mrb[0].mxu0
        %v4261 = vadd.f32 %v3850, %v4260
        %4262 = vdwg.mxu0
        %4263 = vmatprep.subr.bf16.mxu0 %v4045
        %4264 = vmatpush1.bf16.msra.mxu0 %v4044
        %4265 = vmatprep.subr.bf16.mxu0 %v4047
        %4266 = vmatpush1.bf16.msra.mxu0 %v4046
        %4267 = vmatprep.subr.bf16.mxu0 %v4049
        %4268 = vmatpush1.bf16.msra.mxu0 %v4048
        %4269 = vmatprep.subr.bf16.mxu0 %v4051
        %4270 = vmatpush1.bf16.msra.mxu0 %v4050
        %4271 = vmatprep.subr.bf16.mxu0 %v4053
        %4272 = vmatpush1.bf16.msra.mxu0 %v4052
        %4273 = vmatprep.subr.bf16.mxu0 %v4055
        %4274 = vmatpush1.bf16.msra.mxu0 %v4054
        %4275 = vmatprep.subr.bf16.mxu0 %v4057
        %4276 = vmatpush1.bf16.msra.mxu0 %v4056
        %4277 = vmatprep.subr.bf16.mxu0 %v4059
        %4278 = vmatpush1.bf16.msra.mxu0 %v4058
        %4279 = vmatprep.subr.bf16.mxu0 %v4061
        %4280 = vmatpush1.bf16.msra.mxu0 %v4060
        %4281 = vmatprep.subr.bf16.mxu0 %v4063
        %4282 = vmatpush1.bf16.msra.mxu0 %v4062
        %4283 = vmatprep.subr.bf16.mxu0 %v4148
        %4284 = vmatpush1.bf16.msra.mxu0 %v4145
        %4285 = vmatprep.subr.bf16.mxu0 0
        %4286 = vmatpush1.bf16.msra.mxu0 0
        %4287 = vmatprep.subr.bf16.mxu0 0
        %4288 = vmatpush1.bf16.msra.mxu0 0
        %4289 = vmatprep.subr.bf16.mxu0 0
        %4290 = vmatpush1.bf16.msra.mxu0 0
        %4291 = vmatprep.subr.bf16.mxu0 0
        %4292 = vmatpush1.bf16.msra.mxu0 0
        %4293 = vmatprep.subr.bf16.mxu0 0
        %4294 = vmatpush1.bf16.msra.mxu0 0
        %4295 = vmatprep.mubr.bf16.mxu0 %v4120
        %4296 = vmatmul.mubr.bf16.gmra.mrb[0].mxu0 %v3811
        %v4297 = vpop.f32.mrb[0].mxu0
        %v4298 = vadd.f32 %v4185, %v4297
        %v4299 = vpop.f32.mrb[0].mxu0
        %v4300 = vadd.f32 %v4187, %v4299
        %v4301 = vpop.f32.mrb[0].mxu0
        %v4302 = vadd.f32 %v4189, %v4301
        %v4303 = vpop.f32.mrb[0].mxu0
        %v4304 = vadd.f32 %v4191, %v4303
        %4305 = vmatprep.mubr.bf16.mxu0 %v4123
        %4306 = vmatmul.mubr.bf16.gmra.mrb[0].mxu0 %v3815
        %v4307 = vpop.f32.mrb[0].mxu0
        %v4308 = vadd.f32 %v4195, %v4307
        %v4309 = vpop.f32.mrb[0].mxu0
        %v4310 = vadd.f32 %v4197, %v4309
        %v4311 = vpop.f32.mrb[0].mxu0
        %v4312 = vadd.f32 %v4199, %v4311
        %v4313 = vpop.f32.mrb[0].mxu0
        %v4314 = vadd.f32 %v4201, %v4313
        %4315 = vmatprep.mubr.bf16.mxu0 %v4126
        %4316 = vmatmul.mubr.bf16.gmra.mrb[0].mxu0 %v3819
        %v4317 = vpop.f32.mrb[0].mxu0
        %v4318 = vadd.f32 %v4205, %v4317
        %v4319 = vpop.f32.mrb[0].mxu0
        %v4320 = vadd.f32 %v4207, %v4319
        %v4321 = vpop.f32.mrb[0].mxu0
        %v4322 = vadd.f32 %v4209, %v4321
        %v4323 = vpop.f32.mrb[0].mxu0
        %v4324 = vadd.f32 %v4211, %v4323
        %4325 = vmatprep.mubr.bf16.mxu0 %v4129
        %4326 = vmatmul.mubr.bf16.gmra.mrb[0].mxu0 %v3823
        %v4327 = vpop.f32.mrb[0].mxu0
        %v4328 = vadd.f32 %v4215, %v4327
        %v4329 = vpop.f32.mrb[0].mxu0
        %v4330 = vadd.f32 %v4217, %v4329
        %v4331 = vpop.f32.mrb[0].mxu0
        %v4332 = vadd.f32 %v4219, %v4331
        %v4333 = vpop.f32.mrb[0].mxu0
        %v4334 = vadd.f32 %v4221, %v4333
        %4335 = vmatprep.mubr.bf16.mxu0 %v4132
        %4336 = vmatmul.mubr.bf16.gmra.mrb[0].mxu0 %v3827
        %v4337 = vpop.f32.mrb[0].mxu0
        %v4338 = vadd.f32 %v4225, %v4337
        %v4339 = vpop.f32.mrb[0].mxu0
        %v4340 = vadd.f32 %v4227, %v4339
        %v4341 = vpop.f32.mrb[0].mxu0
        %v4342 = vadd.f32 %v4229, %v4341
        %v4343 = vpop.f32.mrb[0].mxu0
        %v4344 = vadd.f32 %v4231, %v4343
        %4345 = vmatprep.mubr.bf16.mxu0 %v4135
        %4346 = vmatmul.mubr.bf16.gmra.mrb[0].mxu0 %v3831
        %v4347 = vpop.f32.mrb[0].mxu0
        %v4348 = vadd.f32 %v4235, %v4347
        %v4349 = vpop.f32.mrb[0].mxu0
        %v4350 = vadd.f32 %v4237, %v4349
        %v4351 = vpop.f32.mrb[0].mxu0
        %v4352 = vadd.f32 %v4239, %v4351
        %v4353 = vpop.f32.mrb[0].mxu0
        %v4354 = vadd.f32 %v4241, %v4353
        %4355 = vmatprep.mubr.bf16.mxu0 %v4138
        %4356 = vmatmul.mubr.bf16.gmra.mrb[0].mxu0 %v3835
        %v4357 = vpop.f32.mrb[0].mxu0
        %v4358 = vadd.f32 %v4245, %v4357
        %v4359 = vpop.f32.mrb[0].mxu0
        %v4360 = vadd.f32 %v4247, %v4359
        %v4361 = vpop.f32.mrb[0].mxu0
        %v4362 = vadd.f32 %v4249, %v4361
        %v4363 = vpop.f32.mrb[0].mxu0
        %v4364 = vadd.f32 %v4251, %v4363
        %4365 = vmatprep.mubr.bf16.mxu0 %v4141
        %4366 = vmatmul.mubr.bf16.gmra.mrb[0].mxu0 %v3839
        %v4367 = vpop.f32.mrb[0].mxu0
        %v4368 = vadd.f32 %v4255, %v4367
        %v4369 = vpop.f32.mrb[0].mxu0
        %v4370 = vadd.f32 %v4257, %v4369
        %v4371 = vpop.f32.mrb[0].mxu0
        %v4372 = vadd.f32 %v4259, %v4371
        %v4373 = vpop.f32.mrb[0].mxu0
        %v4374 = vadd.f32 %v4261, %v4373
        %4375 = vdwg.mxu0
        %v4376 = vmax.f32 %v4298, 0.0
        %v4377 = vmax.f32 %v4300, 0.0
        %v4378 = vmax.f32 %v4302, 0.0
        %v4379 = vmax.f32 %v4304, 0.0
        %v4380 = vmax.f32 %v4308, 0.0
        %v4381 = vmax.f32 %v4310, 0.0
        %v4382 = vmax.f32 %v4312, 0.0
        %v4383 = vmax.f32 %v4314, 0.0
        %v4384 = vmax.f32 %v4318, 0.0
        %v4385 = vmax.f32 %v4320, 0.0
        %v4386 = vmax.f32 %v4322, 0.0
        %v4387 = vmax.f32 %v4324, 0.0
        %v4388 = vmax.f32 %v4328, 0.0
        %v4389 = vmax.f32 %v4330, 0.0
        %v4390 = vmax.f32 %v4332, 0.0
        %v4391 = vmax.f32 %v4334, 0.0
        %v4392 = vmax.f32 %v4338, 0.0
        %v4393 = vmax.f32 %v4340, 0.0
        %v4394 = vmax.f32 %v4342, 0.0
        %v4395 = vmax.f32 %v4344, 0.0
        %v4396 = vmax.f32 %v4348, 0.0
        %v4397 = vmax.f32 %v4350, 0.0
        %v4398 = vmax.f32 %v4352, 0.0
        %v4399 = vmax.f32 %v4354, 0.0
        %v4400 = vmax.f32 %v4358, 0.0
        %v4401 = vmax.f32 %v4360, 0.0
        %v4402 = vmax.f32 %v4362, 0.0
        %v4403 = vmax.f32 %v4364, 0.0
        %v4404 = vmax.f32 %v4368, 0.0
        %v4405 = vmax.f32 %v4370, 0.0
        %v4406 = vmax.f32 %v4372, 0.0
        %v4407 = vmax.f32 %v4374, 0.0
        %v4408 = vpack.c.bf16 %v4378, %v4376
        %v4409 = vpack.c.bf16 %v4379, %v4377
        %v4410 = vpack.c.bf16 %v4382, %v4380
        %v4411 = vpack.c.bf16 %v4383, %v4381
        %v4412 = vpack.c.bf16 %v4386, %v4384
        %v4413 = vpack.c.bf16 %v4387, %v4385
        %v4414 = vpack.c.bf16 %v4390, %v4388
        %v4415 = vpack.c.bf16 %v4391, %v4389
        %v4416 = vpack.c.bf16 %v4394, %v4392
        %v4417 = vpack.c.bf16 %v4395, %v4393
        %v4418 = vpack.c.bf16 %v4398, %v4396
        %v4419 = vpack.c.bf16 %v4399, %v4397
        %v4420 = vpack.c.bf16 %v4402, %v4400
        %v4421 = vpack.c.bf16 %v4403, %v4401
        %v4422 = vpack.c.bf16 %v4406, %v4404
        %v4423 = vpack.c.bf16 %v4407, %v4405
        %v4424 = vld [vmem:[%s13] sm:$0xf]
        %v4425 = vld [vmem:[%s13 + $0x4] sm:$0xf]
        %v4426 = vld [vmem:[%s13 + $0x8] sm:$0xf]
        %v4427 = vld [vmem:[%s13 + $0xc] sm:$0xf]
        %v4428 = vld [vmem:[%s13 + $0x10] sm:$0xf]
        %v4429 = vld [vmem:[%s13 + $0x14] sm:$0xf]
        %v4430 = vld [vmem:[%s13 + $0x18] sm:$0xf]
        %v4431 = vld [vmem:[%s13 + $0x1c] sm:$0xf]
        %v4440 = vunpack.c.l.b16 %v4424
        %v4441 = vunpack.c.l.b16 %v4425
        %v4442 = vunpack.c.l.b16 %v4426
        %v4443 = vunpack.c.l.b16 %v4427
        %v4444 = vunpack.c.l.b16 %v4428
        %v4445 = vunpack.c.l.b16 %v4429
        %v4446 = vunpack.c.l.b16 %v4430
        %v4447 = vunpack.c.l.b16 %v4431
        %v4448 = vpack.c.b16 %v4441, %v4440
        %v4449 = vpack.c.b16 %v4443, %v4442
        %v4450 = vpack.c.b16 %v4445, %v4444
        %v4451 = vpack.c.b16 %v4447, %v4446
        %v4453 = vsel %vm2532, %v4448, 0
        %v4456 = vsel %vm2532, %v4449, 0
        %v4459 = vsel %vm2532, %v4450, 0
        %v4462 = vsel %vm2532, %v4451, 0
        %v4465 = vsel %vm963, %v4422, 0
        %v4468 = vsel %vm963, %v4423, 0
        %4470 = vmatprep.subr.bf16.mxu0 %v4409
        %4471 = vmatpush1.bf16.msra.mxu0 %v4408
        %4472 = vmatprep.subr.bf16.mxu0 %v4411
        %4473 = vmatpush1.bf16.msra.mxu0 %v4410
        %4474 = vmatprep.subr.bf16.mxu0 %v4413
        %4475 = vmatpush1.bf16.msra.mxu0 %v4412
        %4476 = vmatprep.subr.bf16.mxu0 %v4415
        %4477 = vmatpush1.bf16.msra.mxu0 %v4414
        %4478 = vmatprep.subr.bf16.mxu0 %v4417
        %4479 = vmatpush1.bf16.msra.mxu0 %v4416
        %4480 = vmatprep.subr.bf16.mxu0 %v4419
        %4481 = vmatpush1.bf16.msra.mxu0 %v4418
        %4482 = vmatprep.subr.bf16.mxu0 %v4421
        %4483 = vmatpush1.bf16.msra.mxu0 %v4420
        %4484 = vmatprep.subr.bf16.mxu0 %v4468
        %4485 = vmatpush1.bf16.msra.mxu0 %v4465
        %4486 = vmatprep.subr.bf16.mxu0 0
        %4487 = vmatpush1.bf16.msra.mxu0 0
        %4488 = vmatprep.subr.bf16.mxu0 0
        %4489 = vmatpush1.bf16.msra.mxu0 0
        %4490 = vmatprep.subr.bf16.mxu0 0
        %4491 = vmatpush1.bf16.msra.mxu0 0
        %4492 = vmatprep.subr.bf16.mxu0 0
        %4493 = vmatpush1.bf16.msra.mxu0 0
        %4494 = vmatprep.subr.bf16.mxu0 0
        %4495 = vmatpush1.bf16.msra.mxu0 0
        %4496 = vmatprep.subr.bf16.mxu0 0
        %4497 = vmatpush1.bf16.msra.mxu0 0
        %4498 = vmatprep.subr.bf16.mxu0 0
        %4499 = vmatpush1.bf16.msra.mxu0 0
        %4500 = vmatprep.subr.bf16.mxu0 0
        %4501 = vmatpush1.bf16.msra.mxu0 0
        %4502 = vmatprep.mubr.bf16.mxu0 0
        %4503 = vmatmul.mubr.bf16.gmra.mrb[0].mxu0 %v4453
        %v4504 = vpop.f32.mrb[0].mxu0
        %v4505 = vadd.f32 0.0, %v4504
        %v4506 = vpop.f32.mrb[0].mxu0
        %v4507 = vadd.f32 0.0, %v4506
        %v4508 = vpop.f32.mrb[0].mxu0
        %v4509 = vadd.f32 0.0, %v4508
        %v4510 = vpop.f32.mrb[0].mxu0
        %v4511 = vadd.f32 0.0, %v4510
        %4512 = vmatprep.mubr.bf16.mxu0 0
        %4513 = vmatmul.mubr.bf16.gmra.mrb[0].mxu0 %v4456
        %v4514 = vpop.f32.mrb[0].mxu0
        %v4515 = vadd.f32 0.0, %v4514
        %v4516 = vpop.f32.mrb[0].mxu0
        %v4517 = vadd.f32 0.0, %v4516
        %v4518 = vpop.f32.mrb[0].mxu0
        %v4519 = vadd.f32 0.0, %v4518
        %v4520 = vpop.f32.mrb[0].mxu0
        %v4521 = vadd.f32 0.0, %v4520
        %4522 = vmatprep.mubr.bf16.mxu0 0
        %4523 = vmatmul.mubr.bf16.gmra.mrb[0].mxu0 %v4459
        %v4524 = vpop.f32.mrb[0].mxu0
        %v4525 = vadd.f32 0.0, %v4524
        %v4526 = vpop.f32.mrb[0].mxu0
        %v4527 = vadd.f32 0.0, %v4526
        %v4528 = vpop.f32.mrb[0].mxu0
        %v4529 = vadd.f32 0.0, %v4528
        %v4530 = vpop.f32.mrb[0].mxu0
        %v4531 = vadd.f32 0.0, %v4530
        %4532 = vmatprep.mubr.bf16.mxu0 0
        %4533 = vmatmul.mubr.bf16.gmra.mrb[0].mxu0 %v4462
        %v4534 = vpop.f32.mrb[0].mxu0
        %v4535 = vadd.f32 0.0, %v4534
        %v4536 = vpop.f32.mrb[0].mxu0
        %v4537 = vadd.f32 0.0, %v4536
        %v4538 = vpop.f32.mrb[0].mxu0
        %v4539 = vadd.f32 0.0, %v4538
        %v4540 = vpop.f32.mrb[0].mxu0
        %v4541 = vadd.f32 0.0, %v4540
        %4542 = vdwg.mxu0
        %v4543 = vld [vmem:[%s14] sm:$0xf]
        %v4544 = vld [vmem:[%s14 + $0x4] sm:$0xf]
        %v4545 = vld [vmem:[%s14 + $0x8] sm:$0xf]
        %v4546 = vld [vmem:[%s14 + $0xc] sm:$0xf]
        %v4547 = vld [vmem:[%s14 + $0x10] sm:$0xf]
        %v4548 = vld [vmem:[%s14 + $0x14] sm:$0xf]
        %v4549 = vld [vmem:[%s14 + $0x18] sm:$0xf]
        %v4550 = vld [vmem:[%s14 + $0x1c] sm:$0xf]
        %v4559 = vunpack.c.l.b16 %v4543
        %v4560 = vunpack.c.l.b16 %v4544
        %v4561 = vunpack.c.l.b16 %v4545
        %v4562 = vunpack.c.l.b16 %v4546
        %v4563 = vunpack.c.l.b16 %v4547
        %v4564 = vunpack.c.l.b16 %v4548
        %v4565 = vunpack.c.l.b16 %v4549
        %v4566 = vunpack.c.l.b16 %v4550
        %v4567 = vpack.c.b16 %v4560, %v4559
        %v4568 = vpack.c.b16 %v4562, %v4561
        %v4569 = vpack.c.b16 %v4564, %v4563
        %v4570 = vpack.c.b16 %v4566, %v4565
        %v4572 = vsel %vm2532, %v4567, 0
        %v4575 = vsel %vm2532, %v4568, 0
        %v4578 = vsel %vm2532, %v4569, 0
        %v4581 = vsel %vm2532, %v4570, 0
        %4583 = vmatprep.subr.bf16.mxu0 %v4409
        %4584 = vmatpush1.bf16.msra.mxu0 %v4408
        %4585 = vmatprep.subr.bf16.mxu0 %v4411
        %4586 = vmatpush1.bf16.msra.mxu0 %v4410
        %4587 = vmatprep.subr.bf16.mxu0 %v4413
        %4588 = vmatpush1.bf16.msra.mxu0 %v4412
        %4589 = vmatprep.subr.bf16.mxu0 %v4415
        %4590 = vmatpush1.bf16.msra.mxu0 %v4414
        %4591 = vmatprep.subr.bf16.mxu0 %v4417
        %4592 = vmatpush1.bf16.msra.mxu0 %v4416
        %4593 = vmatprep.subr.bf16.mxu0 %v4419
        %4594 = vmatpush1.bf16.msra.mxu0 %v4418
        %4595 = vmatprep.subr.bf16.mxu0 %v4421
        %4596 = vmatpush1.bf16.msra.mxu0 %v4420
        %4597 = vmatprep.subr.bf16.mxu0 %v4468
        %4598 = vmatpush1.bf16.msra.mxu0 %v4465
        %4599 = vmatprep.subr.bf16.mxu0 0
        %4600 = vmatpush1.bf16.msra.mxu0 0
        %4601 = vmatprep.subr.bf16.mxu0 0
        %4602 = vmatpush1.bf16.msra.mxu0 0
        %4603 = vmatprep.subr.bf16.mxu0 0
        %4604 = vmatpush1.bf16.msra.mxu0 0
        %4605 = vmatprep.subr.bf16.mxu0 0
        %4606 = vmatpush1.bf16.msra.mxu0 0
        %4607 = vmatprep.subr.bf16.mxu0 0
        %4608 = vmatpush1.bf16.msra.mxu0 0
        %4609 = vmatprep.subr.bf16.mxu0 0
        %4610 = vmatpush1.bf16.msra.mxu0 0
        %4611 = vmatprep.subr.bf16.mxu0 0
        %4612 = vmatpush1.bf16.msra.mxu0 0
        %4613 = vmatprep.subr.bf16.mxu0 0
        %4614 = vmatpush1.bf16.msra.mxu0 0
        %4615 = vmatprep.mubr.bf16.mxu0 0
        %4616 = vmatmul.mubr.bf16.gmra.mrb[0].mxu0 %v4572
        %v4617 = vpop.f32.mrb[0].mxu0
        %v4618 = vadd.f32 0.0, %v4617
        %v4619 = vpop.f32.mrb[0].mxu0
        %v4620 = vadd.f32 0.0, %v4619
        %v4621 = vpop.f32.mrb[0].mxu0
        %v4622 = vadd.f32 0.0, %v4621
        %v4623 = vpop.f32.mrb[0].mxu0
        %v4624 = vadd.f32 0.0, %v4623
        %4625 = vmatprep.mubr.bf16.mxu0 0
        %4626 = vmatmul.mubr.bf16.gmra.mrb[0].mxu0 %v4575
        %v4627 = vpop.f32.mrb[0].mxu0
        %v4628 = vadd.f32 0.0, %v4627
        %v4629 = vpop.f32.mrb[0].mxu0
        %v4630 = vadd.f32 0.0, %v4629
        %v4631 = vpop.f32.mrb[0].mxu0
        %v4632 = vadd.f32 0.0, %v4631
        %v4633 = vpop.f32.mrb[0].mxu0
        %v4634 = vadd.f32 0.0, %v4633
        %4635 = vmatprep.mubr.bf16.mxu0 0
        %4636 = vmatmul.mubr.bf16.gmra.mrb[0].mxu0 %v4578
        %v4637 = vpop.f32.mrb[0].mxu0
        %v4638 = vadd.f32 0.0, %v4637
        %v4639 = vpop.f32.mrb[0].mxu0
        %v4640 = vadd.f32 0.0, %v4639
        %v4641 = vpop.f32.mrb[0].mxu0
        %v4642 = vadd.f32 0.0, %v4641
        %v4643 = vpop.f32.mrb[0].mxu0
        %v4644 = vadd.f32 0.0, %v4643
        %4645 = vmatprep.mubr.bf16.mxu0 0
        %4646 = vmatmul.mubr.bf16.gmra.mrb[0].mxu0 %v4581
        %v4647 = vpop.f32.mrb[0].mxu0
        %v4648 = vadd.f32 0.0, %v4647
        %v4649 = vpop.f32.mrb[0].mxu0
        %v4650 = vadd.f32 0.0, %v4649
        %v4651 = vpop.f32.mrb[0].mxu0
        %v4652 = vadd.f32 0.0, %v4651
        %v4653 = vpop.f32.mrb[0].mxu0
        %v4654 = vadd.f32 0.0, %v4653
        %4655 = vdwg.mxu0
        %v4656 = vmax.f32 %v4505, %v4618
        %v4657 = vmax.f32 %v4507, %v4620
        %v4658 = vmax.f32 %v4509, %v4622
        %v4659 = vmax.f32 %v4511, %v4624
        %v4660 = vmax.f32 %v4515, %v4628
        %v4661 = vmax.f32 %v4517, %v4630
        %v4662 = vmax.f32 %v4519, %v4632
        %v4663 = vmax.f32 %v4521, %v4634
        %v4664 = vmax.f32 %v4525, %v4638
        %v4665 = vmax.f32 %v4527, %v4640
        %v4666 = vmax.f32 %v4529, %v4642
        %v4667 = vmax.f32 %v4531, %v4644
        %v4668 = vmax.f32 %v4535, %v4648
        %v4669 = vmax.f32 %v4537, %v4650
        %v4670 = vmax.f32 %v4539, %v4652
        %v4671 = vmax.f32 %v4541, %v4654
        %v4672 = vld [vmem:[%s15] sm:$0xf]
        %v4673 = vld [vmem:[%s15 + $0x4] sm:$0xf]
        %v4674 = vld [vmem:[%s15 + $0x8] sm:$0xf]
        %v4675 = vld [vmem:[%s15 + $0xc] sm:$0xf]
        %v4676 = vld [vmem:[%s15 + $0x10] sm:$0xf]
        %v4677 = vld [vmem:[%s15 + $0x14] sm:$0xf]
        %v4678 = vld [vmem:[%s15 + $0x18] sm:$0xf]
        %v4679 = vld [vmem:[%s15 + $0x1c] sm:$0xf]
        %v4680 = vld [vmem:[%s15 + $0x20] sm:$0xf]
        %v4681 = vld [vmem:[%s15 + $0x24] sm:$0xf]
        %v4682 = vld [vmem:[%s15 + $0x28] sm:$0xf]
        %v4683 = vld [vmem:[%s15 + $0x2c] sm:$0xf]
        %v4684 = vld [vmem:[%s15 + $0x30] sm:$0xf]
        %v4685 = vld [vmem:[%s15 + $0x34] sm:$0xf]
        %v4686 = vld [vmem:[%s15 + $0x38] sm:$0xf]
        %v4687 = vld [vmem:[%s15 + $0x3c] sm:$0xf]
        %v4688 = vld [vmem:[%s15 + $0x40] sm:$0xf]
        %v4689 = vld [vmem:[%s15 + $0x44] sm:$0xf]
        %v4690 = vld [vmem:[%s15 + $0x48] sm:$0xf]
        %v4691 = vld [vmem:[%s15 + $0x4c] sm:$0xf]
        %v4692 = vpack.c.bf16 %v4658, %v4656
        %v4693 = vpack.c.bf16 %v4659, %v4657
        %v4694 = vpack.c.bf16 %v4662, %v4660
        %v4695 = vpack.c.bf16 %v4663, %v4661
        %v4696 = vpack.c.bf16 %v4666, %v4664
        %v4697 = vpack.c.bf16 %v4667, %v4665
        %v4698 = vpack.c.bf16 %v4670, %v4668
        %v4699 = vpack.c.bf16 %v4671, %v4669
        %v4720 = vunpack.c.l.b16 %v4672
        %v4721 = vunpack.c.l.b16 %v4673
        %v4722 = vunpack.c.l.b16 %v4674
        %v4723 = vunpack.c.l.b16 %v4675
        %v4724 = vunpack.c.l.b16 %v4676
        %v4725 = vunpack.c.l.b16 %v4677
        %v4726 = vunpack.c.l.b16 %v4678
        %v4727 = vunpack.c.l.b16 %v4679
        %v4728 = vunpack.c.l.b16 %v4680
        %v4729 = vunpack.c.l.b16 %v4681
        %v4730 = vunpack.c.l.b16 %v4682
        %v4731 = vunpack.c.l.b16 %v4683
        %v4732 = vunpack.c.l.b16 %v4684
        %v4733 = vunpack.c.l.b16 %v4685
        %v4734 = vunpack.c.l.b16 %v4686
        %v4735 = vunpack.c.l.b16 %v4687
        %v4736 = vunpack.c.l.b16 %v4688
        %v4737 = vunpack.c.l.b16 %v4689
        %v4738 = vunpack.c.l.b16 %v4690
        %v4739 = vunpack.c.l.b16 %v4691
        %v4740 = vpack.c.b16 %v4721, %v4720
        %v4741 = vpack.c.b16 %v4723, %v4722
        %v4742 = vpack.c.b16 %v4725, %v4724
        %v4743 = vpack.c.b16 %v4727, %v4726
        %v4744 = vpack.c.b16 %v4729, %v4728
        %v4745 = vpack.c.b16 %v4731, %v4730
        %v4746 = vpack.c.b16 %v4733, %v4732
        %v4747 = vpack.c.b16 %v4735, %v4734
        %v4748 = vpack.c.b16 %v4737, %v4736
        %v4749 = vpack.c.b16 %v4739, %v4738
        %v4761 = vsel %vm1445, %v4693, 0
        %v4764 = vsel %vm1445, %v4695, 0
        %v4767 = vsel %vm1445, %v4697, 0
        %v4770 = vsel %vm1445, %v4699, 0
        %4772 = vmatprep.subr.bf16.mxu0 0
        %4773 = vmatpush1.bf16.msra.mxu0 %v4740
        %4774 = vmatprep.subr.bf16.mxu0 0
        %4775 = vmatpush1.bf16.msra.mxu0 %v4741
        %4776 = vmatprep.subr.bf16.mxu0 0
        %4777 = vmatpush1.bf16.msra.mxu0 %v4742
        %4778 = vmatprep.subr.bf16.mxu0 0
        %4779 = vmatpush1.bf16.msra.mxu0 %v4743
        %4780 = vmatprep.subr.bf16.mxu0 0
        %4781 = vmatpush1.bf16.msra.mxu0 %v4744
        %4782 = vmatprep.subr.bf16.mxu0 0
        %4783 = vmatpush1.bf16.msra.mxu0 %v4745
        %4784 = vmatprep.subr.bf16.mxu0 0
        %4785 = vmatpush1.bf16.msra.mxu0 %v4746
        %4786 = vmatprep.subr.bf16.mxu0 0
        %4787 = vmatpush1.bf16.msra.mxu0 %v4747
        %4788 = vmatprep.subr.bf16.mxu0 0
        %4789 = vmatpush1.bf16.msra.mxu0 %v4748
        %4790 = vmatprep.subr.bf16.mxu0 0
        %4791 = vmatpush1.bf16.msra.mxu0 %v4749
        %4792 = vmatprep.subr.bf16.mxu0 0
        %4793 = vmatpush1.bf16.msra.mxu0 0
        %4794 = vmatprep.subr.bf16.mxu0 0
        %4795 = vmatpush1.bf16.msra.mxu0 0
        %4796 = vmatprep.subr.bf16.mxu0 0
        %4797 = vmatpush1.bf16.msra.mxu0 0
        %4798 = vmatprep.subr.bf16.mxu0 0
        %4799 = vmatpush1.bf16.msra.mxu0 0
        %4800 = vmatprep.subr.bf16.mxu0 0
        %4801 = vmatpush1.bf16.msra.mxu0 0
        %4802 = vmatprep.subr.bf16.mxu0 0
        %4803 = vmatpush1.bf16.msra.mxu0 0
        %4804 = vmatprep.mubr.bf16.mxu0 %v4761
        %4805 = vmatmul.mubr.bf16.gmra.mrb[0].mxu0 %v4692
        %v4806 = vpop.f32.mrb[0].mxu0
        %v4807 = vadd.f32 0.0, %v4806
        %v4808 = vpop.f32.mrb[0].mxu0
        %v4809 = vpop.f32.mrb[0].mxu0
        %v4810 = vadd.f32 0.0, %v4809
        %v4811 = vpop.f32.mrb[0].mxu0
        %4812 = vmatprep.mubr.bf16.mxu0 %v4764
        %4813 = vmatmul.mubr.bf16.gmra.mrb[0].mxu0 %v4694
        %v4814 = vpop.f32.mrb[0].mxu0
        %v4815 = vadd.f32 0.0, %v4814
        %v4816 = vpop.f32.mrb[0].mxu0
        %v4817 = vpop.f32.mrb[0].mxu0
        %v4818 = vadd.f32 0.0, %v4817
        %v4819 = vpop.f32.mrb[0].mxu0
        %4820 = vmatprep.mubr.bf16.mxu0 %v4767
        %4821 = vmatmul.mubr.bf16.gmra.mrb[0].mxu0 %v4696
        %v4822 = vpop.f32.mrb[0].mxu0
        %v4823 = vadd.f32 0.0, %v4822
        %v4824 = vpop.f32.mrb[0].mxu0
        %v4825 = vpop.f32.mrb[0].mxu0
        %v4826 = vadd.f32 0.0, %v4825
        %v4827 = vpop.f32.mrb[0].mxu0
        %4828 = vmatprep.mubr.bf16.mxu0 %v4770
        %4829 = vmatmul.mubr.bf16.gmra.mrb[0].mxu0 %v4698
        %v4830 = vpop.f32.mrb[0].mxu0
        %v4831 = vadd.f32 0.0, %v4830
        %v4832 = vpop.f32.mrb[0].mxu0
        %v4833 = vpop.f32.mrb[0].mxu0
        %v4834 = vadd.f32 0.0, %v4833
        %v4835 = vpop.f32.mrb[0].mxu0
        %4836 = vdwg.mxu0
        %v4837 = vld [vmem:[%s16] sm:$0xf]
        %v4838 = vld [vmem:[%s16 + $0x4] sm:$0xf]
        %v4839 = vld [vmem:[%s16 + $0x8] sm:$0xf]
        %v4840 = vld [vmem:[%s16 + $0xc] sm:$0xf]
        %v4841 = vld [vmem:[%s16 + $0x10] sm:$0xf]
        %v4842 = vld [vmem:[%s16 + $0x14] sm:$0xf]
        %v4843 = vld [vmem:[%s16 + $0x18] sm:$0xf]
        %v4844 = vld [vmem:[%s16 + $0x1c] sm:$0xf]
        %v4845 = vld [vmem:[%s16 + $0x20] sm:$0xf]
        %v4846 = vld [vmem:[%s16 + $0x24] sm:$0xf]
        %v4847 = vld [vmem:[%s16 + $0x28] sm:$0xf]
        %v4848 = vld [vmem:[%s16 + $0x2c] sm:$0xf]
        %v4849 = vld [vmem:[%s16 + $0x30] sm:$0xf]
        %v4850 = vld [vmem:[%s16 + $0x34] sm:$0xf]
        %v4851 = vld [vmem:[%s16 + $0x38] sm:$0xf]
        %v4852 = vld [vmem:[%s16 + $0x3c] sm:$0xf]
        %v4853 = vld [vmem:[%s16 + $0x40] sm:$0xf]
        %v4854 = vld [vmem:[%s16 + $0x44] sm:$0xf]
        %v4855 = vld [vmem:[%s16 + $0x48] sm:$0xf]
        %v4856 = vld [vmem:[%s16 + $0x4c] sm:$0xf]
        %v4877 = vunpack.c.l.b16 %v4837
        %v4878 = vunpack.c.l.b16 %v4838
        %v4879 = vunpack.c.l.b16 %v4839
        %v4880 = vunpack.c.l.b16 %v4840
        %v4881 = vunpack.c.l.b16 %v4841
        %v4882 = vunpack.c.l.b16 %v4842
        %v4883 = vunpack.c.l.b16 %v4843
        %v4884 = vunpack.c.l.b16 %v4844
        %v4885 = vunpack.c.l.b16 %v4845
        %v4886 = vunpack.c.l.b16 %v4846
        %v4887 = vunpack.c.l.b16 %v4847
        %v4888 = vunpack.c.l.b16 %v4848
        %v4889 = vunpack.c.l.b16 %v4849
        %v4890 = vunpack.c.l.b16 %v4850
        %v4891 = vunpack.c.l.b16 %v4851
        %v4892 = vunpack.c.l.b16 %v4852
        %v4893 = vunpack.c.l.b16 %v4853
        %v4894 = vunpack.c.l.b16 %v4854
        %v4895 = vunpack.c.l.b16 %v4855
        %v4896 = vunpack.c.l.b16 %v4856
        %v4897 = vpack.c.b16 %v4878, %v4877
        %v4898 = vpack.c.b16 %v4880, %v4879
        %v4899 = vpack.c.b16 %v4882, %v4881
        %v4900 = vpack.c.b16 %v4884, %v4883
        %v4901 = vpack.c.b16 %v4886, %v4885
        %v4902 = vpack.c.b16 %v4888, %v4887
        %v4903 = vpack.c.b16 %v4890, %v4889
        %v4904 = vpack.c.b16 %v4892, %v4891
        %v4905 = vpack.c.b16 %v4894, %v4893
        %v4906 = vpack.c.b16 %v4896, %v4895
        %4917 = vmatprep.subr.bf16.mxu0 0
        %4918 = vmatpush1.bf16.msra.mxu0 %v4897
        %4919 = vmatprep.subr.bf16.mxu0 0
        %4920 = vmatpush1.bf16.msra.mxu0 %v4898
        %4921 = vmatprep.subr.bf16.mxu0 0
        %4922 = vmatpush1.bf16.msra.mxu0 %v4899
        %4923 = vmatprep.subr.bf16.mxu0 0
        %4924 = vmatpush1.bf16.msra.mxu0 %v4900
        %4925 = vmatprep.subr.bf16.mxu0 0
        %4926 = vmatpush1.bf16.msra.mxu0 %v4901
        %4927 = vmatprep.subr.bf16.mxu0 0
        %4928 = vmatpush1.bf16.msra.mxu0 %v4902
        %4929 = vmatprep.subr.bf16.mxu0 0
        %4930 = vmatpush1.bf16.msra.mxu0 %v4903
        %4931 = vmatprep.subr.bf16.mxu0 0
        %4932 = vmatpush1.bf16.msra.mxu0 %v4904
        %4933 = vmatprep.subr.bf16.mxu0 0
        %4934 = vmatpush1.bf16.msra.mxu0 %v4905
        %4935 = vmatprep.subr.bf16.mxu0 0
        %4936 = vmatpush1.bf16.msra.mxu0 %v4906
        %4937 = vmatprep.subr.bf16.mxu0 0
        %4938 = vmatpush1.bf16.msra.mxu0 0
        %4939 = vmatprep.subr.bf16.mxu0 0
        %4940 = vmatpush1.bf16.msra.mxu0 0
        %4941 = vmatprep.subr.bf16.mxu0 0
        %4942 = vmatpush1.bf16.msra.mxu0 0
        %4943 = vmatprep.subr.bf16.mxu0 0
        %4944 = vmatpush1.bf16.msra.mxu0 0
        %4945 = vmatprep.subr.bf16.mxu0 0
        %4946 = vmatpush1.bf16.msra.mxu0 0
        %4947 = vmatprep.subr.bf16.mxu0 0
        %4948 = vmatpush1.bf16.msra.mxu0 0
        %4949 = vmatprep.mubr.bf16.mxu0 %v4761
        %4950 = vmatmul.mubr.bf16.gmra.mrb[0].mxu0 %v4692
        %v4951 = vpop.f32.mrb[0].mxu0
        %v4952 = vadd.f32 0.0, %v4951
        %v4953 = vpop.f32.mrb[0].mxu0
        %v4954 = vpop.f32.mrb[0].mxu0
        %v4955 = vadd.f32 0.0, %v4954
        %v4956 = vpop.f32.mrb[0].mxu0
        %4957 = vmatprep.mubr.bf16.mxu0 %v4764
        %4958 = vmatmul.mubr.bf16.gmra.mrb[0].mxu0 %v4694
        %v4959 = vpop.f32.mrb[0].mxu0
        %v4960 = vadd.f32 0.0, %v4959
        %v4961 = vpop.f32.mrb[0].mxu0
        %v4962 = vpop.f32.mrb[0].mxu0
        %v4963 = vadd.f32 0.0, %v4962
        %v4964 = vpop.f32.mrb[0].mxu0
        %4965 = vmatprep.mubr.bf16.mxu0 %v4767
        %4966 = vmatmul.mubr.bf16.gmra.mrb[0].mxu0 %v4696
        %v4967 = vpop.f32.mrb[0].mxu0
        %v4968 = vadd.f32 0.0, %v4967
        %v4969 = vpop.f32.mrb[0].mxu0
        %v4970 = vpop.f32.mrb[0].mxu0
        %v4971 = vadd.f32 0.0, %v4970
        %v4972 = vpop.f32.mrb[0].mxu0
        %4973 = vmatprep.mubr.bf16.mxu0 %v4770
        %4974 = vmatmul.mubr.bf16.gmra.mrb[0].mxu0 %v4698
        %v4975 = vpop.f32.mrb[0].mxu0
        %v4976 = vadd.f32 0.0, %v4975
        %v4977 = vpop.f32.mrb[0].mxu0
        %v4978 = vpop.f32.mrb[0].mxu0
        %v4979 = vadd.f32 0.0, %v4978
        %v4980 = vpop.f32.mrb[0].mxu0
        %4981 = vdwg.mxu0
        %v4982 = vmax.f32 %v4807, %v4952
        %v4983 = vmax.f32 %v4810, %v4955
        %v4984 = vmax.f32 %v4815, %v4960
        %v4985 = vmax.f32 %v4818, %v4963
        %v4986 = vmax.f32 %v4823, %v4968
        %v4987 = vmax.f32 %v4826, %v4971
        %v4988 = vmax.f32 %v4831, %v4976
        %v4989 = vmax.f32 %v4834, %v4979
        %v4998 = vrot.slane %v4982, 1
        %v4999 = vrot.slane %v4983, 1
        %v5000 = vsel %vm803, %v4998, %v4999
        %v5001 = vrot.slane %v4984, 1
        %v5002 = vsel %vm803, %v4999, %v5001
        %v5003 = vrot.slane %v4985, 1
        %v5004 = vsel %vm803, %v5001, %v5003
        %v5005 = vrot.slane %v4986, 1
        %v5006 = vsel %vm803, %v5003, %v5005
        %v5007 = vrot.slane %v4987, 1
        %v5008 = vsel %vm803, %v5005, %v5007
        %v5009 = vrot.slane %v4988, 1
        %v5010 = vsel %vm803, %v5007, %v5009
        %v5011 = vrot.slane %v4989, 1
        %v5012 = vsel %vm803, %v5009, %v5011
        %5013 = vrot.lane.b32.xlu0 %v5000, 80
        %v5014 = vpop.permute.xlu0 %5013
        %5015 = vrot.lane.b32.xlu0 %v5002, 80
        %v5016 = vpop.permute.xlu0 %5015
        %5017 = vrot.lane.b32.xlu0 %v5004, 80
        %v5018 = vpop.permute.xlu0 %5017
        %5019 = vrot.lane.b32.xlu0 %v5006, 80
        %v5020 = vpop.permute.xlu0 %5019
        %5021 = vrot.lane.b32.xlu0 %v5008, 80
        %v5022 = vpop.permute.xlu0 %5021
        %5023 = vrot.lane.b32.xlu0 %v5010, 80
        %v5024 = vpop.permute.xlu0 %5023
        %5025 = vrot.lane.b32.xlu0 %v5012, 80
        %v5026 = vpop.permute.xlu0 %5025
        %5027 = vrot.lane.b32.xlu0 %v5011, 80
        %v5028 = vpop.permute.xlu0 %5027
        %v5037 = vrot.slane %v4982, 2
        %v5038 = vrot.slane %v4983, 2
        %v5039 = vsel %vm963, %v5037, %v5038
        %v5040 = vrot.slane %v4984, 2
        %v5041 = vsel %vm963, %v5038, %v5040
        %v5042 = vrot.slane %v4985, 2
        %v5043 = vsel %vm963, %v5040, %v5042
        %v5044 = vrot.slane %v4986, 2
        %v5045 = vsel %vm963, %v5042, %v5044
        %v5046 = vrot.slane %v4987, 2
        %v5047 = vsel %vm963, %v5044, %v5046
        %v5048 = vrot.slane %v4988, 2
        %v5049 = vsel %vm963, %v5046, %v5048
        %v5050 = vrot.slane %v4989, 2
        %v5051 = vsel %vm963, %v5048, %v5050
        %5052 = vrot.lane.b32.xlu0 %v5039, 32
        %v5053 = vpop.permute.xlu0 %5052
        %5054 = vrot.lane.b32.xlu0 %v5041, 32
        %v5055 = vpop.permute.xlu0 %5054
        %5056 = vrot.lane.b32.xlu0 %v5043, 32
        %v5057 = vpop.permute.xlu0 %5056
        %5058 = vrot.lane.b32.xlu0 %v5045, 32
        %v5059 = vpop.permute.xlu0 %5058
        %5060 = vrot.lane.b32.xlu0 %v5047, 32
        %v5061 = vpop.permute.xlu0 %5060
        %5062 = vrot.lane.b32.xlu0 %v5049, 32
        %v5063 = vpop.permute.xlu0 %5062
        %5064 = vrot.lane.b32.xlu0 %v5051, 32
        %v5065 = vpop.permute.xlu0 %5064
        %5066 = vrot.lane.b32.xlu0 %v5050, 32
        %v5067 = vpop.permute.xlu0 %5066
        %v5076 = vsel %vm3739, %v4982, %v5014
        %v5077 = vsel %vm3739, %v4983, %v5016
        %v5078 = vsel %vm3739, %v4984, %v5018
        %v5079 = vsel %vm3739, %v4985, %v5020
        %v5080 = vsel %vm3739, %v4986, %v5022
        %v5081 = vsel %vm3739, %v4987, %v5024
        %v5082 = vsel %vm3739, %v4988, %v5026
        %v5083 = vsel %vm3739, %v4989, %v5028
        %v5084 = vsel %vm1445, %v5014, %v5053
        %v5085 = vsel %vm1445, %v5016, %v5055
        %v5086 = vsel %vm1445, %v5018, %v5057
        %v5087 = vsel %vm1445, %v5020, %v5059
        %v5088 = vsel %vm1445, %v5022, %v5061
        %v5089 = vsel %vm1445, %v5024, %v5063
        %v5090 = vsel %vm1445, %v5026, %v5065
        %v5091 = vsel %vm1445, %v5028, %v5067
        %v5092 = vld [vmem:[%s5] sm:$0xf]
        %v5093 = vld [vmem:[%s5 + $0x4] sm:$0xf]
        %v5094 = vld [vmem:[%s5 + $0x8] sm:$0xf]
        %v5095 = vld [vmem:[%s5 + $0xc] sm:$0xf]
        %v5096 = vld [vmem:[%s5 + $0x10] sm:$0xf]
        %v5097 = vld [vmem:[%s5 + $0x14] sm:$0xf]
        %v5098 = vld [vmem:[%s5 + $0x18] sm:$0xf]
        %v5099 = vld [vmem:[%s5 + $0x1c] sm:$0xf]
        %v5100 = vld [vmem:[%s5 + $0x20] sm:$0xf]
        %v5101 = vld [vmem:[%s5 + $0x24] sm:$0xf]
        %v5102 = vld [vmem:[%s5 + $0x28] sm:$0xf]
        %v5103 = vld [vmem:[%s5 + $0x2c] sm:$0xf]
        %v5104 = vld [vmem:[%s5 + $0x30] sm:$0xf]
        %v5105 = vld [vmem:[%s5 + $0x34] sm:$0xf]
        %v5106 = vld [vmem:[%s5 + $0x38] sm:$0xf]
        %v5107 = vld [vmem:[%s5 + $0x3c] sm:$0xf]
        %v5108 = vld [vmem:[%s5 + $0x40] sm:$0xf]
        %v5109 = vld [vmem:[%s5 + $0x44] sm:$0xf]
        %v5110 = vld [vmem:[%s5 + $0x48] sm:$0xf]
        %v5111 = vld [vmem:[%s5 + $0x4c] sm:$0xf]
        %v5112 = vld [vmem:[%s5 + $0x50] sm:$0xf]
        %v5113 = vld [vmem:[%s5 + $0x54] sm:$0xf]
        %v5114 = vld [vmem:[%s5 + $0x58] sm:$0xf]
        %v5115 = vld [vmem:[%s5 + $0x5c] sm:$0xf]
        %v5116 = vld [vmem:[%s5 + $0x60] sm:$0xf]
        %v5117 = vld [vmem:[%s5 + $0x64] sm:$0xf]
        %v5118 = vld [vmem:[%s5 + $0x68] sm:$0xf]
        %v5119 = vld [vmem:[%s5 + $0x6c] sm:$0xf]
        %v5120 = vld [vmem:[%s5 + $0x70] sm:$0xf]
        %v5121 = vld [vmem:[%s5 + $0x74] sm:$0xf]
        %v5122 = vpack.c.bf16 %v5077, %v5076
        %v5123 = vpack.c.bf16 %v5085, %v5084
        %v5124 = vpack.c.bf16 %v5079, %v5078
        %v5125 = vpack.c.bf16 %v5087, %v5086
        %v5126 = vpack.c.bf16 %v5081, %v5080
        %v5127 = vpack.c.bf16 %v5089, %v5088
        %v5128 = vpack.c.bf16 %v5083, %v5082
        %v5129 = vpack.c.bf16 %v5091, %v5090
        %v5130 = vld [vmem:[%s6] sm:$0x1]
        %v5132 = vlaneseq
        %v5133 = vshrl.u32 %v5132, 7
        %v5134 = vsub.s32 0, %v5133
        %v5135 = vrot.slane %v5130, %v5134
        %v5167 = vunpack.c.l.b16 %v5092
        %v5168 = vunpack.c.l.b16 %v5093
        %v5169 = vunpack.c.l.b16 %v5094
        %v5170 = vunpack.c.l.b16 %v5095
        %v5171 = vunpack.c.l.b16 %v5096
        %v5172 = vunpack.c.l.b16 %v5097
        %v5173 = vunpack.c.l.b16 %v5098
        %v5174 = vunpack.c.l.b16 %v5099
        %v5175 = vunpack.c.l.b16 %v5100
        %v5176 = vunpack.c.l.b16 %v5101
        %v5177 = vunpack.c.l.b16 %v5102
        %v5178 = vunpack.c.l.b16 %v5103
        %v5179 = vunpack.c.l.b16 %v5104
        %v5180 = vunpack.c.l.b16 %v5105
        %v5181 = vunpack.c.l.b16 %v5106
        %v5182 = vunpack.c.l.b16 %v5107
        %v5183 = vunpack.c.l.b16 %v5108
        %v5184 = vunpack.c.l.b16 %v5109
        %v5185 = vunpack.c.l.b16 %v5110
        %v5186 = vunpack.c.l.b16 %v5111
        %v5187 = vunpack.c.l.b16 %v5112
        %v5188 = vunpack.c.l.b16 %v5113
        %v5189 = vunpack.c.l.b16 %v5114
        %v5190 = vunpack.c.l.b16 %v5115
        %v5191 = vunpack.c.l.b16 %v5116
        %v5192 = vunpack.c.l.b16 %v5117
        %v5193 = vunpack.c.l.b16 %v5118
        %v5194 = vunpack.c.l.b16 %v5119
        %v5195 = vunpack.c.l.b16 %v5120
        %v5196 = vunpack.c.l.b16 %v5121
        %v5197 = vpack.c.b16 %v5168, %v5167
        %v5198 = vpack.c.b16 %v5170, %v5169
        %v5199 = vpack.c.b16 %v5172, %v5171
        %v5200 = vpack.c.b16 %v5174, %v5173
        %v5201 = vpack.c.b16 %v5176, %v5175
        %v5202 = vpack.c.b16 %v5178, %v5177
        %v5203 = vpack.c.b16 %v5180, %v5179
        %v5204 = vpack.c.b16 %v5182, %v5181
        %v5205 = vpack.c.b16 %v5184, %v5183
        %v5206 = vpack.c.b16 %v5186, %v5185
        %v5207 = vpack.c.b16 %v5188, %v5187
        %v5208 = vpack.c.b16 %v5190, %v5189
        %v5209 = vpack.c.b16 %v5192, %v5191
        %v5210 = vpack.c.b16 %v5194, %v5193
        %v5211 = vpack.c.b16 %v5196, %v5195
        %vm5227 = vcmask 916480
        %v5229 = vsel %vm5227, %v5123, 0
        %v5232 = vsel %vm5227, %v5125, 0
        %v5235 = vsel %vm5227, %v5127, 0
        %v5238 = vsel %vm5227, %v5129, 0
        %5240 = vmatprep.subr.bf16.mxu0 0
        %5241 = vmatpush1.bf16.msra.mxu0 %v5197
        %5242 = vmatprep.subr.bf16.mxu0 0
        %5243 = vmatpush1.bf16.msra.mxu0 %v5198
        %5244 = vmatprep.subr.bf16.mxu0 0
        %5245 = vmatpush1.bf16.msra.mxu0 %v5199
        %5246 = vmatprep.subr.bf16.mxu0 0
        %5247 = vmatpush1.bf16.msra.mxu0 %v5200
        %5248 = vmatprep.subr.bf16.mxu0 0
        %5249 = vmatpush1.bf16.msra.mxu0 %v5201
        %5250 = vmatprep.subr.bf16.mxu0 0
        %5251 = vmatpush1.bf16.msra.mxu0 %v5202
        %5252 = vmatprep.subr.bf16.mxu0 0
        %5253 = vmatpush1.bf16.msra.mxu0 %v5203
        %5254 = vmatprep.subr.bf16.mxu0 0
        %5255 = vmatpush1.bf16.msra.mxu0 %v5204
        %5256 = vmatprep.subr.bf16.mxu0 0
        %5257 = vmatpush1.bf16.msra.mxu0 %v5205
        %5258 = vmatprep.subr.bf16.mxu0 0
        %5259 = vmatpush1.bf16.msra.mxu0 %v5206
        %5260 = vmatprep.subr.bf16.mxu0 0
        %5261 = vmatpush1.bf16.msra.mxu0 %v5207
        %5262 = vmatprep.subr.bf16.mxu0 0
        %5263 = vmatpush1.bf16.msra.mxu0 %v5208
        %5264 = vmatprep.subr.bf16.mxu0 0
        %5265 = vmatpush1.bf16.msra.mxu0 %v5209
        %5266 = vmatprep.subr.bf16.mxu0 0
        %5267 = vmatpush1.bf16.msra.mxu0 %v5210
        %5268 = vmatprep.subr.bf16.mxu0 0
        %5269 = vmatpush1.bf16.msra.mxu0 %v5211
        %5270 = vmatprep.subr.bf16.mxu0 0
        %5271 = vmatpush1.bf16.msra.mxu0 0
        %5272 = vmatprep.mubr.bf16.mxu0 %v5229
        %5273 = vmatmul.mubr.bf16.gmra.mrb[0].mxu0 %v5122
        %v5274 = vpop.f32.mrb[0].mxu0
        %v5275 = vadd.f32 %v5135, %v5274
        %v5276 = vpop.f32.mrb[0].mxu0
        %v5277 = vpop.f32.mrb[0].mxu0
        %v5278 = vadd.f32 %v5135, %v5277
        %v5279 = vpop.f32.mrb[0].mxu0
        %5280 = vmatprep.mubr.bf16.mxu0 %v5232
        %5281 = vmatmul.mubr.bf16.gmra.mrb[0].mxu0 %v5124
        %v5282 = vpop.f32.mrb[0].mxu0
        %v5283 = vadd.f32 %v5135, %v5282
        %v5284 = vpop.f32.mrb[0].mxu0
        %v5285 = vpop.f32.mrb[0].mxu0
        %v5286 = vadd.f32 %v5135, %v5285
        %v5287 = vpop.f32.mrb[0].mxu0
        %5288 = vmatprep.mubr.bf16.mxu0 %v5235
        %5289 = vmatmul.mubr.bf16.gmra.mrb[0].mxu0 %v5126
        %v5290 = vpop.f32.mrb[0].mxu0
        %v5291 = vadd.f32 %v5135, %v5290
        %v5292 = vpop.f32.mrb[0].mxu0
        %v5293 = vpop.f32.mrb[0].mxu0
        %v5294 = vadd.f32 %v5135, %v5293
        %v5295 = vpop.f32.mrb[0].mxu0
        %5296 = vmatprep.mubr.bf16.mxu0 %v5238
        %5297 = vmatmul.mubr.bf16.gmra.mrb[0].mxu0 %v5128
        %v5298 = vpop.f32.mrb[0].mxu0
        %v5299 = vadd.f32 %v5135, %v5298
        %v5300 = vpop.f32.mrb[0].mxu0
        %v5301 = vpop.f32.mrb[0].mxu0
        %v5302 = vadd.f32 %v5135, %v5301
        %v5303 = vpop.f32.mrb[0].mxu0
        %5304 = vdwg.mxu0
        %v5305 = vmax.f32 %v5275, 0.0
        %v5306 = vmax.f32 %v5278, 0.0
        %v5307 = vmax.f32 %v5283, 0.0
        %v5308 = vmax.f32 %v5286, 0.0
        %v5309 = vmax.f32 %v5291, 0.0
        %v5310 = vmax.f32 %v5294, 0.0
        %v5311 = vmax.f32 %v5299, 0.0
        %v5312 = vmax.f32 %v5302, 0.0
        %v5321 = vrot.slane %v5305, 1
        %v5322 = vrot.slane %v5306, 1
        %v5323 = vsel %vm803, %v5321, %v5322
        %v5324 = vrot.slane %v5307, 1
        %v5325 = vsel %vm803, %v5322, %v5324
        %v5326 = vrot.slane %v5308, 1
        %v5327 = vsel %vm803, %v5324, %v5326
        %v5328 = vrot.slane %v5309, 1
        %v5329 = vsel %vm803, %v5326, %v5328
        %v5330 = vrot.slane %v5310, 1
        %v5331 = vsel %vm803, %v5328, %v5330
        %v5332 = vrot.slane %v5311, 1
        %v5333 = vsel %vm803, %v5330, %v5332
        %v5334 = vrot.slane %v5312, 1
        %v5335 = vsel %vm803, %v5332, %v5334
        %5336 = vrot.lane.b32.xlu0 %v5323, 96
        %v5337 = vpop.permute.xlu0 %5336
        %5338 = vrot.lane.b32.xlu0 %v5325, 96
        %v5339 = vpop.permute.xlu0 %5338
        %5340 = vrot.lane.b32.xlu0 %v5327, 96
        %v5341 = vpop.permute.xlu0 %5340
        %5342 = vrot.lane.b32.xlu0 %v5329, 96
        %v5343 = vpop.permute.xlu0 %5342
        %5344 = vrot.lane.b32.xlu0 %v5331, 96
        %v5345 = vpop.permute.xlu0 %5344
        %5346 = vrot.lane.b32.xlu0 %v5333, 96
        %v5347 = vpop.permute.xlu0 %5346
        %5348 = vrot.lane.b32.xlu0 %v5335, 96
        %v5349 = vpop.permute.xlu0 %5348
        %5350 = vrot.lane.b32.xlu0 %v5334, 96
        %v5351 = vpop.permute.xlu0 %5350
        %v5360 = vrot.slane %v5305, 2
        %v5361 = vrot.slane %v5306, 2
        %v5362 = vsel %vm963, %v5360, %v5361
        %v5363 = vrot.slane %v5307, 2
        %v5364 = vsel %vm963, %v5361, %v5363
        %v5365 = vrot.slane %v5308, 2
        %v5366 = vsel %vm963, %v5363, %v5365
        %v5367 = vrot.slane %v5309, 2
        %v5368 = vsel %vm963, %v5365, %v5367
        %v5369 = vrot.slane %v5310, 2
        %v5370 = vsel %vm963, %v5367, %v5369
        %v5371 = vrot.slane %v5311, 2
        %v5372 = vsel %vm963, %v5369, %v5371
        %v5373 = vrot.slane %v5312, 2
        %v5374 = vsel %vm963, %v5371, %v5373
        %5375 = vrot.lane.b32.xlu0 %v5362, 64
        %v5376 = vpop.permute.xlu0 %5375
        %5377 = vrot.lane.b32.xlu0 %v5364, 64
        %v5378 = vpop.permute.xlu0 %5377
        %5379 = vrot.lane.b32.xlu0 %v5366, 64
        %v5380 = vpop.permute.xlu0 %5379
        %5381 = vrot.lane.b32.xlu0 %v5368, 64
        %v5382 = vpop.permute.xlu0 %5381
        %5383 = vrot.lane.b32.xlu0 %v5370, 64
        %v5384 = vpop.permute.xlu0 %5383
        %5385 = vrot.lane.b32.xlu0 %v5372, 64
        %v5386 = vpop.permute.xlu0 %5385
        %5387 = vrot.lane.b32.xlu0 %v5374, 64
        %v5388 = vpop.permute.xlu0 %5387
        %5389 = vrot.lane.b32.xlu0 %v5373, 64
        %v5390 = vpop.permute.xlu0 %5389
        %v5399 = vsel %vm1379, %v5305, %v5337
        %v5400 = vsel %vm1379, %v5306, %v5339
        %v5401 = vsel %vm1379, %v5307, %v5341
        %v5402 = vsel %vm1379, %v5308, %v5343
        %v5403 = vsel %vm1379, %v5309, %v5345
        %v5404 = vsel %vm1379, %v5310, %v5347
        %v5405 = vsel %vm1379, %v5311, %v5349
        %v5406 = vsel %vm1379, %v5312, %v5351
        %v5407 = vsel %vm1412, %v5337, %v5376
        %v5408 = vsel %vm1412, %v5339, %v5378
        %v5409 = vsel %vm1412, %v5341, %v5380
        %v5410 = vsel %vm1412, %v5343, %v5382
        %v5411 = vsel %vm1412, %v5345, %v5384
        %v5412 = vsel %vm1412, %v5347, %v5386
        %v5413 = vsel %vm1412, %v5349, %v5388
        %v5414 = vsel %vm1412, %v5351, %v5390
        %v5415 = vld [vmem:[%s7] sm:$0xf]
        %v5416 = vld [vmem:[%s7 + $0x4] sm:$0xf]
        %v5417 = vld [vmem:[%s7 + $0x8] sm:$0xf]
        %v5418 = vld [vmem:[%s7 + $0xc] sm:$0xf]
        %v5419 = vld [vmem:[%s7 + $0x10] sm:$0xf]
        %v5420 = vld [vmem:[%s7 + $0x14] sm:$0xf]
        %v5421 = vld [vmem:[%s7 + $0x18] sm:$0xf]
        %v5422 = vld [vmem:[%s7 + $0x1c] sm:$0xf]
        %v5423 = vld [vmem:[%s7 + $0x20] sm:$0xf]
        %v5424 = vld [vmem:[%s7 + $0x24] sm:$0xf]
        %v5425 = vld [vmem:[%s7 + $0x28] sm:$0xf]
        %v5426 = vld [vmem:[%s7 + $0x2c] sm:$0xf]
        %v5427 = vld [vmem:[%s7 + $0x30] sm:$0xf]
        %v5428 = vld [vmem:[%s7 + $0x34] sm:$0xf]
        %v5429 = vld [vmem:[%s7 + $0x38] sm:$0xf]
        %v5430 = vld [vmem:[%s7 + $0x3c] sm:$0xf]
        %v5431 = vld [vmem:[%s7 + $0x40] sm:$0xf]
        %v5432 = vld [vmem:[%s7 + $0x44] sm:$0xf]
        %v5433 = vld [vmem:[%s7 + $0x48] sm:$0xf]
        %v5434 = vld [vmem:[%s7 + $0x4c] sm:$0xf]
        %v5435 = vld [vmem:[%s7 + $0x50] sm:$0xf]
        %v5436 = vld [vmem:[%s7 + $0x54] sm:$0xf]
        %v5437 = vld [vmem:[%s7 + $0x58] sm:$0xf]
        %v5438 = vld [vmem:[%s7 + $0x5c] sm:$0xf]
        %v5439 = vld [vmem:[%s7 + $0x60] sm:$0xf]
        %v5440 = vld [vmem:[%s7 + $0x64] sm:$0xf]
        %v5441 = vld [vmem:[%s7 + $0x68] sm:$0xf]
        %v5442 = vld [vmem:[%s7 + $0x6c] sm:$0xf]
        %v5443 = vld [vmem:[%s7 + $0x70] sm:$0xf]
        %v5444 = vld [vmem:[%s7 + $0x74] sm:$0xf]
        %v5445 = vld [vmem:[%s7 + $0x78] sm:$0xf]
        %v5446 = vld [vmem:[%s7 + $0x7c] sm:$0xf]
        %v5447 = vld [vmem:[%s7 + $0x80] sm:$0xf]
        %v5448 = vld [vmem:[%s7 + $0x84] sm:$0xf]
        %v5449 = vld [vmem:[%s7 + $0x88] sm:$0xf]
        %v5450 = vld [vmem:[%s7 + $0x8c] sm:$0xf]
        %v5451 = vpack.c.bf16 %v5400, %v5399
        %v5452 = vpack.c.bf16 %v5408, %v5407
        %v5453 = vpack.c.bf16 %v5378, %v5376
        %v5454 = vpack.c.bf16 %v5402, %v5401
        %v5455 = vpack.c.bf16 %v5410, %v5409
        %v5456 = vpack.c.bf16 %v5382, %v5380
        %v5457 = vpack.c.bf16 %v5404, %v5403
        %v5458 = vpack.c.bf16 %v5412, %v5411
        %v5459 = vpack.c.bf16 %v5386, %v5384
        %v5460 = vpack.c.bf16 %v5406, %v5405
        %v5461 = vpack.c.bf16 %v5414, %v5413
        %v5462 = vpack.c.bf16 %v5390, %v5388
        %v5463 = vld [vmem:[%s8] sm:$0x1]
        %v5465 = vlaneseq
        %v5466 = vshrl.u32 %v5465, 7
        %v5467 = vsub.s32 0, %v5466
        %v5468 = vrot.slane %v5463, %v5467
        %v5506 = vunpack.c.l.b16 %v5415
        %v5507 = vunpack.c.l.b16 %v5416
        %v5508 = vunpack.c.l.b16 %v5417
        %v5509 = vunpack.c.l.b16 %v5418
        %v5510 = vunpack.c.l.b16 %v5419
        %v5511 = vunpack.c.l.b16 %v5420
        %v5512 = vunpack.c.l.b16 %v5421
        %v5513 = vunpack.c.l.b16 %v5422
        %v5514 = vunpack.c.l.b16 %v5423
        %v5515 = vunpack.c.l.b16 %v5424
        %v5516 = vunpack.c.l.b16 %v5425
        %v5517 = vunpack.c.l.b16 %v5426
        %v5518 = vunpack.c.l.b16 %v5427
        %v5519 = vunpack.c.l.b16 %v5428
        %v5520 = vunpack.c.l.b16 %v5429
        %v5521 = vunpack.c.l.b16 %v5430
        %v5522 = vunpack.c.l.b16 %v5431
        %v5523 = vunpack.c.l.b16 %v5432
        %v5524 = vunpack.c.l.b16 %v5433
        %v5525 = vunpack.c.l.b16 %v5434
        %v5526 = vunpack.c.l.b16 %v5435
        %v5527 = vunpack.c.l.b16 %v5436
        %v5528 = vunpack.c.l.b16 %v5437
        %v5529 = vunpack.c.l.b16 %v5438
        %v5530 = vunpack.c.l.b16 %v5439
        %v5531 = vunpack.c.l.b16 %v5440
        %v5532 = vunpack.c.l.b16 %v5441
        %v5533 = vunpack.c.l.b16 %v5442
        %v5534 = vunpack.c.l.b16 %v5443
        %v5535 = vunpack.c.l.b16 %v5444
        %v5536 = vunpack.c.l.b16 %v5445
        %v5537 = vunpack.c.l.b16 %v5446
        %v5538 = vunpack.c.l.b16 %v5447
        %v5539 = vunpack.c.l.b16 %v5448
        %v5540 = vunpack.c.l.b16 %v5449
        %v5541 = vunpack.c.l.b16 %v5450
        %v5542 = vpack.c.b16 %v5507, %v5506
        %v5543 = vpack.c.b16 %v5509, %v5508
        %v5544 = vpack.c.b16 %v5511, %v5510
        %v5545 = vpack.c.b16 %v5513, %v5512
        %v5546 = vpack.c.b16 %v5515, %v5514
        %v5547 = vpack.c.b16 %v5517, %v5516
        %v5548 = vpack.c.b16 %v5519, %v5518
        %v5549 = vpack.c.b16 %v5521, %v5520
        %v5550 = vpack.c.b16 %v5523, %v5522
        %v5551 = vpack.c.b16 %v5525, %v5524
        %v5552 = vpack.c.b16 %v5527, %v5526
        %v5553 = vpack.c.b16 %v5529, %v5528
        %v5554 = vpack.c.b16 %v5531, %v5530
        %v5555 = vpack.c.b16 %v5533, %v5532
        %v5556 = vpack.c.b16 %v5535, %v5534
        %v5557 = vpack.c.b16 %v5537, %v5536
        %v5558 = vpack.c.b16 %v5539, %v5538
        %v5559 = vpack.c.b16 %v5541, %v5540
        %v5579 = vsel %vm1445, %v5453, 0
        %v5582 = vsel %vm1445, %v5456, 0
        %v5585 = vsel %vm1445, %v5459, 0
        %v5588 = vsel %vm1445, %v5462, 0
        %5590 = vmatprep.subr.bf16.mxu0 0
        %5591 = vmatpush1.bf16.msra.mxu0 %v5542
        %5592 = vmatprep.subr.bf16.mxu0 0
        %5593 = vmatpush1.bf16.msra.mxu0 %v5543
        %5594 = vmatprep.subr.bf16.mxu0 0
        %5595 = vmatpush1.bf16.msra.mxu0 %v5544
        %5596 = vmatprep.subr.bf16.mxu0 0
        %5597 = vmatpush1.bf16.msra.mxu0 %v5545
        %5598 = vmatprep.subr.bf16.mxu0 0
        %5599 = vmatpush1.bf16.msra.mxu0 %v5546
        %5600 = vmatprep.subr.bf16.mxu0 0
        %5601 = vmatpush1.bf16.msra.mxu0 %v5547
        %5602 = vmatprep.subr.bf16.mxu0 0
        %5603 = vmatpush1.bf16.msra.mxu0 %v5548
        %5604 = vmatprep.subr.bf16.mxu0 0
        %5605 = vmatpush1.bf16.msra.mxu0 %v5549
        %5606 = vmatprep.subr.bf16.mxu0 0
        %5607 = vmatpush1.bf16.msra.mxu0 %v5550
        %5608 = vmatprep.subr.bf16.mxu0 0
        %5609 = vmatpush1.bf16.msra.mxu0 %v5551
        %5610 = vmatprep.subr.bf16.mxu0 0
        %5611 = vmatpush1.bf16.msra.mxu0 %v5552
        %5612 = vmatprep.subr.bf16.mxu0 0
        %5613 = vmatpush1.bf16.msra.mxu0 %v5553
        %5614 = vmatprep.subr.bf16.mxu0 0
        %5615 = vmatpush1.bf16.msra.mxu0 %v5554
        %5616 = vmatprep.subr.bf16.mxu0 0
        %5617 = vmatpush1.bf16.msra.mxu0 %v5555
        %5618 = vmatprep.subr.bf16.mxu0 0
        %5619 = vmatpush1.bf16.msra.mxu0 %v5556
        %5620 = vmatprep.subr.bf16.mxu0 0
        %5621 = vmatpush1.bf16.msra.mxu0 %v5557
        %5622 = vmatprep.mubr.bf16.mxu0 %v5452
        %5623 = vmatmul.mubr.bf16.gmra.mrb[0].mxu0 %v5451
        %v5624 = vpop.f32.mrb[0].mxu0
        %v5625 = vadd.f32 %v5468, %v5624
        %v5626 = vpop.f32.mrb[0].mxu0
        %v5627 = vpop.f32.mrb[0].mxu0
        %v5628 = vadd.f32 %v5468, %v5627
        %v5629 = vpop.f32.mrb[0].mxu0
        %5630 = vmatprep.mubr.bf16.mxu0 %v5455
        %5631 = vmatmul.mubr.bf16.gmra.mrb[0].mxu0 %v5454
        %v5632 = vpop.f32.mrb[0].mxu0
        %v5633 = vadd.f32 %v5468, %v5632
        %v5634 = vpop.f32.mrb[0].mxu0
        %v5635 = vpop.f32.mrb[0].mxu0
        %v5636 = vadd.f32 %v5468, %v5635
        %v5637 = vpop.f32.mrb[0].mxu0
        %5638 = vmatprep.mubr.bf16.mxu0 %v5458
        %5639 = vmatmul.mubr.bf16.gmra.mrb[0].mxu0 %v5457
        %v5640 = vpop.f32.mrb[0].mxu0
        %v5641 = vadd.f32 %v5468, %v5640
        %v5642 = vpop.f32.mrb[0].mxu0
        %v5643 = vpop.f32.mrb[0].mxu0
        %v5644 = vadd.f32 %v5468, %v5643
        %v5645 = vpop.f32.mrb[0].mxu0
        %5646 = vmatprep.mubr.bf16.mxu0 %v5461
        %5647 = vmatmul.mubr.bf16.gmra.mrb[0].mxu0 %v5460
        %v5648 = vpop.f32.mrb[0].mxu0
        %v5649 = vadd.f32 %v5468, %v5648
        %v5650 = vpop.f32.mrb[0].mxu0
        %v5651 = vpop.f32.mrb[0].mxu0
        %v5652 = vadd.f32 %v5468, %v5651
        %v5653 = vpop.f32.mrb[0].mxu0
        %5654 = vdwg.mxu0
        %5655 = vmatprep.subr.bf16.mxu0 0
        %5656 = vmatpush1.bf16.msra.mxu0 %v5558
        %5657 = vmatprep.subr.bf16.mxu0 0
        %5658 = vmatpush1.bf16.msra.mxu0 %v5559
        %5659 = vmatprep.subr.bf16.mxu0 0
        %5660 = vmatpush1.bf16.msra.mxu0 0
        %5661 = vmatprep.subr.bf16.mxu0 0
        %5662 = vmatpush1.bf16.msra.mxu0 0
        %5663 = vmatprep.subr.bf16.mxu0 0
        %5664 = vmatpush1.bf16.msra.mxu0 0
        %5665 = vmatprep.subr.bf16.mxu0 0
        %5666 = vmatpush1.bf16.msra.mxu0 0
        %5667 = vmatprep.subr.bf16.mxu0 0
        %5668 = vmatpush1.bf16.msra.mxu0 0
        %5669 = vmatprep.subr.bf16.mxu0 0
        %5670 = vmatpush1.bf16.msra.mxu0 0
        %5671 = vmatprep.subr.bf16.mxu0 0
        %5672 = vmatpush1.bf16.msra.mxu0 0
        %5673 = vmatprep.subr.bf16.mxu0 0
        %5674 = vmatpush1.bf16.msra.mxu0 0
        %5675 = vmatprep.subr.bf16.mxu0 0
        %5676 = vmatpush1.bf16.msra.mxu0 0
        %5677 = vmatprep.subr.bf16.mxu0 0
        %5678 = vmatpush1.bf16.msra.mxu0 0
        %5679 = vmatprep.subr.bf16.mxu0 0
        %5680 = vmatpush1.bf16.msra.mxu0 0
        %5681 = vmatprep.subr.bf16.mxu0 0
        %5682 = vmatpush1.bf16.msra.mxu0 0
        %5683 = vmatprep.subr.bf16.mxu0 0
        %5684 = vmatpush1.bf16.msra.mxu0 0
        %5685 = vmatprep.subr.bf16.mxu0 0
        %5686 = vmatpush1.bf16.msra.mxu0 0
        %5687 = vmatprep.mubr.bf16.mxu0 0
        %5688 = vmatmul.mubr.bf16.gmra.mrb[0].mxu0 %v5579
        %v5689 = vpop.f32.mrb[0].mxu0
        %v5690 = vadd.f32 %v5625, %v5689
        %v5691 = vpop.f32.mrb[0].mxu0
        %v5692 = vpop.f32.mrb[0].mxu0
        %v5693 = vadd.f32 %v5628, %v5692
        %v5694 = vpop.f32.mrb[0].mxu0
        %5695 = vmatprep.mubr.bf16.mxu0 0
        %5696 = vmatmul.mubr.bf16.gmra.mrb[0].mxu0 %v5582
        %v5697 = vpop.f32.mrb[0].mxu0
        %v5698 = vadd.f32 %v5633, %v5697
        %v5699 = vpop.f32.mrb[0].mxu0
        %v5700 = vpop.f32.mrb[0].mxu0
        %v5701 = vadd.f32 %v5636, %v5700
        %v5702 = vpop.f32.mrb[0].mxu0
        %5703 = vmatprep.mubr.bf16.mxu0 0
        %5704 = vmatmul.mubr.bf16.gmra.mrb[0].mxu0 %v5585
        %v5705 = vpop.f32.mrb[0].mxu0
        %v5706 = vadd.f32 %v5641, %v5705
        %v5707 = vpop.f32.mrb[0].mxu0
        %v5708 = vpop.f32.mrb[0].mxu0
        %v5709 = vadd.f32 %v5644, %v5708
        %v5710 = vpop.f32.mrb[0].mxu0
        %5711 = vmatprep.mubr.bf16.mxu0 0
        %5712 = vmatmul.mubr.bf16.gmra.mrb[0].mxu0 %v5588
        %v5713 = vpop.f32.mrb[0].mxu0
        %v5714 = vadd.f32 %v5649, %v5713
        %v5715 = vpop.f32.mrb[0].mxu0
        %v5716 = vpop.f32.mrb[0].mxu0
        %v5717 = vadd.f32 %v5652, %v5716
        %v5718 = vpop.f32.mrb[0].mxu0
        %5719 = vdwg.mxu0
        %v5720 = vmax.f32 %v5690, 0.0
        %v5721 = vmax.f32 %v5693, 0.0
        %v5722 = vmax.f32 %v5698, 0.0
        %v5723 = vmax.f32 %v5701, 0.0
        %v5724 = vmax.f32 %v5706, 0.0
        %v5725 = vmax.f32 %v5709, 0.0
        %v5726 = vmax.f32 %v5714, 0.0
        %v5727 = vmax.f32 %v5717, 0.0
        %v5728 = vld [vmem:[%s17] sm:$0xf]
        %v5729 = vpack.c.bf16 %v5721, %v5720
        %v5730 = vpack.c.bf16 %v5723, %v5722
        %v5731 = vpack.c.bf16 %v5725, %v5724
        %v5732 = vpack.c.bf16 %v5727, %v5726
        %vm5733 = vcmask 490496
        %v5735 = vsel %vm5733, %v5728, 0
        %v5738 = vsel %vm963, %v5732, 0
        %5740 = vmatprep.subr.bf16.mxu0 0
        %5741 = vmatpush1.bf16.msra.mxu0 %v5729
        %5742 = vmatprep.subr.bf16.mxu0 0
        %5743 = vmatpush1.bf16.msra.mxu0 %v5730
        %5744 = vmatprep.subr.bf16.mxu0 0
        %5745 = vmatpush1.bf16.msra.mxu0 %v5731
        %5746 = vmatprep.subr.bf16.mxu0 0
        %5747 = vmatpush1.bf16.msra.mxu0 %v5738
        %5748 = vmatprep.subr.bf16.mxu0 0
        %5749 = vmatpush1.bf16.msra.mxu0 0
        %5750 = vmatprep.subr.bf16.mxu0 0
        %5751 = vmatpush1.bf16.msra.mxu0 0
        %5752 = vmatprep.subr.bf16.mxu0 0
        %5753 = vmatpush1.bf16.msra.mxu0 0
        %5754 = vmatprep.subr.bf16.mxu0 0
        %5755 = vmatpush1.bf16.msra.mxu0 0
        %5756 = vmatprep.subr.bf16.mxu0 0
        %5757 = vmatpush1.bf16.msra.mxu0 0
        %5758 = vmatprep.subr.bf16.mxu0 0
        %5759 = vmatpush1.bf16.msra.mxu0 0
        %5760 = vmatprep.subr.bf16.mxu0 0
        %5761 = vmatpush1.bf16.msra.mxu0 0
        %5762 = vmatprep.subr.bf16.mxu0 0
        %5763 = vmatpush1.bf16.msra.mxu0 0
        %5764 = vmatprep.subr.bf16.mxu0 0
        %5765 = vmatpush1.bf16.msra.mxu0 0
        %5766 = vmatprep.subr.bf16.mxu0 0
        %5767 = vmatpush1.bf16.msra.mxu0 0
        %5768 = vmatprep.subr.bf16.mxu0 0
        %5769 = vmatpush1.bf16.msra.mxu0 0
        %5770 = vmatprep.subr.bf16.mxu0 0
        %5771 = vmatpush1.bf16.msra.mxu0 0
        %5772 = vmatprep.mubr.bf16.mxu0 0
        %5773 = vmatmul.mubr.bf16.gmra.mrb[0].mxu0 %v5735
        %v5774 = vpop.f32.mrb[0].mxu0
        %v5775 = vadd.f32 0.0, %v5774
        %v5776 = vpop.f32.mrb[0].mxu0
        %v5777 = vpop.f32.mrb[0].mxu0
        %v5778 = vpop.f32.mrb[0].mxu0
        %5779 = vdwg.mxu0
        %v5780 = vld [vmem:[%s18] sm:$0xf]
        %v5781 = vld [vmem:[%s18 + $0x4] sm:$0xf]
        %v5782 = vld [vmem:[%s18 + $0x8] sm:$0xf]
        %v5783 = vld [vmem:[%s18 + $0xc] sm:$0xf]
        %v5784 = vld [vmem:[%s18 + $0x10] sm:$0xf]
        %v5785 = vld [vmem:[%s18 + $0x14] sm:$0xf]
        %v5786 = vld [vmem:[%s18 + $0x18] sm:$0xf]
        %v5787 = vld [vmem:[%s18 + $0x1c] sm:$0xf]
        %v5788 = vpack.c.bf16 %v5775, %v5775
        %v5789 = vld [vmem:[%s19] sm:$0x1]
        %v5791 = vlaneseq
        %v5792 = vshrl.u32 %v5791, 7
        %v5793 = vsub.s32 0, %v5792
        %v5794 = vrot.slane %v5789, %v5793
        %v5804 = vunpack.c.l.b16 %v5780
        %v5805 = vunpack.c.l.b16 %v5781
        %v5806 = vunpack.c.l.b16 %v5782
        %v5807 = vunpack.c.l.b16 %v5783
        %v5808 = vunpack.c.l.b16 %v5784
        %v5809 = vunpack.c.l.b16 %v5785
        %v5810 = vunpack.c.l.b16 %v5786
        %v5811 = vunpack.c.l.b16 %v5787
        %v5812 = vpack.c.b16 %v5805, %v5804
        %v5813 = vpack.c.b16 %v5807, %v5806
        %v5814 = vpack.c.b16 %v5809, %v5808
        %v5815 = vpack.c.b16 %v5811, %v5810
        %v5821 = vsel %vm1412, %v5788, 0
        %5823 = vmatprep.subr.bf16.mxu0 0
        %5824 = vmatpush1.bf16.msra.mxu0 %v5812
        %5825 = vmatprep.subr.bf16.mxu0 0
        %5826 = vmatpush1.bf16.msra.mxu0 %v5813
        %5827 = vmatprep.subr.bf16.mxu0 0
        %5828 = vmatpush1.bf16.msra.mxu0 %v5814
        %5829 = vmatprep.subr.bf16.mxu0 0
        %5830 = vmatpush1.bf16.msra.mxu0 %v5815
        %5831 = vmatprep.subr.bf16.mxu0 0
        %5832 = vmatpush1.bf16.msra.mxu0 0
        %5833 = vmatprep.subr.bf16.mxu0 0
        %5834 = vmatpush1.bf16.msra.mxu0 0
        %5835 = vmatprep.subr.bf16.mxu0 0
        %5836 = vmatpush1.bf16.msra.mxu0 0
        %5837 = vmatprep.subr.bf16.mxu0 0
        %5838 = vmatpush1.bf16.msra.mxu0 0
        %5839 = vmatprep.subr.bf16.mxu0 0
        %5840 = vmatpush1.bf16.msra.mxu0 0
        %5841 = vmatprep.subr.bf16.mxu0 0
        %5842 = vmatpush1.bf16.msra.mxu0 0
        %5843 = vmatprep.subr.bf16.mxu0 0
        %5844 = vmatpush1.bf16.msra.mxu0 0
        %5845 = vmatprep.subr.bf16.mxu0 0
        %5846 = vmatpush1.bf16.msra.mxu0 0
        %5847 = vmatprep.subr.bf16.mxu0 0
        %5848 = vmatpush1.bf16.msra.mxu0 0
        %5849 = vmatprep.subr.bf16.mxu0 0
        %5850 = vmatpush1.bf16.msra.mxu0 0
        %5851 = vmatprep.subr.bf16.mxu0 0
        %5852 = vmatpush1.bf16.msra.mxu0 0
        %5853 = vmatprep.subr.bf16.mxu0 0
        %5854 = vmatpush1.bf16.msra.mxu0 0
        %5855 = vmatprep.mubr.bf16.mxu0 0
        %5856 = vmatmul.mubr.bf16.gmra.mrb[0].mxu0 %v5821
        %v5857 = vpop.f32.mrb[0].mxu0
        %v5858 = vadd.f32 %v5794, %v5857
        %v5859 = vpop.f32.mrb[0].mxu0
        %v5860 = vpop.f32.mrb[0].mxu0
        %v5861 = vpop.f32.mrb[0].mxu0
        %5862 = vdwg.mxu0
        %v5863 = vmax.f32 %v5858, 0.0
        %v5864 = vld [vmem:[%s20] sm:$0xf]
        %v5865 = vld [vmem:[%s20 + $0x4] sm:$0xf]
        %v5866 = vld [vmem:[%s20 + $0x8] sm:$0xf]
        %v5867 = vld [vmem:[%s20 + $0xc] sm:$0xf]
        %v5868 = vld [vmem:[%s20 + $0x10] sm:$0xf]
        %v5869 = vld [vmem:[%s20 + $0x14] sm:$0xf]
        %v5870 = vld [vmem:[%s20 + $0x18] sm:$0xf]
        %v5871 = vld [vmem:[%s20 + $0x1c] sm:$0xf]
        %v5872 = vld [vmem:[%s20 + $0x20] sm:$0xf]
        %v5873 = vld [vmem:[%s20 + $0x24] sm:$0xf]
        %v5874 = vld [vmem:[%s20 + $0x28] sm:$0xf]
        %v5875 = vld [vmem:[%s20 + $0x2c] sm:$0xf]
        %v5876 = vld [vmem:[%s20 + $0x30] sm:$0xf]
        %v5877 = vld [vmem:[%s20 + $0x34] sm:$0xf]
        %v5878 = vld [vmem:[%s20 + $0x38] sm:$0xf]
        %v5879 = vpack.c.bf16 %v5863, %v5863
        %v5880 = vld [vmem:[%s21] sm:$0x1]
        %v5882 = vlaneseq
        %v5883 = vshrl.u32 %v5882, 7
        %v5884 = vsub.s32 0, %v5883
        %v5885 = vrot.slane %v5880, %v5884
        %v5902 = vunpack.c.l.b16 %v5864
        %v5903 = vunpack.c.l.b16 %v5865
        %v5904 = vunpack.c.l.b16 %v5866
        %v5905 = vunpack.c.l.b16 %v5867
        %v5906 = vunpack.c.l.b16 %v5868
        %v5907 = vunpack.c.l.b16 %v5869
        %v5908 = vunpack.c.l.b16 %v5870
        %v5909 = vunpack.c.l.b16 %v5871
        %v5910 = vunpack.c.l.b16 %v5872
        %v5911 = vunpack.c.l.b16 %v5873
        %v5912 = vunpack.c.l.b16 %v5874
        %v5913 = vunpack.c.l.b16 %v5875
        %v5914 = vunpack.c.l.b16 %v5876
        %v5915 = vunpack.c.l.b16 %v5877
        %v5916 = vunpack.c.l.b16 %v5878
        %v5917 = vpack.c.b16 %v5903, %v5902
        %v5918 = vpack.c.b16 %v5905, %v5904
        %v5919 = vpack.c.b16 %v5907, %v5906
        %v5920 = vpack.c.b16 %v5909, %v5908
        %v5921 = vpack.c.b16 %v5911, %v5910
        %v5922 = vpack.c.b16 %v5913, %v5912
        %v5923 = vpack.c.b16 %v5915, %v5914
        %v5924 = vpack.c.b16 %v5916, %v5916
        %vm5932 = vcmask 982016
        %v5934 = vsel %vm5932, %v5879, 0
        %v5937 = vsel %vm1283, %v5924, 0
        %5939 = vmatprep.subr.bf16.mxu0 0
        %5940 = vmatpush1.bf16.msra.mxu0 %v5917
        %5941 = vmatprep.subr.bf16.mxu0 0
        %5942 = vmatpush1.bf16.msra.mxu0 %v5918
        %5943 = vmatprep.subr.bf16.mxu0 0
        %5944 = vmatpush1.bf16.msra.mxu0 %v5919
        %5945 = vmatprep.subr.bf16.mxu0 0
        %5946 = vmatpush1.bf16.msra.mxu0 %v5920
        %5947 = vmatprep.subr.bf16.mxu0 0
        %5948 = vmatpush1.bf16.msra.mxu0 %v5921
        %5949 = vmatprep.subr.bf16.mxu0 0
        %5950 = vmatpush1.bf16.msra.mxu0 %v5922
        %5951 = vmatprep.subr.bf16.mxu0 0
        %5952 = vmatpush1.bf16.msra.mxu0 %v5923
        %5953 = vmatprep.subr.bf16.mxu0 0
        %5954 = vmatpush1.bf16.msra.mxu0 %v5937
        %5955 = vmatprep.subr.bf16.mxu0 0
        %5956 = vmatpush1.bf16.msra.mxu0 0
        %5957 = vmatprep.subr.bf16.mxu0 0
        %5958 = vmatpush1.bf16.msra.mxu0 0
        %5959 = vmatprep.subr.bf16.mxu0 0
        %5960 = vmatpush1.bf16.msra.mxu0 0
        %5961 = vmatprep.subr.bf16.mxu0 0
        %5962 = vmatpush1.bf16.msra.mxu0 0
        %5963 = vmatprep.subr.bf16.mxu0 0
        %5964 = vmatpush1.bf16.msra.mxu0 0
        %5965 = vmatprep.subr.bf16.mxu0 0
        %5966 = vmatpush1.bf16.msra.mxu0 0
        %5967 = vmatprep.subr.bf16.mxu0 0
        %5968 = vmatpush1.bf16.msra.mxu0 0
        %5969 = vmatprep.subr.bf16.mxu0 0
        %5970 = vmatpush1.bf16.msra.mxu0 0
        %5971 = vmatprep.mubr.bf16.mxu0 0
        %5972 = vmatmul.mubr.bf16.gmra.mrb[0].mxu0 %v5934
        %v5973 = vpop.f32.mrb[0].mxu0
        %v5974 = vadd.f32 %v5885, %v5973
        %v5975 = vpop.f32.mrb[0].mxu0
        %v5976 = vpop.f32.mrb[0].mxu0
        %v5977 = vpop.f32.mrb[0].mxu0
        %5978 = vdwg.mxu0
        %v5979 = vmax.f32 %v5974, 0.0
        %v5980 = vld [vmem:[%s22] sm:$0xf]
        %v5981 = vld [vmem:[%s22 + $0x4] sm:$0xf]
        %v5982 = vld [vmem:[%s22 + $0x8] sm:$0xf]
        %v5983 = vld [vmem:[%s22 + $0xc] sm:$0xf]
        %v5984 = vld [vmem:[%s22 + $0x10] sm:$0xf]
        %v5985 = vld [vmem:[%s22 + $0x14] sm:$0xf]
        %v5986 = vld [vmem:[%s22 + $0x18] sm:$0xf]
        %v5987 = vld [vmem:[%s22 + $0x1c] sm:$0xf]
        %v5988 = vld [vmem:[%s22 + $0x20] sm:$0xf]
        %v5989 = vld [vmem:[%s22 + $0x24] sm:$0xf]
        %v5990 = vld [vmem:[%s22 + $0x28] sm:$0x3]
        %v5991 = vpack.c.bf16 %v5979, %v5979
        %v5992 = vld [vmem:[%s23] sm:$0x1]
        %v5994 = vlaneseq
        %v5995 = vshrl.u32 %v5994, 7
        %v5996 = vsub.s32 0, %v5995
        %v5997 = vrot.slane %v5992, %v5996
        %v6010 = vunpack.c.l.b16 %v5980
        %v6011 = vunpack.c.l.b16 %v5981
        %v6012 = vunpack.c.l.b16 %v5982
        %v6013 = vunpack.c.l.b16 %v5983
        %v6014 = vunpack.c.l.b16 %v5984
        %v6015 = vunpack.c.l.b16 %v5985
        %v6016 = vunpack.c.l.b16 %v5986
        %v6017 = vunpack.c.l.b16 %v5987
        %v6018 = vunpack.c.l.b16 %v5988
        %v6019 = vunpack.c.l.b16 %v5989
        %v6020 = vunpack.c.l.b16 %v5990
        %v6021 = vpack.c.b16 %v6011, %v6010
        %v6022 = vpack.c.b16 %v6013, %v6012
        %v6023 = vpack.c.b16 %v6015, %v6014
        %v6024 = vpack.c.b16 %v6017, %v6016
        %v6025 = vpack.c.b16 %v6019, %v6018
        %v6026 = vpack.c.b16 %v6020, %v6020
        %v6033 = vsel %vm3690, %v5991, 0
        %v6036 = vsel %vm4143, %v6026, 0
        %6038 = vmatprep.subr.bf16.mxu0 0
        %6039 = vmatpush1.bf16.msra.mxu0 %v6021
        %6040 = vmatprep.subr.bf16.mxu0 0
        %6041 = vmatpush1.bf16.msra.mxu0 %v6022
        %6042 = vmatprep.subr.bf16.mxu0 0
        %6043 = vmatpush1.bf16.msra.mxu0 %v6023
        %6044 = vmatprep.subr.bf16.mxu0 0
        %6045 = vmatpush1.bf16.msra.mxu0 %v6024
        %6046 = vmatprep.subr.bf16.mxu0 0
        %6047 = vmatpush1.bf16.msra.mxu0 %v6025
        %6048 = vmatprep.subr.bf16.mxu0 0
        %6049 = vmatpush1.bf16.msra.mxu0 %v6036
        %6050 = vmatprep.subr.bf16.mxu0 0
        %6051 = vmatpush1.bf16.msra.mxu0 0
        %6052 = vmatprep.subr.bf16.mxu0 0
        %6053 = vmatpush1.bf16.msra.mxu0 0
        %6054 = vmatprep.subr.bf16.mxu0 0
        %6055 = vmatpush1.bf16.msra.mxu0 0
        %6056 = vmatprep.subr.bf16.mxu0 0
        %6057 = vmatpush1.bf16.msra.mxu0 0
        %6058 = vmatprep.subr.bf16.mxu0 0
        %6059 = vmatpush1.bf16.msra.mxu0 0
        %6060 = vmatprep.subr.bf16.mxu0 0
        %6061 = vmatpush1.bf16.msra.mxu0 0
        %6062 = vmatprep.subr.bf16.mxu0 0
        %6063 = vmatpush1.bf16.msra.mxu0 0
        %6064 = vmatprep.subr.bf16.mxu0 0
        %6065 = vmatpush1.bf16.msra.mxu0 0
        %6066 = vmatprep.subr.bf16.mxu0 0
        %6067 = vmatpush1.bf16.msra.mxu0 0
        %6068 = vmatprep.subr.bf16.mxu0 0
        %6069 = vmatpush1.bf16.msra.mxu0 0
        %6070 = vmatprep.mubr.bf16.mxu0 0
        %6071 = vmatmul.mubr.bf16.gmra.mrb[0].mxu0 %v6033
        %v6072 = vpop.f32.mrb[0].mxu0
        %v6073 = vadd.f32 %v5997, %v6072
        %v6074 = vpop.f32.mrb[0].mxu0
        %v6075 = vpop.f32.mrb[0].mxu0
        %v6076 = vpop.f32.mrb[0].mxu0
        %6077 = vdwg.mxu0
        %6078 = vst [vmem:[%s731] sm:$0xff] %v6073
        %s6079 = sand.u32 %s555, 1
        %s6080 = scalar_lea.sflag [#allocation3], %s6079
        %s6081 = sand.u32 %s555, 1
        %s6082 = smul.addr %s6081, 8
        %s6083 = scalar_lea.vmem [#allocation2], %s6082
        // Predicated region
        $region117: #{second_cnn_forward.1} parent=115 // pred_check
          %p6084 = pneg %p565
        $region118: #{second_cnn_forward.1} parent=115 // pred_check_branch
          %6086 = sbr.rel (%p6084) target = $region120
        $region119: #{second_cnn_forward.1} parent=115 // pred_region
          %s6088 = ssub.s32 128, 128
          %6089 = vsyncadd %s6080, %s6088
          %s6090 = smul.addr %s38, 128
          %s6091 = scalar_lea.hbm %s24, %s6090
          %s6093 = sshll.u32 %s6083, 4
          %s6094 = int_to_ptr.vmem [resolvable:$true] %s6093
          %6096 = dma.vmem_to_hbm [thread:$0]  %s6094, 128, %s6091, %s6080
        $region120: #{second_cnn_forward.1} parent=115 // pred_fallthru
          _
      $region116: #{second_cnn_forward.1} parent=5 // pred_fallthru
        _
      %p6097 = scmp.le.s32.totalorder 2, %s33
      // Predicated region
      $region121: #{second_cnn_forward.1} parent=5 // pred_check
        %p6098 = pneg %p6097
      $region122: #{second_cnn_forward.1} parent=5 // pred_check_branch
        %6100 = sbr.rel (%p6098) target = $region124
      $region123: #{second_cnn_forward.1} parent=5 // pred_region
        %s6101 = ssub.s32 %s33, 2
        // Predicated region
        $region125: #{second_cnn_forward.1} parent=123 // pred_check
          %p6102 = pneg %p571
        $region126: #{second_cnn_forward.1} parent=123 // pred_check_branch
          %6104 = sbr.rel (%p6102) target = $region128
        $region127: #{second_cnn_forward.1} parent=123 // pred_region
          %s6105 = sand.u32 %s556, 1
          %s6106 = scalar_lea.sflag [#allocation3], %s6105
          %s6107 = sand.u32 %s556, 1
          %s6108 = smul.addr %s6107, 8
          %s6109 = scalar_lea.vmem [#allocation2], %s6108
          %6110 = dma.done %s6106, 128
        $region128: #{second_cnn_forward.1} parent=123 // pred_fallthru
          _
      $region124: #{second_cnn_forward.1} parent=5 // pred_fallthru
        _
    $region6: #{second_cnn_forward.1} parent=1 // loop_footer
      %s37 = sadd.s32 1, %s33
    $region7: #{second_cnn_forward.1} parent=1 // loop_footer_branch
      %32 = sbr.rel target = $region3
    $region8: #{second_cnn_forward.1} parent=1 // loop_exit
      _
    %6111 = vsyncpa [#allocation3], 1
    %s6112 = scalar_lea.sflag [#allocation3], 1
    %6113 = vsyncpa %s6112, 1

</llo_original>
